<compile_context>
chip_gen: v5e
topology: v5e:2x2
jax: 0.10.0
libtpu: 0.0.40
codegen_flags: <defaults>
</compile_context>

<pallas_src>
import functools

import jax
import jax.numpy as jnp
import numpy as np
from jax.experimental import pallas as pl
from jax.experimental.pallas import tpu as pltpu


# ---------------------------------------------------------------------------
# Fused kernel: gather layer-0 input gates -> wavefront LSTM -> batched head.
# PyTorch gate order: i, f, g, o.  Gate g lives in lanes [g*GP, g*GP+H).
# ---------------------------------------------------------------------------
def _fused_kernel(ids_ref, table_ref, whh0_ref, *rest,
                  nlayers, T, B, H, V, GP, VP):
    n_extra = 3 * (nlayers - 1)
    layer_refs = rest[:n_extra]
    whead_ref, bhead_ref, out_ref, xg0_scr, hid_scr = rest[n_extra:]
    G4 = 4 * GP

    # ---- layer-0 input path: gather precomputed (emb@W_ih + b) rows from the
    #      (V, 4*GP) table using token ids held in SMEM (scalar prefetch).
    #      Fully unrolled; completely off the recurrent critical path.
    for tb in range(T * B):
        idx = jnp.clip(ids_ref[tb], 0, V - 1)          # clamp OOB ids (no VMEM OOB)
        xg0_scr[pl.ds(tb, 1), :] = table_ref[pl.ds(idx, 1), :]

    # hoist the (1, 4*GP) -> (B, 4*GP) bias broadcasts out of the loops
    b_bcast = [None]
    for l in range(1, nlayers):
        b_bcast.append(jnp.broadcast_to(layer_refs[3 * (l - 1) + 2][...], (B, G4)))

    def lstm_elem(gates, c_prev):
        # lane-aligned gate slices (GP = 128-multiple), zero-padding never read
        i = jax.nn.sigmoid(gates[:, 0 * GP:0 * GP + H])
        f = jax.nn.sigmoid(gates[:, 1 * GP:1 * GP + H])
        g = jnp.tanh(gates[:, 2 * GP:2 * GP + H])
        o = jax.nn.sigmoid(gates[:, 3 * GP:3 * GP + H])
        c_new = f * c_prev + i * g
        h_new = o * jnp.tanh(c_new)
        return h_new, c_new

    # ---- wavefront recurrence: at iteration k, layer l processes timestep
    #      k - l.  Every matmul in one iteration depends only on values from
    #      the previous iteration, so the serial chain is T + nlayers - 1
    #      instead of nlayers * T.  h / c stay in vregs (Python-carried).
    h = [jnp.zeros((B, H), jnp.float32) for _ in range(nlayers)]
    c = [jnp.zeros((B, H), jnp.float32) for _ in range(nlayers)]
    for k in range(T + nlayers - 1):
        h_prev = list(h)                     # snapshot previous-iteration values
        for l in range(nlayers):
            t = k - l
            if not (0 <= t < T):
                continue
            if l == 0:
                gates = (xg0_scr[pl.ds(t * B, B), :]
                         + jnp.dot(h_prev[0], whh0_ref[...],
                                   preferred_element_type=jnp.float32))
            else:
                wih_ref = layer_refs[3 * (l - 1) + 0]
                whh_ref = layer_refs[3 * (l - 1) + 1]
                gates = (jnp.dot(h_prev[l - 1], wih_ref[...],
                                 preferred_element_type=jnp.float32)
                         + jnp.dot(h_prev[l], whh_ref[...],
                                   preferred_element_type=jnp.float32)
                         + b_bcast[l])
            h[l], c[l] = lstm_elem(gates, c[l])
            if l == nlayers - 1:
                hid_scr[pl.ds(t * B, B), :] = h[l]     # static offsets (unrolled)

    # ---- folded tied-embedding head: one lane-dense batched matmul ---------
    out_ref[...] = (jnp.dot(hid_scr[...], whead_ref[...],
                            preferred_element_type=jnp.float32)
                    + jnp.broadcast_to(bhead_ref[...], (T * B, VP)))


def fused_forward(ids_flat, xg_table0, whh0_pad, layer_params_pad,
                  w_head_pad, b_head_pad, T, B, H, V):
    """ids_flat: (T*B,) int32 (seq-major); xg_table0: (V, 4*GP);
    whh0_pad: (H, 4*GP); layer_params_pad: list of (w_ih (H,4GP), w_hh (H,4GP),
    b (1,4GP)) for layers >= 1; w_head_pad: (H, VP); b_head_pad: (1, VP).
    Returns padded logits (T*B, VP)."""
    nlayers = 1 + len(layer_params_pad)
    GP = whh0_pad.shape[1] // 4
    VP = w_head_pad.shape[1]

    flat_inputs = [xg_table0, whh0_pad]
    in_specs = [
        pl.BlockSpec(xg_table0.shape, lambda i, ids: (0, 0)),
        pl.BlockSpec(whh0_pad.shape, lambda i, ids: (0, 0)),
    ]
    for (w_ih_p, w_hh_p, b_p) in layer_params_pad:
        flat_inputs += [w_ih_p, w_hh_p, b_p]
        in_specs += [
            pl.BlockSpec(w_ih_p.shape, lambda i, ids: (0, 0)),
            pl.BlockSpec(w_hh_p.shape, lambda i, ids: (0, 0)),
            pl.BlockSpec(b_p.shape, lambda i, ids: (0, 0)),
        ]
    flat_inputs += [w_head_pad, b_head_pad]
    in_specs += [
        pl.BlockSpec(w_head_pad.shape, lambda i, ids: (0, 0)),
        pl.BlockSpec(b_head_pad.shape, lambda i, ids: (0, 0)),
    ]

    kernel = functools.partial(_fused_kernel, nlayers=nlayers, T=T, B=B,
                               H=H, V=V, GP=GP, VP=VP)
    return pl.pallas_call(
        kernel,
        out_shape=jax.ShapeDtypeStruct((T * B, VP), jnp.float32),
        grid_spec=pltpu.PrefetchScalarGridSpec(
            num_scalar_prefetch=1,                      # token ids -> SMEM
            grid=(1,),
            in_specs=in_specs,
            out_specs=pl.BlockSpec((T * B, VP), lambda i, ids: (0, 0)),
            scratch_shapes=[
                pltpu.VMEM((T * B, 4 * GP), jnp.float32),   # layer-0 input gates
                pltpu.VMEM((T * B, H), jnp.float32),        # final-layer hidden seq
            ],
        ),
        compiler_params=pltpu.CompilerParams(
            dimension_semantics=("arbitrary",)),        # single sequential step
    )(ids_flat, *flat_inputs)


def _round_up(x, m):
    return ((x + m - 1) // m) * m


def _pad_gate_cols(w, H, GP):
    """(Din, 4H) combined-gate matrix (order i,f,g,o) -> (Din, 4*GP) where gate
    g occupies lanes [g*GP, g*GP + H) and the rest is zero (lane-aligned)."""
    w = np.asarray(w, np.float32)
    din = w.shape[0]
    out = np.zeros((din, 4 * GP), np.float32)
    for g in range(4):
        out[:, g * GP:g * GP + H] = w[:, g * H:(g + 1) * H]
    return jnp.asarray(out)


# ---------------------------------------------------------------------------
# Model = one fused Pallas kernel (embedding -> 2x LSTM -> tied-embedding head)
# ---------------------------------------------------------------------------
class MusicModelPallas:
    def __init__(self, vocab_size, embed_size=32, hidden_size=48, nlayers=2, key=None):
        self.vocab_size = vocab_size
        self.embed_size = embed_size
        self.hidden_size = hidden_size
        self.nlayers = nlayers
        keys = jax.random.split(key, 2 + 4 * nlayers)
        k = iter(keys)

        H = hidden_size
        # nn.Embedding(vocab, embed)
        self.embedding = jax.random.normal(next(k), (vocab_size, embed_size),
                                           jnp.float32) * 0.1
        # nn.LSTM(embed, hidden, nlayers): combined layout for the reference.
        # W_ih (Din,4H), W_hh (H,4H), bias (1,4H)=b_ih+b_hh, gate order i,f,g,o.
        self.lstm_params = []
        for layer in range(nlayers):
            din = embed_size if layer == 0 else hidden_size
            s = 1.0 / np.sqrt(H)
            w_ih = jax.random.uniform(next(k), (din, 4 * H), jnp.float32, -s, s)
            w_hh = jax.random.uniform(next(k), (H, 4 * H), jnp.float32, -s, s)
            b_ih = jax.random.uniform(next(k), (1, 4 * H), jnp.float32, -s, s)
            b_hh = jax.random.uniform(next(k), (1, 4 * H), jnp.float32, -s, s)
            self.lstm_params.append((w_ih, w_hh, b_ih + b_hh))
        # nn.Linear(hidden, embed): W stored as (H, E)
        s = 1.0 / np.sqrt(hidden_size)
        self.w_fc = jax.random.uniform(keys[-2], (hidden_size, embed_size),
                                       jnp.float32, -s, s)
        self.b_fc = jax.random.uniform(keys[-1], (1, embed_size),
                                       jnp.float32, -s, s)

        # ---- kernel-layout parameters (precomputed once) --------------------
        GP = _round_up(hidden_size, 128)        # gate pitch (lane-aligned gates)
        VP = _round_up(vocab_size, 128)         # lane-dense padded vocab
        self.GP, self.VP = GP, VP

        # layer 0: fold embedding + combined bias into a per-token gate table
        w_ih0, w_hh0, b0 = self.lstm_params[0]
        w_ih0_pad = _pad_gate_cols(w_ih0, H, GP)                 # (E, 4GP)
        b0_pad = _pad_gate_cols(b0, H, GP)                       # (1, 4GP)
        self.xg_table0 = self.embedding @ w_ih0_pad + b0_pad     # (V, 4GP)
        self.whh0_pad = _pad_gate_cols(w_hh0, H, GP)             # (H, 4GP)

        # layers >= 1: gate-padded weights + bias
        self.layer_params_pad = []
        for (w_ih, w_hh, b) in self.lstm_params[1:]:
            self.layer_params_pad.append((
                _pad_gate_cols(w_ih, H, GP),
                _pad_gate_cols(w_hh, H, GP),
                _pad_gate_cols(b, H, GP)))

        # folded, lane-padded tied-embedding head
        w_head = np.asarray(self.w_fc @ self.embedding.T, np.float32)  # (H, V)
        b_head = np.asarray(self.b_fc @ self.embedding.T, np.float32)  # (1, V)
        w_head_pad = np.zeros((hidden_size, VP), np.float32)
        w_head_pad[:, :vocab_size] = w_head
        b_head_pad = np.zeros((1, VP), np.float32)
        b_head_pad[:, :vocab_size] = b_head
        self.w_head_pad = jnp.asarray(w_head_pad)
        self.b_head_pad = jnp.asarray(b_head_pad)

    def forward(self, x):
        # x: (seq_len, batch) int32 -> logits (seq_len, batch, vocab)
        seq_len, batch = x.shape
        ids = x.astype(jnp.int32).reshape(-1)              # (T*B,), seq-major
        out = fused_forward(ids, self.xg_table0, self.whh0_pad,
                            self.layer_params_pad, self.w_head_pad,
                            self.b_head_pad, seq_len, batch,
                            self.hidden_size, self.vocab_size)
        return out[:, :self.vocab_size].reshape(seq_len, batch, self.vocab_size)

    # pure-JAX reference (original combined-layout math) for correctness check
    def forward_ref(self, x):
        seq_len, batch = x.shape
        H = self.hidden_size
        embed = jnp.take(self.embedding, x, axis=0)
        out = embed
        for (w_ih, w_hh, b) in self.lstm_params:
            h = jnp.zeros((batch, H), jnp.float32)
            c = jnp.zeros((batch, H), jnp.float32)
            ys = []
            for t in range(seq_len):
                gates = out[t] @ w_ih + h @ w_hh + b
                i = jax.nn.sigmoid(gates[:, 0 * H:1 * H])
                f = jax.nn.sigmoid(gates[:, 1 * H:2 * H])
                g = jnp.tanh(gates[:, 2 * H:3 * H])
                o = jax.nn.sigmoid(gates[:, 3 * H:4 * H])
                c = f * c + i * g
                h = o * jnp.tanh(c)
                ys.append(h)
            out = jnp.stack(ys, axis=0)
        out_flat = out.reshape(-1, H)
        logits = (out_flat @ self.w_fc + self.b_fc) @ self.embedding.T
        return logits.reshape(-1, batch, self.vocab_size)


if __name__ == "__main__":
    key = jax.random.PRNGKey(0)
    k_model, k_x = jax.random.split(key)

    vocab_size, embed_size, hidden_size, nlayers = 64, 32, 48, 2
    seq_len, batch = 8, 2

    model = MusicModelPallas(vocab_size, embed_size, hidden_size, nlayers, key=k_model)
    x = jax.random.randint(k_x, (seq_len, batch), 0, vocab_size, dtype=jnp.int32)

    out = model.forward(x)
    out = jax.block_until_ready(out)
    assert out.shape == (seq_len, batch, vocab_size), out.shape

    ref = jax.block_until_ready(model.forward_ref(x))
    np.testing.assert_allclose(np.asarray(out), np.asarray(ref), atol=1e-4, rtol=1e-4)

    print("KERNEL_OK")
</pallas_src>

<mosaic_0001>
module attributes {stable_mosaic.version = 11 : i64} {
  func.func @_fused_kernel(%arg0: i32, %arg1: memref<16xi32, #tpu.memory_space<smem>>, %arg2: memref<64x512xf32, #tpu.memory_space<vmem>>, %arg3: memref<48x512xf32, #tpu.memory_space<vmem>>, %arg4: memref<48x512xf32, #tpu.memory_space<vmem>>, %arg5: memref<48x512xf32, #tpu.memory_space<vmem>>, %arg6: memref<1x512xf32, #tpu.memory_space<vmem>>, %arg7: memref<48x128xf32, #tpu.memory_space<vmem>>, %arg8: memref<1x128xf32, #tpu.memory_space<vmem>>, %arg9: memref<16x128xf32, #tpu.memory_space<vmem>>, %arg10: memref<16x512xf32, #tpu.memory_space<vmem>>, %arg11: memref<16x48xf32, #tpu.memory_space<vmem>>) attributes {dimension_semantics = [#tpu.dimension_semantics<arbitrary>], iteration_bounds = array<i64: 1>, scalar_prefetch = 1 : i64, scratch_operands = 2 : i64, tpu.core_type = #tpu.core_type<tc>, window_params = [{pipeline_mode = #tpu.pipeline_mode<synchronous>, transform_indices = @transform_0, window_bounds = array<i64: 64, 512>}, {pipeline_mode = #tpu.pipeline_mode<synchronous>, transform_indices = @transform_1, window_bounds = array<i64: 48, 512>}, {pipeline_mode = #tpu.pipeline_mode<synchronous>, transform_indices = @transform_2, window_bounds = array<i64: 48, 512>}, {pipeline_mode = #tpu.pipeline_mode<synchronous>, transform_indices = @transform_3, window_bounds = array<i64: 48, 512>}, {pipeline_mode = #tpu.pipeline_mode<synchronous>, transform_indices = @transform_4, window_bounds = array<i64: 1, 512>}, {pipeline_mode = #tpu.pipeline_mode<synchronous>, transform_indices = @transform_5, window_bounds = array<i64: 48, 128>}, {pipeline_mode = #tpu.pipeline_mode<synchronous>, transform_indices = @transform_6, window_bounds = array<i64: 1, 128>}, {pipeline_mode = #tpu.pipeline_mode<synchronous>, transform_indices = @transform_7, window_bounds = array<i64: 16, 128>}]} {
    %c0 = arith.constant 0 : index
    %0 = memref.load %arg1[%c0] : memref<16xi32, #tpu.memory_space<smem>>
    %c0_i32 = arith.constant 0 : i32
    %c63_i32 = arith.constant 63 : i32
    %1 = arith.maxsi %c0_i32, %0 : i32
    %2 = arith.minsi %c63_i32, %1 : i32
    %3 = arith.index_cast %2 : i32 to index
    %c0_0 = arith.constant 0 : index
    %4 = vector.load %arg2[%3, %c0_0] : memref<64x512xf32, #tpu.memory_space<vmem>>, vector<1x512xf32>
    %c0_1 = arith.constant 0 : index
    %c0_2 = arith.constant 0 : index
    %5 = vector.load %arg10[%c0_1, %c0_2] : memref<16x512xf32, #tpu.memory_space<vmem>>, vector<1x512xf32>
    tpu.vector_store %arg10[%c0_1, %c0_2], %4 {strides = array<i32>} : memref<16x512xf32, #tpu.memory_space<vmem>>, vector<1x512xf32>,
    %c1 = arith.constant 1 : index
    %6 = memref.load %arg1[%c1] : memref<16xi32, #tpu.memory_space<smem>>
    %c0_i32_3 = arith.constant 0 : i32
    %c63_i32_4 = arith.constant 63 : i32
    %7 = arith.maxsi %c0_i32_3, %6 : i32
    %8 = arith.minsi %c63_i32_4, %7 : i32
    %9 = arith.index_cast %8 : i32 to index
    %c0_5 = arith.constant 0 : index
    %10 = vector.load %arg2[%9, %c0_5] : memref<64x512xf32, #tpu.memory_space<vmem>>, vector<1x512xf32>
    %c1_6 = arith.constant 1 : index
    %c0_7 = arith.constant 0 : index
    %11 = vector.load %arg10[%c1_6, %c0_7] : memref<16x512xf32, #tpu.memory_space<vmem>>, vector<1x512xf32>
    tpu.vector_store %arg10[%c1_6, %c0_7], %10 {strides = array<i32>} : memref<16x512xf32, #tpu.memory_space<vmem>>, vector<1x512xf32>,
    %c2 = arith.constant 2 : index
    %12 = memref.load %arg1[%c2] : memref<16xi32, #tpu.memory_space<smem>>
    %c0_i32_8 = arith.constant 0 : i32
    %c63_i32_9 = arith.constant 63 : i32
    %13 = arith.maxsi %c0_i32_8, %12 : i32
    %14 = arith.minsi %c63_i32_9, %13 : i32
    %15 = arith.index_cast %14 : i32 to index
    %c0_10 = arith.constant 0 : index
    %16 = vector.load %arg2[%15, %c0_10] : memref<64x512xf32, #tpu.memory_space<vmem>>, vector<1x512xf32>
    %c2_11 = arith.constant 2 : index
    %c0_12 = arith.constant 0 : index
    %17 = vector.load %arg10[%c2_11, %c0_12] : memref<16x512xf32, #tpu.memory_space<vmem>>, vector<1x512xf32>
    tpu.vector_store %arg10[%c2_11, %c0_12], %16 {strides = array<i32>} : memref<16x512xf32, #tpu.memory_space<vmem>>, vector<1x512xf32>,
    %c3 = arith.constant 3 : index
    %18 = memref.load %arg1[%c3] : memref<16xi32, #tpu.memory_space<smem>>
    %c0_i32_13 = arith.constant 0 : i32
    %c63_i32_14 = arith.constant 63 : i32
    %19 = arith.maxsi %c0_i32_13, %18 : i32
    %20 = arith.minsi %c63_i32_14, %19 : i32
    %21 = arith.index_cast %20 : i32 to index
    %c0_15 = arith.constant 0 : index
    %22 = vector.load %arg2[%21, %c0_15] : memref<64x512xf32, #tpu.memory_space<vmem>>, vector<1x512xf32>
    %c3_16 = arith.constant 3 : index
    %c0_17 = arith.constant 0 : index
    %23 = vector.load %arg10[%c3_16, %c0_17] : memref<16x512xf32, #tpu.memory_space<vmem>>, vector<1x512xf32>
    tpu.vector_store %arg10[%c3_16, %c0_17], %22 {strides = array<i32>} : memref<16x512xf32, #tpu.memory_space<vmem>>, vector<1x512xf32>,
    %c4 = arith.constant 4 : index
    %24 = memref.load %arg1[%c4] : memref<16xi32, #tpu.memory_space<smem>>
    %c0_i32_18 = arith.constant 0 : i32
    %c63_i32_19 = arith.constant 63 : i32
    %25 = arith.maxsi %c0_i32_18, %24 : i32
    %26 = arith.minsi %c63_i32_19, %25 : i32
    %27 = arith.index_cast %26 : i32 to index
    %c0_20 = arith.constant 0 : index
    %28 = vector.load %arg2[%27, %c0_20] : memref<64x512xf32, #tpu.memory_space<vmem>>, vector<1x512xf32>
    %c4_21 = arith.constant 4 : index
    %c0_22 = arith.constant 0 : index
    %29 = vector.load %arg10[%c4_21, %c0_22] : memref<16x512xf32, #tpu.memory_space<vmem>>, vector<1x512xf32>
    tpu.vector_store %arg10[%c4_21, %c0_22], %28 {strides = array<i32>} : memref<16x512xf32, #tpu.memory_space<vmem>>, vector<1x512xf32>,
    %c5 = arith.constant 5 : index
    %30 = memref.load %arg1[%c5] : memref<16xi32, #tpu.memory_space<smem>>
    %c0_i32_23 = arith.constant 0 : i32
    %c63_i32_24 = arith.constant 63 : i32
    %31 = arith.maxsi %c0_i32_23, %30 : i32
    %32 = arith.minsi %c63_i32_24, %31 : i32
    %33 = arith.index_cast %32 : i32 to index
    %c0_25 = arith.constant 0 : index
    %34 = vector.load %arg2[%33, %c0_25] : memref<64x512xf32, #tpu.memory_space<vmem>>, vector<1x512xf32>
    %c5_26 = arith.constant 5 : index
    %c0_27 = arith.constant 0 : index
    %35 = vector.load %arg10[%c5_26, %c0_27] : memref<16x512xf32, #tpu.memory_space<vmem>>, vector<1x512xf32>
    tpu.vector_store %arg10[%c5_26, %c0_27], %34 {strides = array<i32>} : memref<16x512xf32, #tpu.memory_space<vmem>>, vector<1x512xf32>,
    %c6 = arith.constant 6 : index
    %36 = memref.load %arg1[%c6] : memref<16xi32, #tpu.memory_space<smem>>
    %c0_i32_28 = arith.constant 0 : i32
    %c63_i32_29 = arith.constant 63 : i32
    %37 = arith.maxsi %c0_i32_28, %36 : i32
    %38 = arith.minsi %c63_i32_29, %37 : i32
    %39 = arith.index_cast %38 : i32 to index
    %c0_30 = arith.constant 0 : index
    %40 = vector.load %arg2[%39, %c0_30] : memref<64x512xf32, #tpu.memory_space<vmem>>, vector<1x512xf32>
    %c6_31 = arith.constant 6 : index
    %c0_32 = arith.constant 0 : index
    %41 = vector.load %arg10[%c6_31, %c0_32] : memref<16x512xf32, #tpu.memory_space<vmem>>, vector<1x512xf32>
    tpu.vector_store %arg10[%c6_31, %c0_32], %40 {strides = array<i32>} : memref<16x512xf32, #tpu.memory_space<vmem>>, vector<1x512xf32>,
    %c7 = arith.constant 7 : index
    %42 = memref.load %arg1[%c7] : memref<16xi32, #tpu.memory_space<smem>>
    %c0_i32_33 = arith.constant 0 : i32
    %c63_i32_34 = arith.constant 63 : i32
    %43 = arith.maxsi %c0_i32_33, %42 : i32
    %44 = arith.minsi %c63_i32_34, %43 : i32
    %45 = arith.index_cast %44 : i32 to index
    %c0_35 = arith.constant 0 : index
    %46 = vector.load %arg2[%45, %c0_35] : memref<64x512xf32, #tpu.memory_space<vmem>>, vector<1x512xf32>
    %c7_36 = arith.constant 7 : index
    %c0_37 = arith.constant 0 : index
    %47 = vector.load %arg10[%c7_36, %c0_37] : memref<16x512xf32, #tpu.memory_space<vmem>>, vector<1x512xf32>
    tpu.vector_store %arg10[%c7_36, %c0_37], %46 {strides = array<i32>} : memref<16x512xf32, #tpu.memory_space<vmem>>, vector<1x512xf32>,
    %c8 = arith.constant 8 : index
    %48 = memref.load %arg1[%c8] : memref<16xi32, #tpu.memory_space<smem>>
    %c0_i32_38 = arith.constant 0 : i32
    %c63_i32_39 = arith.constant 63 : i32
    %49 = arith.maxsi %c0_i32_38, %48 : i32
    %50 = arith.minsi %c63_i32_39, %49 : i32
    %51 = arith.index_cast %50 : i32 to index
    %c0_40 = arith.constant 0 : index
    %52 = vector.load %arg2[%51, %c0_40] : memref<64x512xf32, #tpu.memory_space<vmem>>, vector<1x512xf32>
    %c8_41 = arith.constant 8 : index
    %c0_42 = arith.constant 0 : index
    %53 = vector.load %arg10[%c8_41, %c0_42] : memref<16x512xf32, #tpu.memory_space<vmem>>, vector<1x512xf32>
    tpu.vector_store %arg10[%c8_41, %c0_42], %52 {strides = array<i32>} : memref<16x512xf32, #tpu.memory_space<vmem>>, vector<1x512xf32>,
    %c9 = arith.constant 9 : index
    %54 = memref.load %arg1[%c9] : memref<16xi32, #tpu.memory_space<smem>>
    %c0_i32_43 = arith.constant 0 : i32
    %c63_i32_44 = arith.constant 63 : i32
    %55 = arith.maxsi %c0_i32_43, %54 : i32
    %56 = arith.minsi %c63_i32_44, %55 : i32
    %57 = arith.index_cast %56 : i32 to index
    %c0_45 = arith.constant 0 : index
    %58 = vector.load %arg2[%57, %c0_45] : memref<64x512xf32, #tpu.memory_space<vmem>>, vector<1x512xf32>
    %c9_46 = arith.constant 9 : index
    %c0_47 = arith.constant 0 : index
    %59 = vector.load %arg10[%c9_46, %c0_47] : memref<16x512xf32, #tpu.memory_space<vmem>>, vector<1x512xf32>
    tpu.vector_store %arg10[%c9_46, %c0_47], %58 {strides = array<i32>} : memref<16x512xf32, #tpu.memory_space<vmem>>, vector<1x512xf32>,
    %c10 = arith.constant 10 : index
    %60 = memref.load %arg1[%c10] : memref<16xi32, #tpu.memory_space<smem>>
    %c0_i32_48 = arith.constant 0 : i32
    %c63_i32_49 = arith.constant 63 : i32
    %61 = arith.maxsi %c0_i32_48, %60 : i32
    %62 = arith.minsi %c63_i32_49, %61 : i32
    %63 = arith.index_cast %62 : i32 to index
    %c0_50 = arith.constant 0 : index
    %64 = vector.load %arg2[%63, %c0_50] : memref<64x512xf32, #tpu.memory_space<vmem>>, vector<1x512xf32>
    %c10_51 = arith.constant 10 : index
    %c0_52 = arith.constant 0 : index
    %65 = vector.load %arg10[%c10_51, %c0_52] : memref<16x512xf32, #tpu.memory_space<vmem>>, vector<1x512xf32>
    tpu.vector_store %arg10[%c10_51, %c0_52], %64 {strides = array<i32>} : memref<16x512xf32, #tpu.memory_space<vmem>>, vector<1x512xf32>,
    %c11 = arith.constant 11 : index
    %66 = memref.load %arg1[%c11] : memref<16xi32, #tpu.memory_space<smem>>
    %c0_i32_53 = arith.constant 0 : i32
    %c63_i32_54 = arith.constant 63 : i32
    %67 = arith.maxsi %c0_i32_53, %66 : i32
    %68 = arith.minsi %c63_i32_54, %67 : i32
    %69 = arith.index_cast %68 : i32 to index
    %c0_55 = arith.constant 0 : index
    %70 = vector.load %arg2[%69, %c0_55] : memref<64x512xf32, #tpu.memory_space<vmem>>, vector<1x512xf32>
    %c11_56 = arith.constant 11 : index
    %c0_57 = arith.constant 0 : index
    %71 = vector.load %arg10[%c11_56, %c0_57] : memref<16x512xf32, #tpu.memory_space<vmem>>, vector<1x512xf32>
    tpu.vector_store %arg10[%c11_56, %c0_57], %70 {strides = array<i32>} : memref<16x512xf32, #tpu.memory_space<vmem>>, vector<1x512xf32>,
    %c12 = arith.constant 12 : index
    %72 = memref.load %arg1[%c12] : memref<16xi32, #tpu.memory_space<smem>>
    %c0_i32_58 = arith.constant 0 : i32
    %c63_i32_59 = arith.constant 63 : i32
    %73 = arith.maxsi %c0_i32_58, %72 : i32
    %74 = arith.minsi %c63_i32_59, %73 : i32
    %75 = arith.index_cast %74 : i32 to index
    %c0_60 = arith.constant 0 : index
    %76 = vector.load %arg2[%75, %c0_60] : memref<64x512xf32, #tpu.memory_space<vmem>>, vector<1x512xf32>
    %c12_61 = arith.constant 12 : index
    %c0_62 = arith.constant 0 : index
    %77 = vector.load %arg10[%c12_61, %c0_62] : memref<16x512xf32, #tpu.memory_space<vmem>>, vector<1x512xf32>
    tpu.vector_store %arg10[%c12_61, %c0_62], %76 {strides = array<i32>} : memref<16x512xf32, #tpu.memory_space<vmem>>, vector<1x512xf32>,
    %c13 = arith.constant 13 : index
    %78 = memref.load %arg1[%c13] : memref<16xi32, #tpu.memory_space<smem>>
    %c0_i32_63 = arith.constant 0 : i32
    %c63_i32_64 = arith.constant 63 : i32
    %79 = arith.maxsi %c0_i32_63, %78 : i32
    %80 = arith.minsi %c63_i32_64, %79 : i32
    %81 = arith.index_cast %80 : i32 to index
    %c0_65 = arith.constant 0 : index
    %82 = vector.load %arg2[%81, %c0_65] : memref<64x512xf32, #tpu.memory_space<vmem>>, vector<1x512xf32>
    %c13_66 = arith.constant 13 : index
    %c0_67 = arith.constant 0 : index
    %83 = vector.load %arg10[%c13_66, %c0_67] : memref<16x512xf32, #tpu.memory_space<vmem>>, vector<1x512xf32>
    tpu.vector_store %arg10[%c13_66, %c0_67], %82 {strides = array<i32>} : memref<16x512xf32, #tpu.memory_space<vmem>>, vector<1x512xf32>,
    %c14 = arith.constant 14 : index
    %84 = memref.load %arg1[%c14] : memref<16xi32, #tpu.memory_space<smem>>
    %c0_i32_68 = arith.constant 0 : i32
    %c63_i32_69 = arith.constant 63 : i32
    %85 = arith.maxsi %c0_i32_68, %84 : i32
    %86 = arith.minsi %c63_i32_69, %85 : i32
    %87 = arith.index_cast %86 : i32 to index
    %c0_70 = arith.constant 0 : index
    %88 = vector.load %arg2[%87, %c0_70] : memref<64x512xf32, #tpu.memory_space<vmem>>, vector<1x512xf32>
    %c14_71 = arith.constant 14 : index
    %c0_72 = arith.constant 0 : index
    %89 = vector.load %arg10[%c14_71, %c0_72] : memref<16x512xf32, #tpu.memory_space<vmem>>, vector<1x512xf32>
    tpu.vector_store %arg10[%c14_71, %c0_72], %88 {strides = array<i32>} : memref<16x512xf32, #tpu.memory_space<vmem>>, vector<1x512xf32>,
    %c15 = arith.constant 15 : index
    %90 = memref.load %arg1[%c15] : memref<16xi32, #tpu.memory_space<smem>>
    %c0_i32_73 = arith.constant 0 : i32
    %c63_i32_74 = arith.constant 63 : i32
    %91 = arith.maxsi %c0_i32_73, %90 : i32
    %92 = arith.minsi %c63_i32_74, %91 : i32
    %93 = arith.index_cast %92 : i32 to index
    %c0_75 = arith.constant 0 : index
    %94 = vector.load %arg2[%93, %c0_75] : memref<64x512xf32, #tpu.memory_space<vmem>>, vector<1x512xf32>
    %c15_76 = arith.constant 15 : index
    %c0_77 = arith.constant 0 : index
    %95 = vector.load %arg10[%c15_76, %c0_77] : memref<16x512xf32, #tpu.memory_space<vmem>>, vector<1x512xf32>
    tpu.vector_store %arg10[%c15_76, %c0_77], %94 {strides = array<i32>} : memref<16x512xf32, #tpu.memory_space<vmem>>, vector<1x512xf32>,
    %c0_78 = arith.constant 0 : index
    %c0_79 = arith.constant 0 : index
    %96 = vector.load %arg6[%c0_78, %c0_79] : memref<1x512xf32, #tpu.memory_space<vmem>>, vector<1x512xf32>
    %97 = vector.shape_cast %96 : vector<1x512xf32> to vector<1x512xf32>
    %98 = vector.broadcast %97 : vector<1x512xf32> to vector<2x512xf32>
    %cst = arith.constant 0.000000e+00 : f32
    %99 = vector.broadcast %cst : f32 to vector<2x48xf32>
    %cst_80 = arith.constant 0.000000e+00 : f32
    %100 = vector.broadcast %cst_80 : f32 to vector<2x48xf32>
    %cst_81 = arith.constant 0.000000e+00 : f32
    %101 = vector.broadcast %cst_81 : f32 to vector<2x48xf32>
    %cst_82 = arith.constant 0.000000e+00 : f32
    %102 = vector.broadcast %cst_82 : f32 to vector<2x48xf32>
    %c0_83 = arith.constant 0 : index
    %c0_84 = arith.constant 0 : index
    %103 = vector.load %arg10[%c0_83, %c0_84] : memref<16x512xf32, #tpu.memory_space<vmem>>, vector<2x512xf32>
    %c0_85 = arith.constant 0 : index
    %c0_86 = arith.constant 0 : index
    %104 = vector.load %arg3[%c0_85, %c0_86] : memref<48x512xf32, #tpu.memory_space<vmem>>, vector<48x512xf32>
    %cst_87 = arith.constant dense<0.000000e+00> : vector<2x512xf32>
    %105 = tpu.matmul %99, %104, %cst_87 {dimension_numbers = #tpu.dot_dimension_numbers<[1], [0], [0], [1], [0, 0, 1, 1], [], []>} : vector<2x48xf32>, vector<48x512xf32>, vector<2x512xf32> -> vector<2x512xf32>
    %106 = arith.addf %103, %105 : vector<2x512xf32>
    %107 = vector.extract_strided_slice %106 {offsets = [0, 0], sizes = [2, 48], strides = [1, 1]} : vector<2x512xf32> to vector<2x48xf32>
    %108 = arith.negf %107 : vector<2x48xf32>
    %109 = math.exp %108 : vector<2x48xf32>
    %cst_88 = arith.constant 1.000000e+00 : f32
    %110 = vector.broadcast %cst_88 : f32 to vector<2x48xf32>
    %111 = arith.addf %110, %109 : vector<2x48xf32>
    %112 = arith.divf %110, %111 : vector<2x48xf32>
    %113 = vector.extract_strided_slice %106 {offsets = [0, 128], sizes = [2, 48], strides = [1, 1]} : vector<2x512xf32> to vector<2x48xf32>
    %114 = arith.negf %113 : vector<2x48xf32>
    %115 = math.exp %114 : vector<2x48xf32>
    %cst_89 = arith.constant 1.000000e+00 : f32
    %116 = vector.broadcast %cst_89 : f32 to vector<2x48xf32>
    %117 = arith.addf %116, %115 : vector<2x48xf32>
    %118 = arith.divf %116, %117 : vector<2x48xf32>
    %119 = vector.extract_strided_slice %106 {offsets = [0, 256], sizes = [2, 48], strides = [1, 1]} : vector<2x512xf32> to vector<2x48xf32>
    %120 = math.tanh %119 : vector<2x48xf32>
    %121 = vector.extract_strided_slice %106 {offsets = [0, 384], sizes = [2, 48], strides = [1, 1]} : vector<2x512xf32> to vector<2x48xf32>
    %122 = arith.negf %121 : vector<2x48xf32>
    %123 = math.exp %122 : vector<2x48xf32>
    %cst_90 = arith.constant 1.000000e+00 : f32
    %124 = vector.broadcast %cst_90 : f32 to vector<2x48xf32>
    %125 = arith.addf %124, %123 : vector<2x48xf32>
    %126 = arith.divf %124, %125 : vector<2x48xf32>
    %127 = arith.mulf %118, %101 : vector<2x48xf32>
    %128 = arith.mulf %112, %120 : vector<2x48xf32>
    %129 = arith.addf %127, %128 : vector<2x48xf32>
    %130 = math.tanh %129 : vector<2x48xf32>
    %131 = arith.mulf %126, %130 : vector<2x48xf32>
    %c2_91 = arith.constant 2 : index
    %c0_92 = arith.constant 0 : index
    %132 = vector.load %arg10[%c2_91, %c0_92] : memref<16x512xf32, #tpu.memory_space<vmem>>, vector<2x512xf32>
    %c0_93 = arith.constant 0 : index
    %c0_94 = arith.constant 0 : index
    %133 = vector.load %arg3[%c0_93, %c0_94] : memref<48x512xf32, #tpu.memory_space<vmem>>, vector<48x512xf32>
    %cst_95 = arith.constant dense<0.000000e+00> : vector<2x512xf32>
    %134 = tpu.matmul %131, %133, %cst_95 {dimension_numbers = #tpu.dot_dimension_numbers<[1], [0], [0], [1], [0, 0, 1, 1], [], []>} : vector<2x48xf32>, vector<48x512xf32>, vector<2x512xf32> -> vector<2x512xf32>
    %135 = arith.addf %132, %134 : vector<2x512xf32>
    %136 = vector.extract_strided_slice %135 {offsets = [0, 0], sizes = [2, 48], strides = [1, 1]} : vector<2x512xf32> to vector<2x48xf32>
    %137 = arith.negf %136 : vector<2x48xf32>
    %138 = math.exp %137 : vector<2x48xf32>
    %cst_96 = arith.constant 1.000000e+00 : f32
    %139 = vector.broadcast %cst_96 : f32 to vector<2x48xf32>
    %140 = arith.addf %139, %138 : vector<2x48xf32>
    %141 = arith.divf %139, %140 : vector<2x48xf32>
    %142 = vector.extract_strided_slice %135 {offsets = [0, 128], sizes = [2, 48], strides = [1, 1]} : vector<2x512xf32> to vector<2x48xf32>
    %143 = arith.negf %142 : vector<2x48xf32>
    %144 = math.exp %143 : vector<2x48xf32>
    %cst_97 = arith.constant 1.000000e+00 : f32
    %145 = vector.broadcast %cst_97 : f32 to vector<2x48xf32>
    %146 = arith.addf %145, %144 : vector<2x48xf32>
    %147 = arith.divf %145, %146 : vector<2x48xf32>
    %148 = vector.extract_strided_slice %135 {offsets = [0, 256], sizes = [2, 48], strides = [1, 1]} : vector<2x512xf32> to vector<2x48xf32>
    %149 = math.tanh %148 : vector<2x48xf32>
    %150 = vector.extract_strided_slice %135 {offsets = [0, 384], sizes = [2, 48], strides = [1, 1]} : vector<2x512xf32> to vector<2x48xf32>
    %151 = arith.negf %150 : vector<2x48xf32>
    %152 = math.exp %151 : vector<2x48xf32>
    %cst_98 = arith.constant 1.000000e+00 : f32
    %153 = vector.broadcast %cst_98 : f32 to vector<2x48xf32>
    %154 = arith.addf %153, %152 : vector<2x48xf32>
    %155 = arith.divf %153, %154 : vector<2x48xf32>
    %156 = arith.mulf %147, %129 : vector<2x48xf32>
    %157 = arith.mulf %141, %149 : vector<2x48xf32>
    %158 = arith.addf %156, %157 : vector<2x48xf32>
    %159 = math.tanh %158 : vector<2x48xf32>
    %160 = arith.mulf %155, %159 : vector<2x48xf32>
    %c0_99 = arith.constant 0 : index
    %c0_100 = arith.constant 0 : index
    %161 = vector.load %arg4[%c0_99, %c0_100] : memref<48x512xf32, #tpu.memory_space<vmem>>, vector<48x512xf32>
    %cst_101 = arith.constant dense<0.000000e+00> : vector<2x512xf32>
    %162 = tpu.matmul %131, %161, %cst_101 {dimension_numbers = #tpu.dot_dimension_numbers<[1], [0], [0], [1], [0, 0, 1, 1], [], []>} : vector<2x48xf32>, vector<48x512xf32>, vector<2x512xf32> -> vector<2x512xf32>
    %c0_102 = arith.constant 0 : index
    %c0_103 = arith.constant 0 : index
    %163 = vector.load %arg5[%c0_102, %c0_103] : memref<48x512xf32, #tpu.memory_space<vmem>>, vector<48x512xf32>
    %cst_104 = arith.constant dense<0.000000e+00> : vector<2x512xf32>
    %164 = tpu.matmul %100, %163, %cst_104 {dimension_numbers = #tpu.dot_dimension_numbers<[1], [0], [0], [1], [0, 0, 1, 1], [], []>} : vector<2x48xf32>, vector<48x512xf32>, vector<2x512xf32> -> vector<2x512xf32>
    %165 = arith.addf %162, %164 : vector<2x512xf32>
    %166 = arith.addf %165, %98 : vector<2x512xf32>
    %167 = vector.extract_strided_slice %166 {offsets = [0, 0], sizes = [2, 48], strides = [1, 1]} : vector<2x512xf32> to vector<2x48xf32>
    %168 = arith.negf %167 : vector<2x48xf32>
    %169 = math.exp %168 : vector<2x48xf32>
    %cst_105 = arith.constant 1.000000e+00 : f32
    %170 = vector.broadcast %cst_105 : f32 to vector<2x48xf32>
    %171 = arith.addf %170, %169 : vector<2x48xf32>
    %172 = arith.divf %170, %171 : vector<2x48xf32>
    %173 = vector.extract_strided_slice %166 {offsets = [0, 128], sizes = [2, 48], strides = [1, 1]} : vector<2x512xf32> to vector<2x48xf32>
    %174 = arith.negf %173 : vector<2x48xf32>
    %175 = math.exp %174 : vector<2x48xf32>
    %cst_106 = arith.constant 1.000000e+00 : f32
    %176 = vector.broadcast %cst_106 : f32 to vector<2x48xf32>
    %177 = arith.addf %176, %175 : vector<2x48xf32>
    %178 = arith.divf %176, %177 : vector<2x48xf32>
    %179 = vector.extract_strided_slice %166 {offsets = [0, 256], sizes = [2, 48], strides = [1, 1]} : vector<2x512xf32> to vector<2x48xf32>
    %180 = math.tanh %179 : vector<2x48xf32>
    %181 = vector.extract_strided_slice %166 {offsets = [0, 384], sizes = [2, 48], strides = [1, 1]} : vector<2x512xf32> to vector<2x48xf32>
    %182 = arith.negf %181 : vector<2x48xf32>
    %183 = math.exp %182 : vector<2x48xf32>
    %cst_107 = arith.constant 1.000000e+00 : f32
    %184 = vector.broadcast %cst_107 : f32 to vector<2x48xf32>
    %185 = arith.addf %184, %183 : vector<2x48xf32>
    %186 = arith.divf %184, %185 : vector<2x48xf32>
    %187 = arith.mulf %178, %102 : vector<2x48xf32>
    %188 = arith.mulf %172, %180 : vector<2x48xf32>
    %189 = arith.addf %187, %188 : vector<2x48xf32>
    %190 = math.tanh %189 : vector<2x48xf32>
    %191 = arith.mulf %186, %190 : vector<2x48xf32>
    %c0_108 = arith.constant 0 : index
    %c0_109 = arith.constant 0 : index
    %192 = vector.load %arg11[%c0_108, %c0_109] : memref<16x48xf32, #tpu.memory_space<vmem>>, vector<2x48xf32>
    tpu.vector_store %arg11[%c0_108, %c0_109], %191 {strides = array<i32>} : memref<16x48xf32, #tpu.memory_space<vmem>>, vector<2x48xf32>,
    %c4_110 = arith.constant 4 : index
    %c0_111 = arith.constant 0 : index
    %193 = vector.load %arg10[%c4_110, %c0_111] : memref<16x512xf32, #tpu.memory_space<vmem>>, vector<2x512xf32>
    %c0_112 = arith.constant 0 : index
    %c0_113 = arith.constant 0 : index
    %194 = vector.load %arg3[%c0_112, %c0_113] : memref<48x512xf32, #tpu.memory_space<vmem>>, vector<48x512xf32>
    %cst_114 = arith.constant dense<0.000000e+00> : vector<2x512xf32>
    %195 = tpu.matmul %160, %194, %cst_114 {dimension_numbers = #tpu.dot_dimension_numbers<[1], [0], [0], [1], [0, 0, 1, 1], [], []>} : vector<2x48xf32>, vector<48x512xf32>, vector<2x512xf32> -> vector<2x512xf32>
    %196 = arith.addf %193, %195 : vector<2x512xf32>
    %197 = vector.extract_strided_slice %196 {offsets = [0, 0], sizes = [2, 48], strides = [1, 1]} : vector<2x512xf32> to vector<2x48xf32>
    %198 = arith.negf %197 : vector<2x48xf32>
    %199 = math.exp %198 : vector<2x48xf32>
    %cst_115 = arith.constant 1.000000e+00 : f32
    %200 = vector.broadcast %cst_115 : f32 to vector<2x48xf32>
    %201 = arith.addf %200, %199 : vector<2x48xf32>
    %202 = arith.divf %200, %201 : vector<2x48xf32>
    %203 = vector.extract_strided_slice %196 {offsets = [0, 128], sizes = [2, 48], strides = [1, 1]} : vector<2x512xf32> to vector<2x48xf32>
    %204 = arith.negf %203 : vector<2x48xf32>
    %205 = math.exp %204 : vector<2x48xf32>
    %cst_116 = arith.constant 1.000000e+00 : f32
    %206 = vector.broadcast %cst_116 : f32 to vector<2x48xf32>
    %207 = arith.addf %206, %205 : vector<2x48xf32>
    %208 = arith.divf %206, %207 : vector<2x48xf32>
    %209 = vector.extract_strided_slice %196 {offsets = [0, 256], sizes = [2, 48], strides = [1, 1]} : vector<2x512xf32> to vector<2x48xf32>
    %210 = math.tanh %209 : vector<2x48xf32>
    %211 = vector.extract_strided_slice %196 {offsets = [0, 384], sizes = [2, 48], strides = [1, 1]} : vector<2x512xf32> to vector<2x48xf32>
    %212 = arith.negf %211 : vector<2x48xf32>
    %213 = math.exp %212 : vector<2x48xf32>
    %cst_117 = arith.constant 1.000000e+00 : f32
    %214 = vector.broadcast %cst_117 : f32 to vector<2x48xf32>
    %215 = arith.addf %214, %213 : vector<2x48xf32>
    %216 = arith.divf %214, %215 : vector<2x48xf32>
    %217 = arith.mulf %208, %158 : vector<2x48xf32>
    %218 = arith.mulf %202, %210 : vector<2x48xf32>
    %219 = arith.addf %217, %218 : vector<2x48xf32>
    %220 = math.tanh %219 : vector<2x48xf32>
    %221 = arith.mulf %216, %220 : vector<2x48xf32>
    %c0_118 = arith.constant 0 : index
    %c0_119 = arith.constant 0 : index
    %222 = vector.load %arg4[%c0_118, %c0_119] : memref<48x512xf32, #tpu.memory_space<vmem>>, vector<48x512xf32>
    %cst_120 = arith.constant dense<0.000000e+00> : vector<2x512xf32>
    %223 = tpu.matmul %160, %222, %cst_120 {dimension_numbers = #tpu.dot_dimension_numbers<[1], [0], [0], [1], [0, 0, 1, 1], [], []>} : vector<2x48xf32>, vector<48x512xf32>, vector<2x512xf32> -> vector<2x512xf32>
    %c0_121 = arith.constant 0 : index
    %c0_122 = arith.constant 0 : index
    %224 = vector.load %arg5[%c0_121, %c0_122] : memref<48x512xf32, #tpu.memory_space<vmem>>, vector<48x512xf32>
    %cst_123 = arith.constant dense<0.000000e+00> : vector<2x512xf32>
    %225 = tpu.matmul %191, %224, %cst_123 {dimension_numbers = #tpu.dot_dimension_numbers<[1], [0], [0], [1], [0, 0, 1, 1], [], []>} : vector<2x48xf32>, vector<48x512xf32>, vector<2x512xf32> -> vector<2x512xf32>
    %226 = arith.addf %223, %225 : vector<2x512xf32>
    %227 = arith.addf %226, %98 : vector<2x512xf32>
    %228 = vector.extract_strided_slice %227 {offsets = [0, 0], sizes = [2, 48], strides = [1, 1]} : vector<2x512xf32> to vector<2x48xf32>
    %229 = arith.negf %228 : vector<2x48xf32>
    %230 = math.exp %229 : vector<2x48xf32>
    %cst_124 = arith.constant 1.000000e+00 : f32
    %231 = vector.broadcast %cst_124 : f32 to vector<2x48xf32>
    %232 = arith.addf %231, %230 : vector<2x48xf32>
    %233 = arith.divf %231, %232 : vector<2x48xf32>
    %234 = vector.extract_strided_slice %227 {offsets = [0, 128], sizes = [2, 48], strides = [1, 1]} : vector<2x512xf32> to vector<2x48xf32>
    %235 = arith.negf %234 : vector<2x48xf32>
    %236 = math.exp %235 : vector<2x48xf32>
    %cst_125 = arith.constant 1.000000e+00 : f32
    %237 = vector.broadcast %cst_125 : f32 to vector<2x48xf32>
    %238 = arith.addf %237, %236 : vector<2x48xf32>
    %239 = arith.divf %237, %238 : vector<2x48xf32>
    %240 = vector.extract_strided_slice %227 {offsets = [0, 256], sizes = [2, 48], strides = [1, 1]} : vector<2x512xf32> to vector<2x48xf32>
    %241 = math.tanh %240 : vector<2x48xf32>
    %242 = vector.extract_strided_slice %227 {offsets = [0, 384], sizes = [2, 48], strides = [1, 1]} : vector<2x512xf32> to vector<2x48xf32>
    %243 = arith.negf %242 : vector<2x48xf32>
    %244 = math.exp %243 : vector<2x48xf32>
    %cst_126 = arith.constant 1.000000e+00 : f32
    %245 = vector.broadcast %cst_126 : f32 to vector<2x48xf32>
    %246 = arith.addf %245, %244 : vector<2x48xf32>
    %247 = arith.divf %245, %246 : vector<2x48xf32>
    %248 = arith.mulf %239, %189 : vector<2x48xf32>
    %249 = arith.mulf %233, %241 : vector<2x48xf32>
    %250 = arith.addf %248, %249 : vector<2x48xf32>
    %251 = math.tanh %250 : vector<2x48xf32>
    %252 = arith.mulf %247, %251 : vector<2x48xf32>
    %c2_127 = arith.constant 2 : index
    %c0_128 = arith.constant 0 : index
    %253 = vector.load %arg11[%c2_127, %c0_128] : memref<16x48xf32, #tpu.memory_space<vmem>>, vector<2x48xf32>
    tpu.vector_store %arg11[%c2_127, %c0_128], %252 {strides = array<i32>} : memref<16x48xf32, #tpu.memory_space<vmem>>, vector<2x48xf32>,
    %c6_129 = arith.constant 6 : index
    %c0_130 = arith.constant 0 : index
    %254 = vector.load %arg10[%c6_129, %c0_130] : memref<16x512xf32, #tpu.memory_space<vmem>>, vector<2x512xf32>
    %c0_131 = arith.constant 0 : index
    %c0_132 = arith.constant 0 : index
    %255 = vector.load %arg3[%c0_131, %c0_132] : memref<48x512xf32, #tpu.memory_space<vmem>>, vector<48x512xf32>
    %cst_133 = arith.constant dense<0.000000e+00> : vector<2x512xf32>
    %256 = tpu.matmul %221, %255, %cst_133 {dimension_numbers = #tpu.dot_dimension_numbers<[1], [0], [0], [1], [0, 0, 1, 1], [], []>} : vector<2x48xf32>, vector<48x512xf32>, vector<2x512xf32> -> vector<2x512xf32>
    %257 = arith.addf %254, %256 : vector<2x512xf32>
    %258 = vector.extract_strided_slice %257 {offsets = [0, 0], sizes = [2, 48], strides = [1, 1]} : vector<2x512xf32> to vector<2x48xf32>
    %259 = arith.negf %258 : vector<2x48xf32>
    %260 = math.exp %259 : vector<2x48xf32>
    %cst_134 = arith.constant 1.000000e+00 : f32
    %261 = vector.broadcast %cst_134 : f32 to vector<2x48xf32>
    %262 = arith.addf %261, %260 : vector<2x48xf32>
    %263 = arith.divf %261, %262 : vector<2x48xf32>
    %264 = vector.extract_strided_slice %257 {offsets = [0, 128], sizes = [2, 48], strides = [1, 1]} : vector<2x512xf32> to vector<2x48xf32>
    %265 = arith.negf %264 : vector<2x48xf32>
    %266 = math.exp %265 : vector<2x48xf32>
    %cst_135 = arith.constant 1.000000e+00 : f32
    %267 = vector.broadcast %cst_135 : f32 to vector<2x48xf32>
    %268 = arith.addf %267, %266 : vector<2x48xf32>
    %269 = arith.divf %267, %268 : vector<2x48xf32>
    %270 = vector.extract_strided_slice %257 {offsets = [0, 256], sizes = [2, 48], strides = [1, 1]} : vector<2x512xf32> to vector<2x48xf32>
    %271 = math.tanh %270 : vector<2x48xf32>
    %272 = vector.extract_strided_slice %257 {offsets = [0, 384], sizes = [2, 48], strides = [1, 1]} : vector<2x512xf32> to vector<2x48xf32>
    %273 = arith.negf %272 : vector<2x48xf32>
    %274 = math.exp %273 : vector<2x48xf32>
    %cst_136 = arith.constant 1.000000e+00 : f32
    %275 = vector.broadcast %cst_136 : f32 to vector<2x48xf32>
    %276 = arith.addf %275, %274 : vector<2x48xf32>
    %277 = arith.divf %275, %276 : vector<2x48xf32>
    %278 = arith.mulf %269, %219 : vector<2x48xf32>
    %279 = arith.mulf %263, %271 : vector<2x48xf32>
    %280 = arith.addf %278, %279 : vector<2x48xf32>
    %281 = math.tanh %280 : vector<2x48xf32>
    %282 = arith.mulf %277, %281 : vector<2x48xf32>
    %c0_137 = arith.constant 0 : index
    %c0_138 = arith.constant 0 : index
    %283 = vector.load %arg4[%c0_137, %c0_138] : memref<48x512xf32, #tpu.memory_space<vmem>>, vector<48x512xf32>
    %cst_139 = arith.constant dense<0.000000e+00> : vector<2x512xf32>
    %284 = tpu.matmul %221, %283, %cst_139 {dimension_numbers = #tpu.dot_dimension_numbers<[1], [0], [0], [1], [0, 0, 1, 1], [], []>} : vector<2x48xf32>, vector<48x512xf32>, vector<2x512xf32> -> vector<2x512xf32>
    %c0_140 = arith.constant 0 : index
    %c0_141 = arith.constant 0 : index
    %285 = vector.load %arg5[%c0_140, %c0_141] : memref<48x512xf32, #tpu.memory_space<vmem>>, vector<48x512xf32>
    %cst_142 = arith.constant dense<0.000000e+00> : vector<2x512xf32>
    %286 = tpu.matmul %252, %285, %cst_142 {dimension_numbers = #tpu.dot_dimension_numbers<[1], [0], [0], [1], [0, 0, 1, 1], [], []>} : vector<2x48xf32>, vector<48x512xf32>, vector<2x512xf32> -> vector<2x512xf32>
    %287 = arith.addf %284, %286 : vector<2x512xf32>
    %288 = arith.addf %287, %98 : vector<2x512xf32>
    %289 = vector.extract_strided_slice %288 {offsets = [0, 0], sizes = [2, 48], strides = [1, 1]} : vector<2x512xf32> to vector<2x48xf32>
    %290 = arith.negf %289 : vector<2x48xf32>
    %291 = math.exp %290 : vector<2x48xf32>
    %cst_143 = arith.constant 1.000000e+00 : f32
    %292 = vector.broadcast %cst_143 : f32 to vector<2x48xf32>
    %293 = arith.addf %292, %291 : vector<2x48xf32>
    %294 = arith.divf %292, %293 : vector<2x48xf32>
    %295 = vector.extract_strided_slice %288 {offsets = [0, 128], sizes = [2, 48], strides = [1, 1]} : vector<2x512xf32> to vector<2x48xf32>
    %296 = arith.negf %295 : vector<2x48xf32>
    %297 = math.exp %296 : vector<2x48xf32>
    %cst_144 = arith.constant 1.000000e+00 : f32
    %298 = vector.broadcast %cst_144 : f32 to vector<2x48xf32>
    %299 = arith.addf %298, %297 : vector<2x48xf32>
    %300 = arith.divf %298, %299 : vector<2x48xf32>
    %301 = vector.extract_strided_slice %288 {offsets = [0, 256], sizes = [2, 48], strides = [1, 1]} : vector<2x512xf32> to vector<2x48xf32>
    %302 = math.tanh %301 : vector<2x48xf32>
    %303 = vector.extract_strided_slice %288 {offsets = [0, 384], sizes = [2, 48], strides = [1, 1]} : vector<2x512xf32> to vector<2x48xf32>
    %304 = arith.negf %303 : vector<2x48xf32>
    %305 = math.exp %304 : vector<2x48xf32>
    %cst_145 = arith.constant 1.000000e+00 : f32
    %306 = vector.broadcast %cst_145 : f32 to vector<2x48xf32>
    %307 = arith.addf %306, %305 : vector<2x48xf32>
    %308 = arith.divf %306, %307 : vector<2x48xf32>
    %309 = arith.mulf %300, %250 : vector<2x48xf32>
    %310 = arith.mulf %294, %302 : vector<2x48xf32>
    %311 = arith.addf %309, %310 : vector<2x48xf32>
    %312 = math.tanh %311 : vector<2x48xf32>
    %313 = arith.mulf %308, %312 : vector<2x48xf32>
    %c4_146 = arith.constant 4 : index
    %c0_147 = arith.constant 0 : index
    %314 = vector.load %arg11[%c4_146, %c0_147] : memref<16x48xf32, #tpu.memory_space<vmem>>, vector<2x48xf32>
    tpu.vector_store %arg11[%c4_146, %c0_147], %313 {strides = array<i32>} : memref<16x48xf32, #tpu.memory_space<vmem>>, vector<2x48xf32>,
    %c8_148 = arith.constant 8 : index
    %c0_149 = arith.constant 0 : index
    %315 = vector.load %arg10[%c8_148, %c0_149] : memref<16x512xf32, #tpu.memory_space<vmem>>, vector<2x512xf32>
    %c0_150 = arith.constant 0 : index
    %c0_151 = arith.constant 0 : index
    %316 = vector.load %arg3[%c0_150, %c0_151] : memref<48x512xf32, #tpu.memory_space<vmem>>, vector<48x512xf32>
    %cst_152 = arith.constant dense<0.000000e+00> : vector<2x512xf32>
    %317 = tpu.matmul %282, %316, %cst_152 {dimension_numbers = #tpu.dot_dimension_numbers<[1], [0], [0], [1], [0, 0, 1, 1], [], []>} : vector<2x48xf32>, vector<48x512xf32>, vector<2x512xf32> -> vector<2x512xf32>
    %318 = arith.addf %315, %317 : vector<2x512xf32>
    %319 = vector.extract_strided_slice %318 {offsets = [0, 0], sizes = [2, 48], strides = [1, 1]} : vector<2x512xf32> to vector<2x48xf32>
    %320 = arith.negf %319 : vector<2x48xf32>
    %321 = math.exp %320 : vector<2x48xf32>
    %cst_153 = arith.constant 1.000000e+00 : f32
    %322 = vector.broadcast %cst_153 : f32 to vector<2x48xf32>
    %323 = arith.addf %322, %321 : vector<2x48xf32>
    %324 = arith.divf %322, %323 : vector<2x48xf32>
    %325 = vector.extract_strided_slice %318 {offsets = [0, 128], sizes = [2, 48], strides = [1, 1]} : vector<2x512xf32> to vector<2x48xf32>
    %326 = arith.negf %325 : vector<2x48xf32>
    %327 = math.exp %326 : vector<2x48xf32>
    %cst_154 = arith.constant 1.000000e+00 : f32
    %328 = vector.broadcast %cst_154 : f32 to vector<2x48xf32>
    %329 = arith.addf %328, %327 : vector<2x48xf32>
    %330 = arith.divf %328, %329 : vector<2x48xf32>
    %331 = vector.extract_strided_slice %318 {offsets = [0, 256], sizes = [2, 48], strides = [1, 1]} : vector<2x512xf32> to vector<2x48xf32>
    %332 = math.tanh %331 : vector<2x48xf32>
    %333 = vector.extract_strided_slice %318 {offsets = [0, 384], sizes = [2, 48], strides = [1, 1]} : vector<2x512xf32> to vector<2x48xf32>
    %334 = arith.negf %333 : vector<2x48xf32>
    %335 = math.exp %334 : vector<2x48xf32>
    %cst_155 = arith.constant 1.000000e+00 : f32
    %336 = vector.broadcast %cst_155 : f32 to vector<2x48xf32>
    %337 = arith.addf %336, %335 : vector<2x48xf32>
    %338 = arith.divf %336, %337 : vector<2x48xf32>
    %339 = arith.mulf %330, %280 : vector<2x48xf32>
    %340 = arith.mulf %324, %332 : vector<2x48xf32>
    %341 = arith.addf %339, %340 : vector<2x48xf32>
    %342 = math.tanh %341 : vector<2x48xf32>
    %343 = arith.mulf %338, %342 : vector<2x48xf32>
    %c0_156 = arith.constant 0 : index
    %c0_157 = arith.constant 0 : index
    %344 = vector.load %arg4[%c0_156, %c0_157] : memref<48x512xf32, #tpu.memory_space<vmem>>, vector<48x512xf32>
    %cst_158 = arith.constant dense<0.000000e+00> : vector<2x512xf32>
    %345 = tpu.matmul %282, %344, %cst_158 {dimension_numbers = #tpu.dot_dimension_numbers<[1], [0], [0], [1], [0, 0, 1, 1], [], []>} : vector<2x48xf32>, vector<48x512xf32>, vector<2x512xf32> -> vector<2x512xf32>
    %c0_159 = arith.constant 0 : index
    %c0_160 = arith.constant 0 : index
    %346 = vector.load %arg5[%c0_159, %c0_160] : memref<48x512xf32, #tpu.memory_space<vmem>>, vector<48x512xf32>
    %cst_161 = arith.constant dense<0.000000e+00> : vector<2x512xf32>
    %347 = tpu.matmul %313, %346, %cst_161 {dimension_numbers = #tpu.dot_dimension_numbers<[1], [0], [0], [1], [0, 0, 1, 1], [], []>} : vector<2x48xf32>, vector<48x512xf32>, vector<2x512xf32> -> vector<2x512xf32>
    %348 = arith.addf %345, %347 : vector<2x512xf32>
    %349 = arith.addf %348, %98 : vector<2x512xf32>
    %350 = vector.extract_strided_slice %349 {offsets = [0, 0], sizes = [2, 48], strides = [1, 1]} : vector<2x512xf32> to vector<2x48xf32>
    %351 = arith.negf %350 : vector<2x48xf32>
    %352 = math.exp %351 : vector<2x48xf32>
    %cst_162 = arith.constant 1.000000e+00 : f32
    %353 = vector.broadcast %cst_162 : f32 to vector<2x48xf32>
    %354 = arith.addf %353, %352 : vector<2x48xf32>
    %355 = arith.divf %353, %354 : vector<2x48xf32>
    %356 = vector.extract_strided_slice %349 {offsets = [0, 128], sizes = [2, 48], strides = [1, 1]} : vector<2x512xf32> to vector<2x48xf32>
    %357 = arith.negf %356 : vector<2x48xf32>
    %358 = math.exp %357 : vector<2x48xf32>
    %cst_163 = arith.constant 1.000000e+00 : f32
    %359 = vector.broadcast %cst_163 : f32 to vector<2x48xf32>
    %360 = arith.addf %359, %358 : vector<2x48xf32>
    %361 = arith.divf %359, %360 : vector<2x48xf32>
    %362 = vector.extract_strided_slice %349 {offsets = [0, 256], sizes = [2, 48], strides = [1, 1]} : vector<2x512xf32> to vector<2x48xf32>
    %363 = math.tanh %362 : vector<2x48xf32>
    %364 = vector.extract_strided_slice %349 {offsets = [0, 384], sizes = [2, 48], strides = [1, 1]} : vector<2x512xf32> to vector<2x48xf32>
    %365 = arith.negf %364 : vector<2x48xf32>
    %366 = math.exp %365 : vector<2x48xf32>
    %cst_164 = arith.constant 1.000000e+00 : f32
    %367 = vector.broadcast %cst_164 : f32 to vector<2x48xf32>
    %368 = arith.addf %367, %366 : vector<2x48xf32>
    %369 = arith.divf %367, %368 : vector<2x48xf32>
    %370 = arith.mulf %361, %311 : vector<2x48xf32>
    %371 = arith.mulf %355, %363 : vector<2x48xf32>
    %372 = arith.addf %370, %371 : vector<2x48xf32>
    %373 = math.tanh %372 : vector<2x48xf32>
    %374 = arith.mulf %369, %373 : vector<2x48xf32>
    %c6_165 = arith.constant 6 : index
    %c0_166 = arith.constant 0 : index
    %375 = vector.load %arg11[%c6_165, %c0_166] : memref<16x48xf32, #tpu.memory_space<vmem>>, vector<2x48xf32>
    tpu.vector_store %arg11[%c6_165, %c0_166], %374 {strides = array<i32>} : memref<16x48xf32, #tpu.memory_space<vmem>>, vector<2x48xf32>,
    %c10_167 = arith.constant 10 : index
    %c0_168 = arith.constant 0 : index
    %376 = vector.load %arg10[%c10_167, %c0_168] : memref<16x512xf32, #tpu.memory_space<vmem>>, vector<2x512xf32>
    %c0_169 = arith.constant 0 : index
    %c0_170 = arith.constant 0 : index
    %377 = vector.load %arg3[%c0_169, %c0_170] : memref<48x512xf32, #tpu.memory_space<vmem>>, vector<48x512xf32>
    %cst_171 = arith.constant dense<0.000000e+00> : vector<2x512xf32>
    %378 = tpu.matmul %343, %377, %cst_171 {dimension_numbers = #tpu.dot_dimension_numbers<[1], [0], [0], [1], [0, 0, 1, 1], [], []>} : vector<2x48xf32>, vector<48x512xf32>, vector<2x512xf32> -> vector<2x512xf32>
    %379 = arith.addf %376, %378 : vector<2x512xf32>
    %380 = vector.extract_strided_slice %379 {offsets = [0, 0], sizes = [2, 48], strides = [1, 1]} : vector<2x512xf32> to vector<2x48xf32>
    %381 = arith.negf %380 : vector<2x48xf32>
    %382 = math.exp %381 : vector<2x48xf32>
    %cst_172 = arith.constant 1.000000e+00 : f32
    %383 = vector.broadcast %cst_172 : f32 to vector<2x48xf32>
    %384 = arith.addf %383, %382 : vector<2x48xf32>
    %385 = arith.divf %383, %384 : vector<2x48xf32>
    %386 = vector.extract_strided_slice %379 {offsets = [0, 128], sizes = [2, 48], strides = [1, 1]} : vector<2x512xf32> to vector<2x48xf32>
    %387 = arith.negf %386 : vector<2x48xf32>
    %388 = math.exp %387 : vector<2x48xf32>
    %cst_173 = arith.constant 1.000000e+00 : f32
    %389 = vector.broadcast %cst_173 : f32 to vector<2x48xf32>
    %390 = arith.addf %389, %388 : vector<2x48xf32>
    %391 = arith.divf %389, %390 : vector<2x48xf32>
    %392 = vector.extract_strided_slice %379 {offsets = [0, 256], sizes = [2, 48], strides = [1, 1]} : vector<2x512xf32> to vector<2x48xf32>
    %393 = math.tanh %392 : vector<2x48xf32>
    %394 = vector.extract_strided_slice %379 {offsets = [0, 384], sizes = [2, 48], strides = [1, 1]} : vector<2x512xf32> to vector<2x48xf32>
    %395 = arith.negf %394 : vector<2x48xf32>
    %396 = math.exp %395 : vector<2x48xf32>
    %cst_174 = arith.constant 1.000000e+00 : f32
    %397 = vector.broadcast %cst_174 : f32 to vector<2x48xf32>
    %398 = arith.addf %397, %396 : vector<2x48xf32>
    %399 = arith.divf %397, %398 : vector<2x48xf32>
    %400 = arith.mulf %391, %341 : vector<2x48xf32>
    %401 = arith.mulf %385, %393 : vector<2x48xf32>
    %402 = arith.addf %400, %401 : vector<2x48xf32>
    %403 = math.tanh %402 : vector<2x48xf32>
    %404 = arith.mulf %399, %403 : vector<2x48xf32>
    %c0_175 = arith.constant 0 : index
    %c0_176 = arith.constant 0 : index
    %405 = vector.load %arg4[%c0_175, %c0_176] : memref<48x512xf32, #tpu.memory_space<vmem>>, vector<48x512xf32>
    %cst_177 = arith.constant dense<0.000000e+00> : vector<2x512xf32>
    %406 = tpu.matmul %343, %405, %cst_177 {dimension_numbers = #tpu.dot_dimension_numbers<[1], [0], [0], [1], [0, 0, 1, 1], [], []>} : vector<2x48xf32>, vector<48x512xf32>, vector<2x512xf32> -> vector<2x512xf32>
    %c0_178 = arith.constant 0 : index
    %c0_179 = arith.constant 0 : index
    %407 = vector.load %arg5[%c0_178, %c0_179] : memref<48x512xf32, #tpu.memory_space<vmem>>, vector<48x512xf32>
    %cst_180 = arith.constant dense<0.000000e+00> : vector<2x512xf32>
    %408 = tpu.matmul %374, %407, %cst_180 {dimension_numbers = #tpu.dot_dimension_numbers<[1], [0], [0], [1], [0, 0, 1, 1], [], []>} : vector<2x48xf32>, vector<48x512xf32>, vector<2x512xf32> -> vector<2x512xf32>
    %409 = arith.addf %406, %408 : vector<2x512xf32>
    %410 = arith.addf %409, %98 : vector<2x512xf32>
    %411 = vector.extract_strided_slice %410 {offsets = [0, 0], sizes = [2, 48], strides = [1, 1]} : vector<2x512xf32> to vector<2x48xf32>
    %412 = arith.negf %411 : vector<2x48xf32>
    %413 = math.exp %412 : vector<2x48xf32>
    %cst_181 = arith.constant 1.000000e+00 : f32
    %414 = vector.broadcast %cst_181 : f32 to vector<2x48xf32>
    %415 = arith.addf %414, %413 : vector<2x48xf32>
    %416 = arith.divf %414, %415 : vector<2x48xf32>
    %417 = vector.extract_strided_slice %410 {offsets = [0, 128], sizes = [2, 48], strides = [1, 1]} : vector<2x512xf32> to vector<2x48xf32>
    %418 = arith.negf %417 : vector<2x48xf32>
    %419 = math.exp %418 : vector<2x48xf32>
    %cst_182 = arith.constant 1.000000e+00 : f32
    %420 = vector.broadcast %cst_182 : f32 to vector<2x48xf32>
    %421 = arith.addf %420, %419 : vector<2x48xf32>
    %422 = arith.divf %420, %421 : vector<2x48xf32>
    %423 = vector.extract_strided_slice %410 {offsets = [0, 256], sizes = [2, 48], strides = [1, 1]} : vector<2x512xf32> to vector<2x48xf32>
    %424 = math.tanh %423 : vector<2x48xf32>
    %425 = vector.extract_strided_slice %410 {offsets = [0, 384], sizes = [2, 48], strides = [1, 1]} : vector<2x512xf32> to vector<2x48xf32>
    %426 = arith.negf %425 : vector<2x48xf32>
    %427 = math.exp %426 : vector<2x48xf32>
    %cst_183 = arith.constant 1.000000e+00 : f32
    %428 = vector.broadcast %cst_183 : f32 to vector<2x48xf32>
    %429 = arith.addf %428, %427 : vector<2x48xf32>
    %430 = arith.divf %428, %429 : vector<2x48xf32>
    %431 = arith.mulf %422, %372 : vector<2x48xf32>
    %432 = arith.mulf %416, %424 : vector<2x48xf32>
    %433 = arith.addf %431, %432 : vector<2x48xf32>
    %434 = math.tanh %433 : vector<2x48xf32>
    %435 = arith.mulf %430, %434 : vector<2x48xf32>
    %c8_184 = arith.constant 8 : index
    %c0_185 = arith.constant 0 : index
    %436 = vector.load %arg11[%c8_184, %c0_185] : memref<16x48xf32, #tpu.memory_space<vmem>>, vector<2x48xf32>
    tpu.vector_store %arg11[%c8_184, %c0_185], %435 {strides = array<i32>} : memref<16x48xf32, #tpu.memory_space<vmem>>, vector<2x48xf32>,
    %c12_186 = arith.constant 12 : index
    %c0_187 = arith.constant 0 : index
    %437 = vector.load %arg10[%c12_186, %c0_187] : memref<16x512xf32, #tpu.memory_space<vmem>>, vector<2x512xf32>
    %c0_188 = arith.constant 0 : index
    %c0_189 = arith.constant 0 : index
    %438 = vector.load %arg3[%c0_188, %c0_189] : memref<48x512xf32, #tpu.memory_space<vmem>>, vector<48x512xf32>
    %cst_190 = arith.constant dense<0.000000e+00> : vector<2x512xf32>
    %439 = tpu.matmul %404, %438, %cst_190 {dimension_numbers = #tpu.dot_dimension_numbers<[1], [0], [0], [1], [0, 0, 1, 1], [], []>} : vector<2x48xf32>, vector<48x512xf32>, vector<2x512xf32> -> vector<2x512xf32>
    %440 = arith.addf %437, %439 : vector<2x512xf32>
    %441 = vector.extract_strided_slice %440 {offsets = [0, 0], sizes = [2, 48], strides = [1, 1]} : vector<2x512xf32> to vector<2x48xf32>
    %442 = arith.negf %441 : vector<2x48xf32>
    %443 = math.exp %442 : vector<2x48xf32>
    %cst_191 = arith.constant 1.000000e+00 : f32
    %444 = vector.broadcast %cst_191 : f32 to vector<2x48xf32>
    %445 = arith.addf %444, %443 : vector<2x48xf32>
    %446 = arith.divf %444, %445 : vector<2x48xf32>
    %447 = vector.extract_strided_slice %440 {offsets = [0, 128], sizes = [2, 48], strides = [1, 1]} : vector<2x512xf32> to vector<2x48xf32>
    %448 = arith.negf %447 : vector<2x48xf32>
    %449 = math.exp %448 : vector<2x48xf32>
    %cst_192 = arith.constant 1.000000e+00 : f32
    %450 = vector.broadcast %cst_192 : f32 to vector<2x48xf32>
    %451 = arith.addf %450, %449 : vector<2x48xf32>
    %452 = arith.divf %450, %451 : vector<2x48xf32>
    %453 = vector.extract_strided_slice %440 {offsets = [0, 256], sizes = [2, 48], strides = [1, 1]} : vector<2x512xf32> to vector<2x48xf32>
    %454 = math.tanh %453 : vector<2x48xf32>
    %455 = vector.extract_strided_slice %440 {offsets = [0, 384], sizes = [2, 48], strides = [1, 1]} : vector<2x512xf32> to vector<2x48xf32>
    %456 = arith.negf %455 : vector<2x48xf32>
    %457 = math.exp %456 : vector<2x48xf32>
    %cst_193 = arith.constant 1.000000e+00 : f32
    %458 = vector.broadcast %cst_193 : f32 to vector<2x48xf32>
    %459 = arith.addf %458, %457 : vector<2x48xf32>
    %460 = arith.divf %458, %459 : vector<2x48xf32>
    %461 = arith.mulf %452, %402 : vector<2x48xf32>
    %462 = arith.mulf %446, %454 : vector<2x48xf32>
    %463 = arith.addf %461, %462 : vector<2x48xf32>
    %464 = math.tanh %463 : vector<2x48xf32>
    %465 = arith.mulf %460, %464 : vector<2x48xf32>
    %c0_194 = arith.constant 0 : index
    %c0_195 = arith.constant 0 : index
    %466 = vector.load %arg4[%c0_194, %c0_195] : memref<48x512xf32, #tpu.memory_space<vmem>>, vector<48x512xf32>
    %cst_196 = arith.constant dense<0.000000e+00> : vector<2x512xf32>
    %467 = tpu.matmul %404, %466, %cst_196 {dimension_numbers = #tpu.dot_dimension_numbers<[1], [0], [0], [1], [0, 0, 1, 1], [], []>} : vector<2x48xf32>, vector<48x512xf32>, vector<2x512xf32> -> vector<2x512xf32>
    %c0_197 = arith.constant 0 : index
    %c0_198 = arith.constant 0 : index
    %468 = vector.load %arg5[%c0_197, %c0_198] : memref<48x512xf32, #tpu.memory_space<vmem>>, vector<48x512xf32>
    %cst_199 = arith.constant dense<0.000000e+00> : vector<2x512xf32>
    %469 = tpu.matmul %435, %468, %cst_199 {dimension_numbers = #tpu.dot_dimension_numbers<[1], [0], [0], [1], [0, 0, 1, 1], [], []>} : vector<2x48xf32>, vector<48x512xf32>, vector<2x512xf32> -> vector<2x512xf32>
    %470 = arith.addf %467, %469 : vector<2x512xf32>
    %471 = arith.addf %470, %98 : vector<2x512xf32>
    %472 = vector.extract_strided_slice %471 {offsets = [0, 0], sizes = [2, 48], strides = [1, 1]} : vector<2x512xf32> to vector<2x48xf32>
    %473 = arith.negf %472 : vector<2x48xf32>
    %474 = math.exp %473 : vector<2x48xf32>
    %cst_200 = arith.constant 1.000000e+00 : f32
    %475 = vector.broadcast %cst_200 : f32 to vector<2x48xf32>
    %476 = arith.addf %475, %474 : vector<2x48xf32>
    %477 = arith.divf %475, %476 : vector<2x48xf32>
    %478 = vector.extract_strided_slice %471 {offsets = [0, 128], sizes = [2, 48], strides = [1, 1]} : vector<2x512xf32> to vector<2x48xf32>
    %479 = arith.negf %478 : vector<2x48xf32>
    %480 = math.exp %479 : vector<2x48xf32>
    %cst_201 = arith.constant 1.000000e+00 : f32
    %481 = vector.broadcast %cst_201 : f32 to vector<2x48xf32>
    %482 = arith.addf %481, %480 : vector<2x48xf32>
    %483 = arith.divf %481, %482 : vector<2x48xf32>
    %484 = vector.extract_strided_slice %471 {offsets = [0, 256], sizes = [2, 48], strides = [1, 1]} : vector<2x512xf32> to vector<2x48xf32>
    %485 = math.tanh %484 : vector<2x48xf32>
    %486 = vector.extract_strided_slice %471 {offsets = [0, 384], sizes = [2, 48], strides = [1, 1]} : vector<2x512xf32> to vector<2x48xf32>
    %487 = arith.negf %486 : vector<2x48xf32>
    %488 = math.exp %487 : vector<2x48xf32>
    %cst_202 = arith.constant 1.000000e+00 : f32
    %489 = vector.broadcast %cst_202 : f32 to vector<2x48xf32>
    %490 = arith.addf %489, %488 : vector<2x48xf32>
    %491 = arith.divf %489, %490 : vector<2x48xf32>
    %492 = arith.mulf %483, %433 : vector<2x48xf32>
    %493 = arith.mulf %477, %485 : vector<2x48xf32>
    %494 = arith.addf %492, %493 : vector<2x48xf32>
    %495 = math.tanh %494 : vector<2x48xf32>
    %496 = arith.mulf %491, %495 : vector<2x48xf32>
    %c10_203 = arith.constant 10 : index
    %c0_204 = arith.constant 0 : index
    %497 = vector.load %arg11[%c10_203, %c0_204] : memref<16x48xf32, #tpu.memory_space<vmem>>, vector<2x48xf32>
    tpu.vector_store %arg11[%c10_203, %c0_204], %496 {strides = array<i32>} : memref<16x48xf32, #tpu.memory_space<vmem>>, vector<2x48xf32>,
    %c14_205 = arith.constant 14 : index
    %c0_206 = arith.constant 0 : index
    %498 = vector.load %arg10[%c14_205, %c0_206] : memref<16x512xf32, #tpu.memory_space<vmem>>, vector<2x512xf32>
    %c0_207 = arith.constant 0 : index
    %c0_208 = arith.constant 0 : index
    %499 = vector.load %arg3[%c0_207, %c0_208] : memref<48x512xf32, #tpu.memory_space<vmem>>, vector<48x512xf32>
    %cst_209 = arith.constant dense<0.000000e+00> : vector<2x512xf32>
    %500 = tpu.matmul %465, %499, %cst_209 {dimension_numbers = #tpu.dot_dimension_numbers<[1], [0], [0], [1], [0, 0, 1, 1], [], []>} : vector<2x48xf32>, vector<48x512xf32>, vector<2x512xf32> -> vector<2x512xf32>
    %501 = arith.addf %498, %500 : vector<2x512xf32>
    %502 = vector.extract_strided_slice %501 {offsets = [0, 0], sizes = [2, 48], strides = [1, 1]} : vector<2x512xf32> to vector<2x48xf32>
    %503 = arith.negf %502 : vector<2x48xf32>
    %504 = math.exp %503 : vector<2x48xf32>
    %cst_210 = arith.constant 1.000000e+00 : f32
    %505 = vector.broadcast %cst_210 : f32 to vector<2x48xf32>
    %506 = arith.addf %505, %504 : vector<2x48xf32>
    %507 = arith.divf %505, %506 : vector<2x48xf32>
    %508 = vector.extract_strided_slice %501 {offsets = [0, 128], sizes = [2, 48], strides = [1, 1]} : vector<2x512xf32> to vector<2x48xf32>
    %509 = arith.negf %508 : vector<2x48xf32>
    %510 = math.exp %509 : vector<2x48xf32>
    %cst_211 = arith.constant 1.000000e+00 : f32
    %511 = vector.broadcast %cst_211 : f32 to vector<2x48xf32>
    %512 = arith.addf %511, %510 : vector<2x48xf32>
    %513 = arith.divf %511, %512 : vector<2x48xf32>
    %514 = vector.extract_strided_slice %501 {offsets = [0, 256], sizes = [2, 48], strides = [1, 1]} : vector<2x512xf32> to vector<2x48xf32>
    %515 = math.tanh %514 : vector<2x48xf32>
    %516 = vector.extract_strided_slice %501 {offsets = [0, 384], sizes = [2, 48], strides = [1, 1]} : vector<2x512xf32> to vector<2x48xf32>
    %517 = arith.negf %516 : vector<2x48xf32>
    %518 = math.exp %517 : vector<2x48xf32>
    %cst_212 = arith.constant 1.000000e+00 : f32
    %519 = vector.broadcast %cst_212 : f32 to vector<2x48xf32>
    %520 = arith.addf %519, %518 : vector<2x48xf32>
    %521 = arith.divf %519, %520 : vector<2x48xf32>
    %522 = arith.mulf %513, %463 : vector<2x48xf32>
    %523 = arith.mulf %507, %515 : vector<2x48xf32>
    %524 = arith.addf %522, %523 : vector<2x48xf32>
    %525 = math.tanh %524 : vector<2x48xf32>
    %526 = arith.mulf %521, %525 : vector<2x48xf32>
    %c0_213 = arith.constant 0 : index
    %c0_214 = arith.constant 0 : index
    %527 = vector.load %arg4[%c0_213, %c0_214] : memref<48x512xf32, #tpu.memory_space<vmem>>, vector<48x512xf32>
    %cst_215 = arith.constant dense<0.000000e+00> : vector<2x512xf32>
    %528 = tpu.matmul %465, %527, %cst_215 {dimension_numbers = #tpu.dot_dimension_numbers<[1], [0], [0], [1], [0, 0, 1, 1], [], []>} : vector<2x48xf32>, vector<48x512xf32>, vector<2x512xf32> -> vector<2x512xf32>
    %c0_216 = arith.constant 0 : index
    %c0_217 = arith.constant 0 : index
    %529 = vector.load %arg5[%c0_216, %c0_217] : memref<48x512xf32, #tpu.memory_space<vmem>>, vector<48x512xf32>
    %cst_218 = arith.constant dense<0.000000e+00> : vector<2x512xf32>
    %530 = tpu.matmul %496, %529, %cst_218 {dimension_numbers = #tpu.dot_dimension_numbers<[1], [0], [0], [1], [0, 0, 1, 1], [], []>} : vector<2x48xf32>, vector<48x512xf32>, vector<2x512xf32> -> vector<2x512xf32>
    %531 = arith.addf %528, %530 : vector<2x512xf32>
    %532 = arith.addf %531, %98 : vector<2x512xf32>
    %533 = vector.extract_strided_slice %532 {offsets = [0, 0], sizes = [2, 48], strides = [1, 1]} : vector<2x512xf32> to vector<2x48xf32>
    %534 = arith.negf %533 : vector<2x48xf32>
    %535 = math.exp %534 : vector<2x48xf32>
    %cst_219 = arith.constant 1.000000e+00 : f32
    %536 = vector.broadcast %cst_219 : f32 to vector<2x48xf32>
    %537 = arith.addf %536, %535 : vector<2x48xf32>
    %538 = arith.divf %536, %537 : vector<2x48xf32>
    %539 = vector.extract_strided_slice %532 {offsets = [0, 128], sizes = [2, 48], strides = [1, 1]} : vector<2x512xf32> to vector<2x48xf32>
    %540 = arith.negf %539 : vector<2x48xf32>
    %541 = math.exp %540 : vector<2x48xf32>
    %cst_220 = arith.constant 1.000000e+00 : f32
    %542 = vector.broadcast %cst_220 : f32 to vector<2x48xf32>
    %543 = arith.addf %542, %541 : vector<2x48xf32>
    %544 = arith.divf %542, %543 : vector<2x48xf32>
    %545 = vector.extract_strided_slice %532 {offsets = [0, 256], sizes = [2, 48], strides = [1, 1]} : vector<2x512xf32> to vector<2x48xf32>
    %546 = math.tanh %545 : vector<2x48xf32>
    %547 = vector.extract_strided_slice %532 {offsets = [0, 384], sizes = [2, 48], strides = [1, 1]} : vector<2x512xf32> to vector<2x48xf32>
    %548 = arith.negf %547 : vector<2x48xf32>
    %549 = math.exp %548 : vector<2x48xf32>
    %cst_221 = arith.constant 1.000000e+00 : f32
    %550 = vector.broadcast %cst_221 : f32 to vector<2x48xf32>
    %551 = arith.addf %550, %549 : vector<2x48xf32>
    %552 = arith.divf %550, %551 : vector<2x48xf32>
    %553 = arith.mulf %544, %494 : vector<2x48xf32>
    %554 = arith.mulf %538, %546 : vector<2x48xf32>
    %555 = arith.addf %553, %554 : vector<2x48xf32>
    %556 = math.tanh %555 : vector<2x48xf32>
    %557 = arith.mulf %552, %556 : vector<2x48xf32>
    %c12_222 = arith.constant 12 : index
    %c0_223 = arith.constant 0 : index
    %558 = vector.load %arg11[%c12_222, %c0_223] : memref<16x48xf32, #tpu.memory_space<vmem>>, vector<2x48xf32>
    tpu.vector_store %arg11[%c12_222, %c0_223], %557 {strides = array<i32>} : memref<16x48xf32, #tpu.memory_space<vmem>>, vector<2x48xf32>,
    %c0_224 = arith.constant 0 : index
    %c0_225 = arith.constant 0 : index
    %559 = vector.load %arg4[%c0_224, %c0_225] : memref<48x512xf32, #tpu.memory_space<vmem>>, vector<48x512xf32>
    %cst_226 = arith.constant dense<0.000000e+00> : vector<2x512xf32>
    %560 = tpu.matmul %526, %559, %cst_226 {dimension_numbers = #tpu.dot_dimension_numbers<[1], [0], [0], [1], [0, 0, 1, 1], [], []>} : vector<2x48xf32>, vector<48x512xf32>, vector<2x512xf32> -> vector<2x512xf32>
    %c0_227 = arith.constant 0 : index
    %c0_228 = arith.constant 0 : index
    %561 = vector.load %arg5[%c0_227, %c0_228] : memref<48x512xf32, #tpu.memory_space<vmem>>, vector<48x512xf32>
    %cst_229 = arith.constant dense<0.000000e+00> : vector<2x512xf32>
    %562 = tpu.matmul %557, %561, %cst_229 {dimension_numbers = #tpu.dot_dimension_numbers<[1], [0], [0], [1], [0, 0, 1, 1], [], []>} : vector<2x48xf32>, vector<48x512xf32>, vector<2x512xf32> -> vector<2x512xf32>
    %563 = arith.addf %560, %562 : vector<2x512xf32>
    %564 = arith.addf %563, %98 : vector<2x512xf32>
    %565 = vector.extract_strided_slice %564 {offsets = [0, 0], sizes = [2, 48], strides = [1, 1]} : vector<2x512xf32> to vector<2x48xf32>
    %566 = arith.negf %565 : vector<2x48xf32>
    %567 = math.exp %566 : vector<2x48xf32>
    %cst_230 = arith.constant 1.000000e+00 : f32
    %568 = vector.broadcast %cst_230 : f32 to vector<2x48xf32>
    %569 = arith.addf %568, %567 : vector<2x48xf32>
    %570 = arith.divf %568, %569 : vector<2x48xf32>
    %571 = vector.extract_strided_slice %564 {offsets = [0, 128], sizes = [2, 48], strides = [1, 1]} : vector<2x512xf32> to vector<2x48xf32>
    %572 = arith.negf %571 : vector<2x48xf32>
    %573 = math.exp %572 : vector<2x48xf32>
    %cst_231 = arith.constant 1.000000e+00 : f32
    %574 = vector.broadcast %cst_231 : f32 to vector<2x48xf32>
    %575 = arith.addf %574, %573 : vector<2x48xf32>
    %576 = arith.divf %574, %575 : vector<2x48xf32>
    %577 = vector.extract_strided_slice %564 {offsets = [0, 256], sizes = [2, 48], strides = [1, 1]} : vector<2x512xf32> to vector<2x48xf32>
    %578 = math.tanh %577 : vector<2x48xf32>
    %579 = vector.extract_strided_slice %564 {offsets = [0, 384], sizes = [2, 48], strides = [1, 1]} : vector<2x512xf32> to vector<2x48xf32>
    %580 = arith.negf %579 : vector<2x48xf32>
    %581 = math.exp %580 : vector<2x48xf32>
    %cst_232 = arith.constant 1.000000e+00 : f32
    %582 = vector.broadcast %cst_232 : f32 to vector<2x48xf32>
    %583 = arith.addf %582, %581 : vector<2x48xf32>
    %584 = arith.divf %582, %583 : vector<2x48xf32>
    %585 = arith.mulf %576, %555 : vector<2x48xf32>
    %586 = arith.mulf %570, %578 : vector<2x48xf32>
    %587 = arith.addf %585, %586 : vector<2x48xf32>
    %588 = math.tanh %587 : vector<2x48xf32>
    %589 = arith.mulf %584, %588 : vector<2x48xf32>
    %c14_233 = arith.constant 14 : index
    %c0_234 = arith.constant 0 : index
    %590 = vector.load %arg11[%c14_233, %c0_234] : memref<16x48xf32, #tpu.memory_space<vmem>>, vector<2x48xf32>
    tpu.vector_store %arg11[%c14_233, %c0_234], %589 {strides = array<i32>} : memref<16x48xf32, #tpu.memory_space<vmem>>, vector<2x48xf32>,
    %c0_235 = arith.constant 0 : index
    %c0_236 = arith.constant 0 : index
    %591 = vector.load %arg11[%c0_235, %c0_236] : memref<16x48xf32, #tpu.memory_space<vmem>>, vector<16x48xf32>
    %c0_237 = arith.constant 0 : index
    %c0_238 = arith.constant 0 : index
    %592 = vector.load %arg7[%c0_237, %c0_238] : memref<48x128xf32, #tpu.memory_space<vmem>>, vector<48x128xf32>
    %cst_239 = arith.constant dense<0.000000e+00> : vector<16x128xf32>
    %593 = tpu.matmul %591, %592, %cst_239 {dimension_numbers = #tpu.dot_dimension_numbers<[1], [0], [0], [1], [0, 0, 1, 1], [], []>} : vector<16x48xf32>, vector<48x128xf32>, vector<16x128xf32> -> vector<16x128xf32>
    %c0_240 = arith.constant 0 : index
    %c0_241 = arith.constant 0 : index
    %594 = vector.load %arg8[%c0_240, %c0_241] : memref<1x128xf32, #tpu.memory_space<vmem>>, vector<1x128xf32>
    %595 = vector.shape_cast %594 : vector<1x128xf32> to vector<1x128xf32>
    %596 = vector.broadcast %595 : vector<1x128xf32> to vector<16x128xf32>
    %597 = arith.addf %593, %596 : vector<16x128xf32>
    %c0_242 = arith.constant 0 : index
    %c0_243 = arith.constant 0 : index
    %598 = vector.load %arg9[%c0_242, %c0_243] : memref<16x128xf32, #tpu.memory_space<vmem>>, vector<16x128xf32>
    tpu.vector_store %arg9[%c0_242, %c0_243], %597 {strides = array<i32>} : memref<16x128xf32, #tpu.memory_space<vmem>>, vector<16x128xf32>,
    return
  }
  func.func @transform_0(%arg0: i32, %arg1: memref<16xi32, #tpu.memory_space<smem>>) -> (i32, i32) {
    %c0_i32 = arith.constant 0 : i32
    %c0_i32_0 = arith.constant 0 : i32
    %c0_i32_1 = arith.constant 0 : i32
    return %c0_i32, %c0_i32_0 : i32, i32
  }
  func.func @transform_1(%arg0: i32, %arg1: memref<16xi32, #tpu.memory_space<smem>>) -> (i32, i32) {
    %c0_i32 = arith.constant 0 : i32
    %c0_i32_0 = arith.constant 0 : i32
    %c0_i32_1 = arith.constant 0 : i32
    return %c0_i32, %c0_i32_0 : i32, i32
  }
  func.func @transform_2(%arg0: i32, %arg1: memref<16xi32, #tpu.memory_space<smem>>) -> (i32, i32) {
    %c0_i32 = arith.constant 0 : i32
    %c0_i32_0 = arith.constant 0 : i32
    %c0_i32_1 = arith.constant 0 : i32
    return %c0_i32, %c0_i32_0 : i32, i32
  }
  func.func @transform_3(%arg0: i32, %arg1: memref<16xi32, #tpu.memory_space<smem>>) -> (i32, i32) {
    %c0_i32 = arith.constant 0 : i32
    %c0_i32_0 = arith.constant 0 : i32
    %c0_i32_1 = arith.constant 0 : i32
    return %c0_i32, %c0_i32_0 : i32, i32
  }
  func.func @transform_4(%arg0: i32, %arg1: memref<16xi32, #tpu.memory_space<smem>>) -> (i32, i32) {
    %c0_i32 = arith.constant 0 : i32
    %c0_i32_0 = arith.constant 0 : i32
    %c0_i32_1 = arith.constant 0 : i32
    return %c0_i32, %c0_i32_0 : i32, i32
  }
  func.func @transform_5(%arg0: i32, %arg1: memref<16xi32, #tpu.memory_space<smem>>) -> (i32, i32) {
    %c0_i32 = arith.constant 0 : i32
    %c0_i32_0 = arith.constant 0 : i32
    %c0_i32_1 = arith.constant 0 : i32
    return %c0_i32, %c0_i32_0 : i32, i32
  }
  func.func @transform_6(%arg0: i32, %arg1: memref<16xi32, #tpu.memory_space<smem>>) -> (i32, i32) {
    %c0_i32 = arith.constant 0 : i32
    %c0_i32_0 = arith.constant 0 : i32
    %c0_i32_1 = arith.constant 0 : i32
    return %c0_i32, %c0_i32_0 : i32, i32
  }
  func.func @transform_7(%arg0: i32, %arg1: memref<16xi32, #tpu.memory_space<smem>>) -> (i32, i32) {
    %c0_i32 = arith.constant 0 : i32
    %c0_i32_0 = arith.constant 0 : i32
    %c0_i32_1 = arith.constant 0 : i32
    return %c0_i32, %c0_i32_0 : i32, i32
  }
}

</mosaic_0001>

<llo_original>
// kernel: tpu_custom_call.1
$region0: #{tpu_custom_call.1}
  #allocation0 [shape = 'u32[]', space=smem, size = 0x4, offset = 0x4, fixed_abs, tag = 'smem constant byte address 0x4 - core index']
  #allocation1 [shape = 'u32[72,128]{1,0:T(1,128)}', space=vmem, size = 0x9000, scoped, tag = 'internal scratch']
  #allocation2 [shape = 'f32[16,512]{1,0:T(8,128)}', space=vmem, size = 0x8000, scoped, tag = 'scratch operand']
  #allocation3 [shape = 'f32[16,48]{1,0:T(8,128)}', space=vmem, size = 0x2000, scoped, tag = 'scratch operand']
  #allocation4 [shape = 's32[1]{0}', space=sflag, size = 0x4, scoped, tag = 'scoped memory for tpu_custom_call.1']
  #allocation5 [shape = 'u8[512]{0}', space=smem, size = 0x200, scoped, tag = 'prefetched SMEM operand 0']
  %s0 = inlined_call_operand.hbm [shape: s32[16], index: 0, kind: input, shape index: {}]
  %s1 = inlined_call_operand.hbm [shape: f32[64,512], index: 1, kind: input, shape index: {}]
  %s2 = inlined_call_operand.hbm [shape: f32[48,512], index: 2, kind: input, shape index: {}]
  %s3 = inlined_call_operand.hbm [shape: f32[48,512], index: 3, kind: input, shape index: {}]
  %s4 = inlined_call_operand.hbm [shape: f32[48,512], index: 4, kind: input, shape index: {}]
  %s5 = inlined_call_operand.vmem [shape: f32[1,512], index: 5, kind: input, shape index: {}]
  %s6 = inlined_call_operand.hbm [shape: f32[48,128], index: 6, kind: input, shape index: {}]
  %s7 = inlined_call_operand.vmem [shape: f32[1,128], index: 7, kind: input, shape index: {}]
  %s8 = inlined_call_operand.hbm [shape: f32[16,128], index: 8, kind: output, shape index: {}]
  %s9 = sld [smem:[#allocation0]]
  $region58: #{tpu_custom_call.1} parent=0
    _
  %s11 = ssub.s32 1, %s9
  %s12 = scalar_select 0, %s11, %s9
  %s14 = sshll.u32 %s0, 4
  %s15 = int_to_ptr.hbm [resolvable:$true] %s14
  %17 = dma.hbm_to_smem %s15, 16, [#allocation5], [#allocation4]
  %19 = dma.done [#allocation4], 16
  %20 = sfence
  $region1: #{tpu_custom_call.1} parent=0
    #allocation6 [shape = 'u8[131072]{0}', space=vmem, size = 0x20000, scoped, tag = 'input window, operand 1, single buffered']
    #allocation7 [shape = 's32[1]{0}', space=sflag, size = 0x4, scoped, tag = 'scoped memory for tpu_custom_call.1']
    #allocation8 [shape = 's32[1]{0}', space=sflag, size = 0x4, scoped, tag = 'scoped memory for tpu_custom_call.1']
    #allocation9 [shape = 'u8[98304]{0}', space=vmem, size = 0x18000, scoped, tag = 'input window, operand 2, single buffered']
    #allocation10 [shape = 's32[1]{0}', space=sflag, size = 0x4, scoped, tag = 'scoped memory for tpu_custom_call.1']
    #allocation11 [shape = 'u8[98304]{0}', space=vmem, size = 0x18000, scoped, tag = 'input window, operand 3, single buffered']
    #allocation12 [shape = 'u8[98304]{0}', space=vmem, size = 0x18000, scoped, tag = 'input window, operand 4, single buffered']
    #allocation13 [shape = 's32[1]{0}', space=sflag, size = 0x4, scoped, tag = 'scoped memory for tpu_custom_call.1']
    #allocation14 [shape = 'u8[24576]{0}', space=vmem, size = 0x6000, scoped, tag = 'input window, operand 6, single buffered']
    #allocation15 [shape = 'u8[8192]{0}', space=vmem, size = 0x2000, scoped, tag = 'output window, operand 0, single buffered']
    %21 = vsyncpa [#allocation7], 0
    %22 = vsyncpa [#allocation10], 0
    %23 = vsyncpa [#allocation13], 0
    %24 = vsyncpa [#allocation8], 0
    // Predicated region
    $region2: #{tpu_custom_call.1} parent=1 // pred_check
      _
    $region3: #{tpu_custom_call.1} parent=1 // pred_check_branch
      %26 = sbr.rel (0) target = $region5
    $region4: #{tpu_custom_call.1} parent=1 // pred_region
      %28 = vsyncadd [#allocation7], 0
      %s29 = sshll.u32 %s1, 4
      %s30 = int_to_ptr.hbm [resolvable:$true] %s29
      %s31 = sshll.u32 [#allocation6], 4
      %s32 = int_to_ptr.vmem [resolvable:$true] %s31
      %37 = dma.hbm_to_vmem [thread:$0]  %s30, 4096, %s32, [#allocation7], 512, 512, 32
    $region5: #{tpu_custom_call.1} parent=1 // pred_fallthru
      _
    // Predicated region
    $region6: #{tpu_custom_call.1} parent=1 // pred_check
      _
    $region7: #{tpu_custom_call.1} parent=1 // pred_check_branch
      %39 = sbr.rel (0) target = $region9
    $region8: #{tpu_custom_call.1} parent=1 // pred_region
      %41 = vsyncadd [#allocation10], 0
      %s42 = sshll.u32 %s2, 4
      %s43 = int_to_ptr.hbm [resolvable:$true] %s42
      %s44 = sshll.u32 [#allocation9], 4
      %s45 = int_to_ptr.vmem [resolvable:$true] %s44
      %50 = dma.hbm_to_vmem [thread:$0]  %s43, 3072, %s45, [#allocation10], 512, 512, 32
    $region9: #{tpu_custom_call.1} parent=1 // pred_fallthru
      _
    // Predicated region
    $region10: #{tpu_custom_call.1} parent=1 // pred_check
      _
    $region11: #{tpu_custom_call.1} parent=1 // pred_check_branch
      %52 = sbr.rel (0) target = $region13
    $region12: #{tpu_custom_call.1} parent=1 // pred_region
      %54 = vsyncadd [#allocation10], 0
      %s55 = sshll.u32 %s3, 4
      %s56 = int_to_ptr.hbm [resolvable:$true] %s55
      %s57 = sshll.u32 [#allocation11], 4
      %s58 = int_to_ptr.vmem [resolvable:$true] %s57
      %63 = dma.hbm_to_vmem [thread:$0]  %s56, 3072, %s58, [#allocation10], 512, 512, 32
    $region13: #{tpu_custom_call.1} parent=1 // pred_fallthru
      _
    // Predicated region
    $region14: #{tpu_custom_call.1} parent=1 // pred_check
      _
    $region15: #{tpu_custom_call.1} parent=1 // pred_check_branch
      %65 = sbr.rel (0) target = $region17
    $region16: #{tpu_custom_call.1} parent=1 // pred_region
      %67 = vsyncadd [#allocation13], 0
      %s68 = sshll.u32 %s4, 4
      %s69 = int_to_ptr.hbm [resolvable:$true] %s68
      %s70 = sshll.u32 [#allocation12], 4
      %s71 = int_to_ptr.vmem [resolvable:$true] %s70
      %76 = dma.hbm_to_vmem [thread:$0]  %s69, 3072, %s71, [#allocation13], 512, 512, 32
    $region17: #{tpu_custom_call.1} parent=1 // pred_fallthru
      _
    // Predicated region
    $region18: #{tpu_custom_call.1} parent=1 // pred_check
      _
    $region19: #{tpu_custom_call.1} parent=1 // pred_check_branch
      %78 = sbr.rel (0) target = $region21
    $region20: #{tpu_custom_call.1} parent=1 // pred_region
      _
    $region21: #{tpu_custom_call.1} parent=1 // pred_fallthru
      _
    // Predicated region
    $region22: #{tpu_custom_call.1} parent=1 // pred_check
      _
    $region23: #{tpu_custom_call.1} parent=1 // pred_check_branch
      %80 = sbr.rel (0) target = $region25
    $region24: #{tpu_custom_call.1} parent=1 // pred_region
      %82 = vsyncadd [#allocation13], 0
      %s83 = sshll.u32 %s6, 4
      %s84 = int_to_ptr.hbm [resolvable:$true] %s83
      %s85 = sshll.u32 [#allocation14], 4
      %s86 = int_to_ptr.vmem [resolvable:$true] %s85
      %91 = dma.hbm_to_vmem [thread:$0]  %s84, 768, %s86, [#allocation13], 128, 128, 8
    $region25: #{tpu_custom_call.1} parent=1 // pred_fallthru
      _
    // Predicated region
    $region26: #{tpu_custom_call.1} parent=1 // pred_check
      _
    $region27: #{tpu_custom_call.1} parent=1 // pred_check_branch
      %93 = sbr.rel (0) target = $region29
    $region28: #{tpu_custom_call.1} parent=1 // pred_region
      _
    $region29: #{tpu_custom_call.1} parent=1 // pred_fallthru
      _
    // Predicated region
    $region30: #{tpu_custom_call.1} parent=1 // pred_check
      _
    $region31: #{tpu_custom_call.1} parent=1 // pred_check_branch
      %95 = sbr.rel (0) target = $region33
    $region32: #{tpu_custom_call.1} parent=1 // pred_region
      %97 = dma.done [#allocation7], 4096
    $region33: #{tpu_custom_call.1} parent=1 // pred_fallthru
      _
    // Predicated region
    $region34: #{tpu_custom_call.1} parent=1 // pred_check
      _
    $region35: #{tpu_custom_call.1} parent=1 // pred_check_branch
      %99 = sbr.rel (0) target = $region37
    $region36: #{tpu_custom_call.1} parent=1 // pred_region
      %101 = dma.done [#allocation10], 3072
    $region37: #{tpu_custom_call.1} parent=1 // pred_fallthru
      _
    // Predicated region
    $region38: #{tpu_custom_call.1} parent=1 // pred_check
      _
    $region39: #{tpu_custom_call.1} parent=1 // pred_check_branch
      %103 = sbr.rel (0) target = $region41
    $region40: #{tpu_custom_call.1} parent=1 // pred_region
      %105 = dma.done [#allocation10], 3072
    $region41: #{tpu_custom_call.1} parent=1 // pred_fallthru
      _
    // Predicated region
    $region42: #{tpu_custom_call.1} parent=1 // pred_check
      _
    $region43: #{tpu_custom_call.1} parent=1 // pred_check_branch
      %107 = sbr.rel (0) target = $region45
    $region44: #{tpu_custom_call.1} parent=1 // pred_region
      %109 = dma.done [#allocation13], 3072
    $region45: #{tpu_custom_call.1} parent=1 // pred_fallthru
      _
    // Predicated region
    $region46: #{tpu_custom_call.1} parent=1 // pred_check
      _
    $region47: #{tpu_custom_call.1} parent=1 // pred_check_branch
      %111 = sbr.rel (0) target = $region49
    $region48: #{tpu_custom_call.1} parent=1 // pred_region
      %113 = dma.done [#allocation13], 768
    $region49: #{tpu_custom_call.1} parent=1 // pred_fallthru
      _
    %s114 = sld [smem:[#allocation5]]
    %p115 = scmp.gt.s32.totalorder %s114, 0
    %s116 = scalar_select %p115, %s114, 0
    %p117 = scmp.lt.s32.totalorder %s116, 63
    %s118 = scalar_select %p117, %s116, 63
    %s119 = sshra.s32 %s118, 3
    %s120 = sand.u32 %s118, 7
    %s121 = sshra.s32 %s118, 3
    %s122 = sand.u32 %s118, 7
    %s123 = smul.u32 %s119, 4
    %s124 = smul.u32 %s123, 8
    %s125 = sadd.s32 %s124, %s122
    %s126 = scalar_lea.vmem [#allocation6], %s125
    %v127 = vld [vmem:[%s126] ss:$8 sm:$0xf]
    %v128 = vlaneseq
    %vm129 = vcmp.ge.s32.totalorder %v128, 0
    %vm130 = vcmp.lt.s32.totalorder %v128, 512
    %vm131 = vmand %vm129, %vm130
    %132 = vst.msk [vmem:[#allocation2] ss:$8 sm:$0xf] %vm131, %v127
    %133 = vst.msk [vmem:[#allocation2] ss:$8 sm:$0x0] %vm131, %v127
    %s134 = sld [smem:[#allocation5 + $0x1]]
    %p135 = scmp.gt.s32.totalorder %s134, 0
    %s136 = scalar_select %p135, %s134, 0
    %p137 = scmp.lt.s32.totalorder %s136, 63
    %s138 = scalar_select %p137, %s136, 63
    %s139 = sshra.s32 %s138, 3
    %s140 = sand.u32 %s138, 7
    %s141 = sshra.s32 %s138, 3
    %s142 = sand.u32 %s138, 7
    %s143 = smul.u32 %s139, 4
    %s144 = smul.u32 %s143, 8
    %s145 = sadd.s32 %s144, %s142
    %s146 = scalar_lea.vmem [#allocation6], %s145
    %v147 = vld [vmem:[%s146] ss:$8 sm:$0xf]
    %s148 = scalar_lea.vmem [#allocation2], 1
    %149 = vst.msk [vmem:[%s148] ss:$8 sm:$0xf] %vm131, %v147
    %150 = vst.msk [vmem:[%s148] ss:$8 sm:$0x0] %vm131, %v147
    %s151 = sld [smem:[#allocation5 + $0x2]]
    %p152 = scmp.gt.s32.totalorder %s151, 0
    %s153 = scalar_select %p152, %s151, 0
    %p154 = scmp.lt.s32.totalorder %s153, 63
    %s155 = scalar_select %p154, %s153, 63
    %s156 = sshra.s32 %s155, 3
    %s157 = sand.u32 %s155, 7
    %s158 = sshra.s32 %s155, 3
    %s159 = sand.u32 %s155, 7
    %s160 = smul.u32 %s156, 4
    %s161 = smul.u32 %s160, 8
    %s162 = sadd.s32 %s161, %s159
    %s163 = scalar_lea.vmem [#allocation6], %s162
    %v164 = vld [vmem:[%s163] ss:$8 sm:$0xf]
    %s165 = scalar_lea.vmem [#allocation2], 2
    %166 = vst.msk [vmem:[%s165] ss:$8 sm:$0xf] %vm131, %v164
    %167 = vst.msk [vmem:[%s165] ss:$8 sm:$0x0] %vm131, %v164
    %s168 = sld [smem:[#allocation5 + $0x3]]
    %p169 = scmp.gt.s32.totalorder %s168, 0
    %s170 = scalar_select %p169, %s168, 0
    %p171 = scmp.lt.s32.totalorder %s170, 63
    %s172 = scalar_select %p171, %s170, 63
    %s173 = sshra.s32 %s172, 3
    %s174 = sand.u32 %s172, 7
    %s175 = sshra.s32 %s172, 3
    %s176 = sand.u32 %s172, 7
    %s177 = smul.u32 %s173, 4
    %s178 = smul.u32 %s177, 8
    %s179 = sadd.s32 %s178, %s176
    %s180 = scalar_lea.vmem [#allocation6], %s179
    %v181 = vld [vmem:[%s180] ss:$8 sm:$0xf]
    %s182 = scalar_lea.vmem [#allocation2], 3
    %183 = vst.msk [vmem:[%s182] ss:$8 sm:$0xf] %vm131, %v181
    %184 = vst.msk [vmem:[%s182] ss:$8 sm:$0x0] %vm131, %v181
    %s185 = sld [smem:[#allocation5 + $0x4]]
    %p186 = scmp.gt.s32.totalorder %s185, 0
    %s187 = scalar_select %p186, %s185, 0
    %p188 = scmp.lt.s32.totalorder %s187, 63
    %s189 = scalar_select %p188, %s187, 63
    %s190 = sshra.s32 %s189, 3
    %s191 = sand.u32 %s189, 7
    %s192 = sshra.s32 %s189, 3
    %s193 = sand.u32 %s189, 7
    %s194 = smul.u32 %s190, 4
    %s195 = smul.u32 %s194, 8
    %s196 = sadd.s32 %s195, %s193
    %s197 = scalar_lea.vmem [#allocation6], %s196
    %v198 = vld [vmem:[%s197] ss:$8 sm:$0xf]
    %s199 = scalar_lea.vmem [#allocation2], 4
    %200 = vst.msk [vmem:[%s199] ss:$8 sm:$0xf] %vm131, %v198
    %201 = vst.msk [vmem:[%s199] ss:$8 sm:$0x0] %vm131, %v198
    %s202 = sld [smem:[#allocation5 + $0x5]]
    %p203 = scmp.gt.s32.totalorder %s202, 0
    %s204 = scalar_select %p203, %s202, 0
    %p205 = scmp.lt.s32.totalorder %s204, 63
    %s206 = scalar_select %p205, %s204, 63
    %s207 = sshra.s32 %s206, 3
    %s208 = sand.u32 %s206, 7
    %s209 = sshra.s32 %s206, 3
    %s210 = sand.u32 %s206, 7
    %s211 = smul.u32 %s207, 4
    %s212 = smul.u32 %s211, 8
    %s213 = sadd.s32 %s212, %s210
    %s214 = scalar_lea.vmem [#allocation6], %s213
    %v215 = vld [vmem:[%s214] ss:$8 sm:$0xf]
    %s216 = scalar_lea.vmem [#allocation2], 5
    %217 = vst.msk [vmem:[%s216] ss:$8 sm:$0xf] %vm131, %v215
    %218 = vst.msk [vmem:[%s216] ss:$8 sm:$0x0] %vm131, %v215
    %s219 = sld [smem:[#allocation5 + $0x6]]
    %p220 = scmp.gt.s32.totalorder %s219, 0
    %s221 = scalar_select %p220, %s219, 0
    %p222 = scmp.lt.s32.totalorder %s221, 63
    %s223 = scalar_select %p222, %s221, 63
    %s224 = sshra.s32 %s223, 3
    %s225 = sand.u32 %s223, 7
    %s226 = sshra.s32 %s223, 3
    %s227 = sand.u32 %s223, 7
    %s228 = smul.u32 %s224, 4
    %s229 = smul.u32 %s228, 8
    %s230 = sadd.s32 %s229, %s227
    %s231 = scalar_lea.vmem [#allocation6], %s230
    %v232 = vld [vmem:[%s231] ss:$8 sm:$0xf]
    %s233 = scalar_lea.vmem [#allocation2], 6
    %234 = vst.msk [vmem:[%s233] ss:$8 sm:$0xf] %vm131, %v232
    %235 = vst.msk [vmem:[%s233] ss:$8 sm:$0x0] %vm131, %v232
    %s236 = sld [smem:[#allocation5 + $0x7]]
    %p237 = scmp.gt.s32.totalorder %s236, 0
    %s238 = scalar_select %p237, %s236, 0
    %p239 = scmp.lt.s32.totalorder %s238, 63
    %s240 = scalar_select %p239, %s238, 63
    %s241 = sshra.s32 %s240, 3
    %s242 = sand.u32 %s240, 7
    %s243 = sshra.s32 %s240, 3
    %s244 = sand.u32 %s240, 7
    %s245 = smul.u32 %s241, 4
    %s246 = smul.u32 %s245, 8
    %s247 = sadd.s32 %s246, %s244
    %s248 = scalar_lea.vmem [#allocation6], %s247
    %v249 = vld [vmem:[%s248] ss:$8 sm:$0xf]
    %s250 = scalar_lea.vmem [#allocation2], 7
    %251 = vst.msk [vmem:[%s250] ss:$8 sm:$0xf] %vm131, %v249
    %252 = vst.msk [vmem:[%s250] ss:$8 sm:$0x0] %vm131, %v249
    %s253 = sld [smem:[#allocation5 + $0x8]]
    %p254 = scmp.gt.s32.totalorder %s253, 0
    %s255 = scalar_select %p254, %s253, 0
    %p256 = scmp.lt.s32.totalorder %s255, 63
    %s257 = scalar_select %p256, %s255, 63
    %s258 = sshra.s32 %s257, 3
    %s259 = sand.u32 %s257, 7
    %s260 = sshra.s32 %s257, 3
    %s261 = sand.u32 %s257, 7
    %s262 = smul.u32 %s258, 4
    %s263 = smul.u32 %s262, 8
    %s264 = sadd.s32 %s263, %s261
    %s265 = scalar_lea.vmem [#allocation6], %s264
    %v266 = vld [vmem:[%s265] ss:$8 sm:$0xf]
    %s267 = scalar_lea.vmem [#allocation2], 32
    %268 = vst.msk [vmem:[%s267] ss:$8 sm:$0xf] %vm131, %v266
    %269 = vst.msk [vmem:[%s267] ss:$8 sm:$0x0] %vm131, %v266
    %s270 = sld [smem:[#allocation5 + $0x9]]
    %p271 = scmp.gt.s32.totalorder %s270, 0
    %s272 = scalar_select %p271, %s270, 0
    %p273 = scmp.lt.s32.totalorder %s272, 63
    %s274 = scalar_select %p273, %s272, 63
    %s275 = sshra.s32 %s274, 3
    %s276 = sand.u32 %s274, 7
    %s277 = sshra.s32 %s274, 3
    %s278 = sand.u32 %s274, 7
    %s279 = smul.u32 %s275, 4
    %s280 = smul.u32 %s279, 8
    %s281 = sadd.s32 %s280, %s278
    %s282 = scalar_lea.vmem [#allocation6], %s281
    %v283 = vld [vmem:[%s282] ss:$8 sm:$0xf]
    %s284 = scalar_lea.vmem [#allocation2], 33
    %285 = vst.msk [vmem:[%s284] ss:$8 sm:$0xf] %vm131, %v283
    %286 = vst.msk [vmem:[%s284] ss:$8 sm:$0x0] %vm131, %v283
    %s287 = sld [smem:[#allocation5 + $0xa]]
    %p288 = scmp.gt.s32.totalorder %s287, 0
    %s289 = scalar_select %p288, %s287, 0
    %p290 = scmp.lt.s32.totalorder %s289, 63
    %s291 = scalar_select %p290, %s289, 63
    %s292 = sshra.s32 %s291, 3
    %s293 = sand.u32 %s291, 7
    %s294 = sshra.s32 %s291, 3
    %s295 = sand.u32 %s291, 7
    %s296 = smul.u32 %s292, 4
    %s297 = smul.u32 %s296, 8
    %s298 = sadd.s32 %s297, %s295
    %s299 = scalar_lea.vmem [#allocation6], %s298
    %v300 = vld [vmem:[%s299] ss:$8 sm:$0xf]
    %s301 = scalar_lea.vmem [#allocation2], 34
    %302 = vst.msk [vmem:[%s301] ss:$8 sm:$0xf] %vm131, %v300
    %303 = vst.msk [vmem:[%s301] ss:$8 sm:$0x0] %vm131, %v300
    %s304 = sld [smem:[#allocation5 + $0xb]]
    %p305 = scmp.gt.s32.totalorder %s304, 0
    %s306 = scalar_select %p305, %s304, 0
    %p307 = scmp.lt.s32.totalorder %s306, 63
    %s308 = scalar_select %p307, %s306, 63
    %s309 = sshra.s32 %s308, 3
    %s310 = sand.u32 %s308, 7
    %s311 = sshra.s32 %s308, 3
    %s312 = sand.u32 %s308, 7
    %s313 = smul.u32 %s309, 4
    %s314 = smul.u32 %s313, 8
    %s315 = sadd.s32 %s314, %s312
    %s316 = scalar_lea.vmem [#allocation6], %s315
    %v317 = vld [vmem:[%s316] ss:$8 sm:$0xf]
    %s318 = scalar_lea.vmem [#allocation2], 35
    %319 = vst.msk [vmem:[%s318] ss:$8 sm:$0xf] %vm131, %v317
    %320 = vst.msk [vmem:[%s318] ss:$8 sm:$0x0] %vm131, %v317
    %s321 = sld [smem:[#allocation5 + $0xc]]
    %p322 = scmp.gt.s32.totalorder %s321, 0
    %s323 = scalar_select %p322, %s321, 0
    %p324 = scmp.lt.s32.totalorder %s323, 63
    %s325 = scalar_select %p324, %s323, 63
    %s326 = sshra.s32 %s325, 3
    %s327 = sand.u32 %s325, 7
    %s328 = sshra.s32 %s325, 3
    %s329 = sand.u32 %s325, 7
    %s330 = smul.u32 %s326, 4
    %s331 = smul.u32 %s330, 8
    %s332 = sadd.s32 %s331, %s329
    %s333 = scalar_lea.vmem [#allocation6], %s332
    %v334 = vld [vmem:[%s333] ss:$8 sm:$0xf]
    %s335 = scalar_lea.vmem [#allocation2], 36
    %336 = vst.msk [vmem:[%s335] ss:$8 sm:$0xf] %vm131, %v334
    %337 = vst.msk [vmem:[%s335] ss:$8 sm:$0x0] %vm131, %v334
    %s338 = sld [smem:[#allocation5 + $0xd]]
    %p339 = scmp.gt.s32.totalorder %s338, 0
    %s340 = scalar_select %p339, %s338, 0
    %p341 = scmp.lt.s32.totalorder %s340, 63
    %s342 = scalar_select %p341, %s340, 63
    %s343 = sshra.s32 %s342, 3
    %s344 = sand.u32 %s342, 7
    %s345 = sshra.s32 %s342, 3
    %s346 = sand.u32 %s342, 7
    %s347 = smul.u32 %s343, 4
    %s348 = smul.u32 %s347, 8
    %s349 = sadd.s32 %s348, %s346
    %s350 = scalar_lea.vmem [#allocation6], %s349
    %v351 = vld [vmem:[%s350] ss:$8 sm:$0xf]
    %s352 = scalar_lea.vmem [#allocation2], 37
    %353 = vst.msk [vmem:[%s352] ss:$8 sm:$0xf] %vm131, %v351
    %354 = vst.msk [vmem:[%s352] ss:$8 sm:$0x0] %vm131, %v351
    %s355 = sld [smem:[#allocation5 + $0xe]]
    %p356 = scmp.gt.s32.totalorder %s355, 0
    %s357 = scalar_select %p356, %s355, 0
    %p358 = scmp.lt.s32.totalorder %s357, 63
    %s359 = scalar_select %p358, %s357, 63
    %s360 = sshra.s32 %s359, 3
    %s361 = sand.u32 %s359, 7
    %s362 = sshra.s32 %s359, 3
    %s363 = sand.u32 %s359, 7
    %s364 = smul.u32 %s360, 4
    %s365 = smul.u32 %s364, 8
    %s366 = sadd.s32 %s365, %s363
    %s367 = scalar_lea.vmem [#allocation6], %s366
    %v368 = vld [vmem:[%s367] ss:$8 sm:$0xf]
    %s369 = scalar_lea.vmem [#allocation2], 38
    %370 = vst.msk [vmem:[%s369] ss:$8 sm:$0xf] %vm131, %v368
    %371 = vst.msk [vmem:[%s369] ss:$8 sm:$0x0] %vm131, %v368
    %s372 = sld [smem:[#allocation5 + $0xf]]
    %p373 = scmp.gt.s32.totalorder %s372, 0
    %s374 = scalar_select %p373, %s372, 0
    %p375 = scmp.lt.s32.totalorder %s374, 63
    %s376 = scalar_select %p375, %s374, 63
    %s377 = sshra.s32 %s376, 3
    %s378 = sand.u32 %s376, 7
    %s379 = sshra.s32 %s376, 3
    %s380 = sand.u32 %s376, 7
    %s381 = smul.u32 %s377, 4
    %s382 = smul.u32 %s381, 8
    %s383 = sadd.s32 %s382, %s380
    %s384 = scalar_lea.vmem [#allocation6], %s383
    %v385 = vld [vmem:[%s384] ss:$8 sm:$0xf]
    %s386 = scalar_lea.vmem [#allocation2], 39
    %387 = vst.msk [vmem:[%s386] ss:$8 sm:$0xf] %vm131, %v385
    %388 = vst.msk [vmem:[%s386] ss:$8 sm:$0x0] %vm131, %v385
    %v389 = vld [vmem:[%s5] sm:$0xf]
    %v391 = vperm.slane %v389, 0
    %v392 = vperm.slane %v389, 1
    %v393 = vperm.slane %v389, 2
    %v394 = vperm.slane %v389, 3
    %v399 = vld [vmem:[#allocation2] sm:$0x3]
    %v400 = vld [vmem:[#allocation2 + $0x8] sm:$0x3]
    %v401 = vld [vmem:[#allocation2 + $0x10] sm:$0x3]
    %v402 = vld [vmem:[#allocation2 + $0x18] sm:$0x3]
    %v403 = vld [vmem:[#allocation9] sm:$0xff]
    %v404 = vld [vmem:[#allocation9 + $0x8] sm:$0xff]
    %v405 = vld [vmem:[#allocation9 + $0x10] sm:$0xff]
    %v406 = vld [vmem:[#allocation9 + $0x18] sm:$0xff]
    %v407 = vld [vmem:[#allocation9 + $0x20] sm:$0xff]
    %v408 = vld [vmem:[#allocation9 + $0x28] sm:$0xff]
    %v409 = vld [vmem:[#allocation9 + $0x30] sm:$0xff]
    %v410 = vld [vmem:[#allocation9 + $0x38] sm:$0xff]
    %v411 = vld [vmem:[#allocation9 + $0x40] sm:$0xff]
    %v412 = vld [vmem:[#allocation9 + $0x48] sm:$0xff]
    %v413 = vld [vmem:[#allocation9 + $0x50] sm:$0xff]
    %v414 = vld [vmem:[#allocation9 + $0x58] sm:$0xff]
    %v415 = vld [vmem:[#allocation9 + $0x60] sm:$0xff]
    %v416 = vld [vmem:[#allocation9 + $0x68] sm:$0xff]
    %v417 = vld [vmem:[#allocation9 + $0x70] sm:$0xff]
    %v418 = vld [vmem:[#allocation9 + $0x78] sm:$0xff]
    %v419 = vld [vmem:[#allocation9 + $0x80] sm:$0xff]
    %v420 = vld [vmem:[#allocation9 + $0x88] sm:$0xff]
    %v421 = vld [vmem:[#allocation9 + $0x90] sm:$0xff]
    %v422 = vld [vmem:[#allocation9 + $0x98] sm:$0xff]
    %v423 = vld [vmem:[#allocation9 + $0xa0] sm:$0xff]
    %v424 = vld [vmem:[#allocation9 + $0xa8] sm:$0xff]
    %v425 = vld [vmem:[#allocation9 + $0xb0] sm:$0xff]
    %v426 = vld [vmem:[#allocation9 + $0xb8] sm:$0xff]
    %vm427 = vcmask 392192
    %v429 = vsel %vm427, 0.0, 0
    %431 = vmatpush.msra.mxu0 0.0
    %432 = vmatpush.msra.mxu0 0.0
    %433 = vmatpush.msra.mxu0 0.0
    %434 = vmatpush.msra.mxu0 0.0
    %435 = vmatpush.msra.mxu0 0.0
    %436 = vmatpush.msra.mxu0 0.0
    %437 = vmatpush.msra.mxu0 0.0
    %438 = vmatpush.msra.mxu0 0.0
    %439 = vmatpush.msra.mxu0 0.0
    %440 = vmatpush.msra.mxu0 0.0
    %441 = vmatpush.msra.mxu0 %v423
    %442 = vmatpush.msra.mxu0 %v419
    %443 = vmatpush.msra.mxu0 %v415
    %444 = vmatpush.msra.mxu0 %v411
    %445 = vmatpush.msra.mxu0 %v407
    %446 = vmatpush.msra.mxu0 %v403
    %447 = vmatmul.f32.gmra.mxu0 %v429
    %v448 = vpop.f32.mrf.mxu0
    %v449 = vadd.f32 0.0, %v448
    %450 = vdwg.mxu0
    %451 = vmatpush.msra.mxu0 0.0
    %452 = vmatpush.msra.mxu0 0.0
    %453 = vmatpush.msra.mxu0 0.0
    %454 = vmatpush.msra.mxu0 0.0
    %455 = vmatpush.msra.mxu0 0.0
    %456 = vmatpush.msra.mxu0 0.0
    %457 = vmatpush.msra.mxu0 0.0
    %458 = vmatpush.msra.mxu0 0.0
    %459 = vmatpush.msra.mxu0 0.0
    %460 = vmatpush.msra.mxu0 0.0
    %461 = vmatpush.msra.mxu0 %v424
    %462 = vmatpush.msra.mxu0 %v420
    %463 = vmatpush.msra.mxu0 %v416
    %464 = vmatpush.msra.mxu0 %v412
    %465 = vmatpush.msra.mxu0 %v408
    %466 = vmatpush.msra.mxu0 %v404
    %467 = vmatmul.f32.gmra.mxu0 %v429
    %v468 = vpop.f32.mrf.mxu0
    %v469 = vadd.f32 0.0, %v468
    %470 = vdwg.mxu0
    %471 = vmatpush.msra.mxu0 0.0
    %472 = vmatpush.msra.mxu0 0.0
    %473 = vmatpush.msra.mxu0 0.0
    %474 = vmatpush.msra.mxu0 0.0
    %475 = vmatpush.msra.mxu0 0.0
    %476 = vmatpush.msra.mxu0 0.0
    %477 = vmatpush.msra.mxu0 0.0
    %478 = vmatpush.msra.mxu0 0.0
    %479 = vmatpush.msra.mxu0 0.0
    %480 = vmatpush.msra.mxu0 0.0
    %481 = vmatpush.msra.mxu0 %v425
    %482 = vmatpush.msra.mxu0 %v421
    %483 = vmatpush.msra.mxu0 %v417
    %484 = vmatpush.msra.mxu0 %v413
    %485 = vmatpush.msra.mxu0 %v409
    %486 = vmatpush.msra.mxu0 %v405
    %487 = vmatmul.f32.gmra.mxu0 %v429
    %v488 = vpop.f32.mrf.mxu0
    %v489 = vadd.f32 0.0, %v488
    %490 = vdwg.mxu0
    %491 = vmatpush.msra.mxu0 0.0
    %492 = vmatpush.msra.mxu0 0.0
    %493 = vmatpush.msra.mxu0 0.0
    %494 = vmatpush.msra.mxu0 0.0
    %495 = vmatpush.msra.mxu0 0.0
    %496 = vmatpush.msra.mxu0 0.0
    %497 = vmatpush.msra.mxu0 0.0
    %498 = vmatpush.msra.mxu0 0.0
    %499 = vmatpush.msra.mxu0 0.0
    %500 = vmatpush.msra.mxu0 0.0
    %501 = vmatpush.msra.mxu0 %v426
    %502 = vmatpush.msra.mxu0 %v422
    %503 = vmatpush.msra.mxu0 %v418
    %504 = vmatpush.msra.mxu0 %v414
    %505 = vmatpush.msra.mxu0 %v410
    %506 = vmatpush.msra.mxu0 %v406
    %507 = vmatmul.f32.gmra.mxu0 %v429
    %v508 = vpop.f32.mrf.mxu0
    %v509 = vadd.f32 0.0, %v508
    %510 = vdwg.mxu0
    %v511 = vadd.f32 %v399, %v449
    %v512 = vadd.f32 %v400, %v469
    %v513 = vadd.f32 %v401, %v489
    %v514 = vadd.f32 %v402, %v509
    %v515 = vxor.u32 %v511, 2147483648
    %v516 = vmul.f32 %v515, 1.442695
    %v517 = vpow.pop %v516
    %v518 = vadd.f32 %v517, 1.0
    %v519 = vrcp.pop %v518
    %v520 = vmul.f32 %v518, %v519
    %v521 = vsub.f32 1.0, %v520
    %v522 = vmul.f32 %v519, %v521
    %v523 = vadd.f32 %v519, %v522
    %vm524 = vweird.f32 %v518
    %vm525 = vweird.f32 %v519
    %vm526 = vmor %vm524, %vm525
    %v527 = vsel %vm526, %v519, %v523
    %v528 = vand.u32 2147483647, %v518
    %vm529 = vcmp.eq.f32.partialorder %v528, 8.507059e+37
    %v530 = vand.u32 %v518, 2147483648
    %v531 = vor.u32 1.1754944e-38, %v530
    %v532 = vsel %vm529, %v531, %v527
    %v533 = vmul.f32 1.0, %v532
    %v534 = vxor.u32 %v512, 2147483648
    %v535 = vmul.f32 %v534, 1.442695
    %v536 = vpow.pop %v535
    %v537 = vadd.f32 %v536, 1.0
    %v538 = vrcp.pop %v537
    %v539 = vmul.f32 %v537, %v538
    %v540 = vsub.f32 1.0, %v539
    %v541 = vmul.f32 %v538, %v540
    %v542 = vadd.f32 %v538, %v541
    %vm543 = vweird.f32 %v537
    %vm544 = vweird.f32 %v538
    %vm545 = vmor %vm543, %vm544
    %v546 = vsel %vm545, %v538, %v542
    %v547 = vand.u32 2147483647, %v537
    %vm548 = vcmp.eq.f32.partialorder %v547, 8.507059e+37
    %v549 = vand.u32 %v537, 2147483648
    %v550 = vor.u32 1.1754944e-38, %v549
    %v551 = vsel %vm548, %v550, %v546
    %v552 = vmul.f32 1.0, %v551
    %v553 = vtanh.pop %v513
    %v554 = vxor.u32 %v514, 2147483648
    %v555 = vmul.f32 %v554, 1.442695
    %v556 = vpow.pop %v555
    %v557 = vadd.f32 %v556, 1.0
    %v558 = vrcp.pop %v557
    %v559 = vmul.f32 %v557, %v558
    %v560 = vsub.f32 1.0, %v559
    %v561 = vmul.f32 %v558, %v560
    %v562 = vadd.f32 %v558, %v561
    %vm563 = vweird.f32 %v557
    %vm564 = vweird.f32 %v558
    %vm565 = vmor %vm563, %vm564
    %v566 = vsel %vm565, %v558, %v562
    %v567 = vand.u32 2147483647, %v557
    %vm568 = vcmp.eq.f32.partialorder %v567, 8.507059e+37
    %v569 = vand.u32 %v557, 2147483648
    %v570 = vor.u32 1.1754944e-38, %v569
    %v571 = vsel %vm568, %v570, %v566
    %v572 = vmul.f32 1.0, %v571
    %v573 = vmul.f32 %v552, 0.0
    %v574 = vmul.f32 %v533, %v553
    %v575 = vadd.f32 %v573, %v574
    %v576 = vtanh.pop %v575
    %v577 = vmul.f32 %v572, %v576
    %v578 = vld [vmem:[#allocation2] sm:$0xc]
    %v579 = vld [vmem:[#allocation2 + $0x8] sm:$0xc]
    %v580 = vld [vmem:[#allocation2 + $0x10] sm:$0xc]
    %v581 = vld [vmem:[#allocation2 + $0x18] sm:$0xc]
    %v583 = vsel %vm427, %v577, 0
    %585 = vmatpush.msra.mxu0 0.0
    %586 = vmatpush.msra.mxu0 0.0
    %587 = vmatpush.msra.mxu0 0.0
    %588 = vmatpush.msra.mxu0 0.0
    %589 = vmatpush.msra.mxu0 0.0
    %590 = vmatpush.msra.mxu0 0.0
    %591 = vmatpush.msra.mxu0 0.0
    %592 = vmatpush.msra.mxu0 0.0
    %593 = vmatpush.msra.mxu0 0.0
    %594 = vmatpush.msra.mxu0 0.0
    %595 = vmatpush.msra.mxu0 %v423
    %596 = vmatpush.msra.mxu0 %v419
    %597 = vmatpush.msra.mxu0 %v415
    %598 = vmatpush.msra.mxu0 %v411
    %599 = vmatpush.msra.mxu0 %v407
    %600 = vmatpush.msra.mxu0 %v403
    %601 = vmatmul.f32.gmra.mxu0 %v583
    %v602 = vpop.f32.mrf.mxu0
    %v603 = vadd.f32 0.0, %v602
    %604 = vdwg.mxu0
    %605 = vmatpush.msra.mxu0 0.0
    %606 = vmatpush.msra.mxu0 0.0
    %607 = vmatpush.msra.mxu0 0.0
    %608 = vmatpush.msra.mxu0 0.0
    %609 = vmatpush.msra.mxu0 0.0
    %610 = vmatpush.msra.mxu0 0.0
    %611 = vmatpush.msra.mxu0 0.0
    %612 = vmatpush.msra.mxu0 0.0
    %613 = vmatpush.msra.mxu0 0.0
    %614 = vmatpush.msra.mxu0 0.0
    %615 = vmatpush.msra.mxu0 %v424
    %616 = vmatpush.msra.mxu0 %v420
    %617 = vmatpush.msra.mxu0 %v416
    %618 = vmatpush.msra.mxu0 %v412
    %619 = vmatpush.msra.mxu0 %v408
    %620 = vmatpush.msra.mxu0 %v404
    %621 = vmatmul.f32.gmra.mxu0 %v583
    %v622 = vpop.f32.mrf.mxu0
    %v623 = vadd.f32 0.0, %v622
    %624 = vdwg.mxu0
    %625 = vmatpush.msra.mxu0 0.0
    %626 = vmatpush.msra.mxu0 0.0
    %627 = vmatpush.msra.mxu0 0.0
    %628 = vmatpush.msra.mxu0 0.0
    %629 = vmatpush.msra.mxu0 0.0
    %630 = vmatpush.msra.mxu0 0.0
    %631 = vmatpush.msra.mxu0 0.0
    %632 = vmatpush.msra.mxu0 0.0
    %633 = vmatpush.msra.mxu0 0.0
    %634 = vmatpush.msra.mxu0 0.0
    %635 = vmatpush.msra.mxu0 %v425
    %636 = vmatpush.msra.mxu0 %v421
    %637 = vmatpush.msra.mxu0 %v417
    %638 = vmatpush.msra.mxu0 %v413
    %639 = vmatpush.msra.mxu0 %v409
    %640 = vmatpush.msra.mxu0 %v405
    %641 = vmatmul.f32.gmra.mxu0 %v583
    %v642 = vpop.f32.mrf.mxu0
    %v643 = vadd.f32 0.0, %v642
    %644 = vdwg.mxu0
    %645 = vmatpush.msra.mxu0 0.0
    %646 = vmatpush.msra.mxu0 0.0
    %647 = vmatpush.msra.mxu0 0.0
    %648 = vmatpush.msra.mxu0 0.0
    %649 = vmatpush.msra.mxu0 0.0
    %650 = vmatpush.msra.mxu0 0.0
    %651 = vmatpush.msra.mxu0 0.0
    %652 = vmatpush.msra.mxu0 0.0
    %653 = vmatpush.msra.mxu0 0.0
    %654 = vmatpush.msra.mxu0 0.0
    %655 = vmatpush.msra.mxu0 %v426
    %656 = vmatpush.msra.mxu0 %v422
    %657 = vmatpush.msra.mxu0 %v418
    %658 = vmatpush.msra.mxu0 %v414
    %659 = vmatpush.msra.mxu0 %v410
    %660 = vmatpush.msra.mxu0 %v406
    %661 = vmatmul.f32.gmra.mxu0 %v583
    %v662 = vpop.f32.mrf.mxu0
    %v663 = vadd.f32 0.0, %v662
    %664 = vdwg.mxu0
    %v669 = vrot.slane %v603, 6
    %v670 = vrot.slane %v623, 6
    %v671 = vrot.slane %v643, 6
    %v672 = vrot.slane %v663, 6
    %v677 = vadd.f32 %v578, %v669
    %v678 = vadd.f32 %v579, %v670
    %v679 = vadd.f32 %v580, %v671
    %v680 = vadd.f32 %v581, %v672
    %v681 = vxor.u32 %v677, 2147483648
    %v682 = vmul.f32 %v681, 1.442695
    %v683 = vpow.pop %v682
    %v684 = vadd.f32 %v683, 1.0
    %v685 = vrcp.pop %v684
    %v686 = vmul.f32 %v684, %v685
    %v687 = vsub.f32 1.0, %v686
    %v688 = vmul.f32 %v685, %v687
    %v689 = vadd.f32 %v685, %v688
    %vm690 = vweird.f32 %v684
    %vm691 = vweird.f32 %v685
    %vm692 = vmor %vm690, %vm691
    %v693 = vsel %vm692, %v685, %v689
    %v694 = vand.u32 2147483647, %v684
    %vm695 = vcmp.eq.f32.partialorder %v694, 8.507059e+37
    %v696 = vand.u32 %v684, 2147483648
    %v697 = vor.u32 1.1754944e-38, %v696
    %v698 = vsel %vm695, %v697, %v693
    %v699 = vmul.f32 1.0, %v698
    %v700 = vxor.u32 %v678, 2147483648
    %v701 = vmul.f32 %v700, 1.442695
    %v702 = vpow.pop %v701
    %v703 = vadd.f32 %v702, 1.0
    %v704 = vrcp.pop %v703
    %v705 = vmul.f32 %v703, %v704
    %v706 = vsub.f32 1.0, %v705
    %v707 = vmul.f32 %v704, %v706
    %v708 = vadd.f32 %v704, %v707
    %vm709 = vweird.f32 %v703
    %vm710 = vweird.f32 %v704
    %vm711 = vmor %vm709, %vm710
    %v712 = vsel %vm711, %v704, %v708
    %v713 = vand.u32 2147483647, %v703
    %vm714 = vcmp.eq.f32.partialorder %v713, 8.507059e+37
    %v715 = vand.u32 %v703, 2147483648
    %v716 = vor.u32 1.1754944e-38, %v715
    %v717 = vsel %vm714, %v716, %v712
    %v718 = vmul.f32 1.0, %v717
    %v719 = vtanh.pop %v679
    %v720 = vxor.u32 %v680, 2147483648
    %v721 = vmul.f32 %v720, 1.442695
    %v722 = vpow.pop %v721
    %v723 = vadd.f32 %v722, 1.0
    %v724 = vrcp.pop %v723
    %v725 = vmul.f32 %v723, %v724
    %v726 = vsub.f32 1.0, %v725
    %v727 = vmul.f32 %v724, %v726
    %v728 = vadd.f32 %v724, %v727
    %vm729 = vweird.f32 %v723
    %vm730 = vweird.f32 %v724
    %vm731 = vmor %vm729, %vm730
    %v732 = vsel %vm731, %v724, %v728
    %v733 = vand.u32 2147483647, %v723
    %vm734 = vcmp.eq.f32.partialorder %v733, 8.507059e+37
    %v735 = vand.u32 %v723, 2147483648
    %v736 = vor.u32 1.1754944e-38, %v735
    %v737 = vsel %vm734, %v736, %v732
    %v738 = vmul.f32 1.0, %v737
    %v740 = vrot.slane %v575, 6
    %v742 = vmul.f32 %v718, %v740
    %v743 = vmul.f32 %v699, %v719
    %v744 = vadd.f32 %v742, %v743
    %v745 = vtanh.pop %v744
    %v746 = vmul.f32 %v738, %v745
    %v747 = vld [vmem:[#allocation11] sm:$0xff]
    %v748 = vld [vmem:[#allocation11 + $0x8] sm:$0xff]
    %v749 = vld [vmem:[#allocation11 + $0x10] sm:$0xff]
    %v750 = vld [vmem:[#allocation11 + $0x18] sm:$0xff]
    %v751 = vld [vmem:[#allocation11 + $0x20] sm:$0xff]
    %v752 = vld [vmem:[#allocation11 + $0x28] sm:$0xff]
    %v753 = vld [vmem:[#allocation11 + $0x30] sm:$0xff]
    %v754 = vld [vmem:[#allocation11 + $0x38] sm:$0xff]
    %v755 = vld [vmem:[#allocation11 + $0x40] sm:$0xff]
    %v756 = vld [vmem:[#allocation11 + $0x48] sm:$0xff]
    %v757 = vld [vmem:[#allocation11 + $0x50] sm:$0xff]
    %v758 = vld [vmem:[#allocation11 + $0x58] sm:$0xff]
    %v759 = vld [vmem:[#allocation11 + $0x60] sm:$0xff]
    %v760 = vld [vmem:[#allocation11 + $0x68] sm:$0xff]
    %v761 = vld [vmem:[#allocation11 + $0x70] sm:$0xff]
    %v762 = vld [vmem:[#allocation11 + $0x78] sm:$0xff]
    %v763 = vld [vmem:[#allocation11 + $0x80] sm:$0xff]
    %v764 = vld [vmem:[#allocation11 + $0x88] sm:$0xff]
    %v765 = vld [vmem:[#allocation11 + $0x90] sm:$0xff]
    %v766 = vld [vmem:[#allocation11 + $0x98] sm:$0xff]
    %v767 = vld [vmem:[#allocation11 + $0xa0] sm:$0xff]
    %v768 = vld [vmem:[#allocation11 + $0xa8] sm:$0xff]
    %v769 = vld [vmem:[#allocation11 + $0xb0] sm:$0xff]
    %v770 = vld [vmem:[#allocation11 + $0xb8] sm:$0xff]
    %v771 = vld [vmem:[#allocation12] sm:$0xff]
    %v772 = vld [vmem:[#allocation12 + $0x8] sm:$0xff]
    %v773 = vld [vmem:[#allocation12 + $0x10] sm:$0xff]
    %v774 = vld [vmem:[#allocation12 + $0x18] sm:$0xff]
    %v775 = vld [vmem:[#allocation12 + $0x20] sm:$0xff]
    %v776 = vld [vmem:[#allocation12 + $0x28] sm:$0xff]
    %v777 = vld [vmem:[#allocation12 + $0x30] sm:$0xff]
    %v778 = vld [vmem:[#allocation12 + $0x38] sm:$0xff]
    %v779 = vld [vmem:[#allocation12 + $0x40] sm:$0xff]
    %v780 = vld [vmem:[#allocation12 + $0x48] sm:$0xff]
    %v781 = vld [vmem:[#allocation12 + $0x50] sm:$0xff]
    %v782 = vld [vmem:[#allocation12 + $0x58] sm:$0xff]
    %v783 = vld [vmem:[#allocation12 + $0x60] sm:$0xff]
    %v784 = vld [vmem:[#allocation12 + $0x68] sm:$0xff]
    %v785 = vld [vmem:[#allocation12 + $0x70] sm:$0xff]
    %v786 = vld [vmem:[#allocation12 + $0x78] sm:$0xff]
    %v787 = vld [vmem:[#allocation12 + $0x80] sm:$0xff]
    %v788 = vld [vmem:[#allocation12 + $0x88] sm:$0xff]
    %v789 = vld [vmem:[#allocation12 + $0x90] sm:$0xff]
    %v790 = vld [vmem:[#allocation12 + $0x98] sm:$0xff]
    %v791 = vld [vmem:[#allocation12 + $0xa0] sm:$0xff]
    %v792 = vld [vmem:[#allocation12 + $0xa8] sm:$0xff]
    %v793 = vld [vmem:[#allocation12 + $0xb0] sm:$0xff]
    %v794 = vld [vmem:[#allocation12 + $0xb8] sm:$0xff]
    %795 = vmatpush.msra.mxu0 0.0
    %796 = vmatpush.msra.mxu0 0.0
    %797 = vmatpush.msra.mxu0 0.0
    %798 = vmatpush.msra.mxu0 0.0
    %799 = vmatpush.msra.mxu0 0.0
    %800 = vmatpush.msra.mxu0 0.0
    %801 = vmatpush.msra.mxu0 0.0
    %802 = vmatpush.msra.mxu0 0.0
    %803 = vmatpush.msra.mxu0 0.0
    %804 = vmatpush.msra.mxu0 0.0
    %805 = vmatpush.msra.mxu0 %v791
    %806 = vmatpush.msra.mxu0 %v787
    %807 = vmatpush.msra.mxu0 %v783
    %808 = vmatpush.msra.mxu0 %v779
    %809 = vmatpush.msra.mxu0 %v775
    %810 = vmatpush.msra.mxu0 %v771
    %811 = vmatmul.f32.gmra.mxu0 %v429
    %v812 = vpop.f32.mrf.mxu0
    %v813 = vadd.f32 0.0, %v812
    %814 = vdwg.mxu0
    %815 = vmatpush.msra.mxu0 0.0
    %816 = vmatpush.msra.mxu0 0.0
    %817 = vmatpush.msra.mxu0 0.0
    %818 = vmatpush.msra.mxu0 0.0
    %819 = vmatpush.msra.mxu0 0.0
    %820 = vmatpush.msra.mxu0 0.0
    %821 = vmatpush.msra.mxu0 0.0
    %822 = vmatpush.msra.mxu0 0.0
    %823 = vmatpush.msra.mxu0 0.0
    %824 = vmatpush.msra.mxu0 0.0
    %825 = vmatpush.msra.mxu0 %v792
    %826 = vmatpush.msra.mxu0 %v788
    %827 = vmatpush.msra.mxu0 %v784
    %828 = vmatpush.msra.mxu0 %v780
    %829 = vmatpush.msra.mxu0 %v776
    %830 = vmatpush.msra.mxu0 %v772
    %831 = vmatmul.f32.gmra.mxu0 %v429
    %v832 = vpop.f32.mrf.mxu0
    %v833 = vadd.f32 0.0, %v832
    %834 = vdwg.mxu0
    %835 = vmatpush.msra.mxu0 0.0
    %836 = vmatpush.msra.mxu0 0.0
    %837 = vmatpush.msra.mxu0 0.0
    %838 = vmatpush.msra.mxu0 0.0
    %839 = vmatpush.msra.mxu0 0.0
    %840 = vmatpush.msra.mxu0 0.0
    %841 = vmatpush.msra.mxu0 0.0
    %842 = vmatpush.msra.mxu0 0.0
    %843 = vmatpush.msra.mxu0 0.0
    %844 = vmatpush.msra.mxu0 0.0
    %845 = vmatpush.msra.mxu0 %v793
    %846 = vmatpush.msra.mxu0 %v789
    %847 = vmatpush.msra.mxu0 %v785
    %848 = vmatpush.msra.mxu0 %v781
    %849 = vmatpush.msra.mxu0 %v777
    %850 = vmatpush.msra.mxu0 %v773
    %851 = vmatmul.f32.gmra.mxu0 %v429
    %v852 = vpop.f32.mrf.mxu0
    %v853 = vadd.f32 0.0, %v852
    %854 = vdwg.mxu0
    %855 = vmatpush.msra.mxu0 0.0
    %856 = vmatpush.msra.mxu0 0.0
    %857 = vmatpush.msra.mxu0 0.0
    %858 = vmatpush.msra.mxu0 0.0
    %859 = vmatpush.msra.mxu0 0.0
    %860 = vmatpush.msra.mxu0 0.0
    %861 = vmatpush.msra.mxu0 0.0
    %862 = vmatpush.msra.mxu0 0.0
    %863 = vmatpush.msra.mxu0 0.0
    %864 = vmatpush.msra.mxu0 0.0
    %865 = vmatpush.msra.mxu0 %v794
    %866 = vmatpush.msra.mxu0 %v790
    %867 = vmatpush.msra.mxu0 %v786
    %868 = vmatpush.msra.mxu0 %v782
    %869 = vmatpush.msra.mxu0 %v778
    %870 = vmatpush.msra.mxu0 %v774
    %871 = vmatmul.f32.gmra.mxu0 %v429
    %v872 = vpop.f32.mrf.mxu0
    %v873 = vadd.f32 0.0, %v872
    %874 = vdwg.mxu0
    %875 = vmatpush.msra.mxu0 0.0
    %876 = vmatpush.msra.mxu0 0.0
    %877 = vmatpush.msra.mxu0 0.0
    %878 = vmatpush.msra.mxu0 0.0
    %879 = vmatpush.msra.mxu0 0.0
    %880 = vmatpush.msra.mxu0 0.0
    %881 = vmatpush.msra.mxu0 0.0
    %882 = vmatpush.msra.mxu0 0.0
    %883 = vmatpush.msra.mxu0 0.0
    %884 = vmatpush.msra.mxu0 0.0
    %885 = vmatpush.msra.mxu0 %v767
    %886 = vmatpush.msra.mxu0 %v763
    %887 = vmatpush.msra.mxu0 %v759
    %888 = vmatpush.msra.mxu0 %v755
    %889 = vmatpush.msra.mxu0 %v751
    %890 = vmatpush.msra.mxu0 %v747
    %891 = vmatmul.f32.gmra.mxu0 %v583
    %v892 = vpop.f32.mrf.mxu0
    %v893 = vadd.f32 %v813, %v892
    %894 = vdwg.mxu0
    %895 = vmatpush.msra.mxu0 0.0
    %896 = vmatpush.msra.mxu0 0.0
    %897 = vmatpush.msra.mxu0 0.0
    %898 = vmatpush.msra.mxu0 0.0
    %899 = vmatpush.msra.mxu0 0.0
    %900 = vmatpush.msra.mxu0 0.0
    %901 = vmatpush.msra.mxu0 0.0
    %902 = vmatpush.msra.mxu0 0.0
    %903 = vmatpush.msra.mxu0 0.0
    %904 = vmatpush.msra.mxu0 0.0
    %905 = vmatpush.msra.mxu0 %v768
    %906 = vmatpush.msra.mxu0 %v764
    %907 = vmatpush.msra.mxu0 %v760
    %908 = vmatpush.msra.mxu0 %v756
    %909 = vmatpush.msra.mxu0 %v752
    %910 = vmatpush.msra.mxu0 %v748
    %911 = vmatmul.f32.gmra.mxu0 %v583
    %v912 = vpop.f32.mrf.mxu0
    %v913 = vadd.f32 %v833, %v912
    %914 = vdwg.mxu0
    %915 = vmatpush.msra.mxu0 0.0
    %916 = vmatpush.msra.mxu0 0.0
    %917 = vmatpush.msra.mxu0 0.0
    %918 = vmatpush.msra.mxu0 0.0
    %919 = vmatpush.msra.mxu0 0.0
    %920 = vmatpush.msra.mxu0 0.0
    %921 = vmatpush.msra.mxu0 0.0
    %922 = vmatpush.msra.mxu0 0.0
    %923 = vmatpush.msra.mxu0 0.0
    %924 = vmatpush.msra.mxu0 0.0
    %925 = vmatpush.msra.mxu0 %v769
    %926 = vmatpush.msra.mxu0 %v765
    %927 = vmatpush.msra.mxu0 %v761
    %928 = vmatpush.msra.mxu0 %v757
    %929 = vmatpush.msra.mxu0 %v753
    %930 = vmatpush.msra.mxu0 %v749
    %931 = vmatmul.f32.gmra.mxu0 %v583
    %v932 = vpop.f32.mrf.mxu0
    %v933 = vadd.f32 %v853, %v932
    %934 = vdwg.mxu0
    %935 = vmatpush.msra.mxu0 0.0
    %936 = vmatpush.msra.mxu0 0.0
    %937 = vmatpush.msra.mxu0 0.0
    %938 = vmatpush.msra.mxu0 0.0
    %939 = vmatpush.msra.mxu0 0.0
    %940 = vmatpush.msra.mxu0 0.0
    %941 = vmatpush.msra.mxu0 0.0
    %942 = vmatpush.msra.mxu0 0.0
    %943 = vmatpush.msra.mxu0 0.0
    %944 = vmatpush.msra.mxu0 0.0
    %945 = vmatpush.msra.mxu0 %v770
    %946 = vmatpush.msra.mxu0 %v766
    %947 = vmatpush.msra.mxu0 %v762
    %948 = vmatpush.msra.mxu0 %v758
    %949 = vmatpush.msra.mxu0 %v754
    %950 = vmatpush.msra.mxu0 %v750
    %951 = vmatmul.f32.gmra.mxu0 %v583
    %v952 = vpop.f32.mrf.mxu0
    %v953 = vadd.f32 %v873, %v952
    %954 = vdwg.mxu0
    %v955 = vadd.f32 %v893, %v391
    %v956 = vadd.f32 %v913, %v392
    %v957 = vadd.f32 %v933, %v393
    %v958 = vadd.f32 %v953, %v394
    %v959 = vxor.u32 %v955, 2147483648
    %v960 = vmul.f32 %v959, 1.442695
    %v961 = vpow.pop %v960
    %v962 = vadd.f32 %v961, 1.0
    %v963 = vrcp.pop %v962
    %v964 = vmul.f32 %v962, %v963
    %v965 = vsub.f32 1.0, %v964
    %v966 = vmul.f32 %v963, %v965
    %v967 = vadd.f32 %v963, %v966
    %vm968 = vweird.f32 %v962
    %vm969 = vweird.f32 %v963
    %vm970 = vmor %vm968, %vm969
    %v971 = vsel %vm970, %v963, %v967
    %v972 = vand.u32 2147483647, %v962
    %vm973 = vcmp.eq.f32.partialorder %v972, 8.507059e+37
    %v974 = vand.u32 %v962, 2147483648
    %v975 = vor.u32 1.1754944e-38, %v974
    %v976 = vsel %vm973, %v975, %v971
    %v977 = vmul.f32 1.0, %v976
    %v978 = vxor.u32 %v956, 2147483648
    %v979 = vmul.f32 %v978, 1.442695
    %v980 = vpow.pop %v979
    %v981 = vadd.f32 %v980, 1.0
    %v982 = vrcp.pop %v981
    %v983 = vmul.f32 %v981, %v982
    %v984 = vsub.f32 1.0, %v983
    %v985 = vmul.f32 %v982, %v984
    %v986 = vadd.f32 %v982, %v985
    %vm987 = vweird.f32 %v981
    %vm988 = vweird.f32 %v982
    %vm989 = vmor %vm987, %vm988
    %v990 = vsel %vm989, %v982, %v986
    %v991 = vand.u32 2147483647, %v981
    %vm992 = vcmp.eq.f32.partialorder %v991, 8.507059e+37
    %v993 = vand.u32 %v981, 2147483648
    %v994 = vor.u32 1.1754944e-38, %v993
    %v995 = vsel %vm992, %v994, %v990
    %v996 = vmul.f32 1.0, %v995
    %v997 = vtanh.pop %v957
    %v998 = vxor.u32 %v958, 2147483648
    %v999 = vmul.f32 %v998, 1.442695
    %v1000 = vpow.pop %v999
    %v1001 = vadd.f32 %v1000, 1.0
    %v1002 = vrcp.pop %v1001
    %v1003 = vmul.f32 %v1001, %v1002
    %v1004 = vsub.f32 1.0, %v1003
    %v1005 = vmul.f32 %v1002, %v1004
    %v1006 = vadd.f32 %v1002, %v1005
    %vm1007 = vweird.f32 %v1001
    %vm1008 = vweird.f32 %v1002
    %vm1009 = vmor %vm1007, %vm1008
    %v1010 = vsel %vm1009, %v1002, %v1006
    %v1011 = vand.u32 2147483647, %v1001
    %vm1012 = vcmp.eq.f32.partialorder %v1011, 8.507059e+37
    %v1013 = vand.u32 %v1001, 2147483648
    %v1014 = vor.u32 1.1754944e-38, %v1013
    %v1015 = vsel %vm1012, %v1014, %v1010
    %v1016 = vmul.f32 1.0, %v1015
    %v1017 = vmul.f32 %v996, 0.0
    %v1018 = vmul.f32 %v977, %v997
    %v1019 = vadd.f32 %v1017, %v1018
    %v1020 = vtanh.pop %v1019
    %v1021 = vmul.f32 %v1016, %v1020
    %vm1022 = vcmask 386048
    %1023 = vst.msk [vmem:[#allocation3] sm:$0x3] %vm1022, %v1021
    %v1024 = vld [vmem:[#allocation2] sm:$0x30]
    %v1025 = vld [vmem:[#allocation2 + $0x8] sm:$0x30]
    %v1026 = vld [vmem:[#allocation2 + $0x10] sm:$0x30]
    %v1027 = vld [vmem:[#allocation2 + $0x18] sm:$0x30]
    %v1028 = vld [vmem:[#allocation9] sm:$0xff]
    %v1029 = vld [vmem:[#allocation9 + $0x8] sm:$0xff]
    %v1030 = vld [vmem:[#allocation9 + $0x10] sm:$0xff]
    %v1031 = vld [vmem:[#allocation9 + $0x18] sm:$0xff]
    %v1032 = vld [vmem:[#allocation9 + $0x20] sm:$0xff]
    %v1033 = vld [vmem:[#allocation9 + $0x28] sm:$0xff]
    %v1034 = vld [vmem:[#allocation9 + $0x30] sm:$0xff]
    %v1035 = vld [vmem:[#allocation9 + $0x38] sm:$0xff]
    %v1036 = vld [vmem:[#allocation9 + $0x40] sm:$0xff]
    %v1037 = vld [vmem:[#allocation9 + $0x48] sm:$0xff]
    %v1038 = vld [vmem:[#allocation9 + $0x50] sm:$0xff]
    %v1039 = vld [vmem:[#allocation9 + $0x58] sm:$0xff]
    %v1040 = vld [vmem:[#allocation9 + $0x60] sm:$0xff]
    %v1041 = vld [vmem:[#allocation9 + $0x68] sm:$0xff]
    %v1042 = vld [vmem:[#allocation9 + $0x70] sm:$0xff]
    %v1043 = vld [vmem:[#allocation9 + $0x78] sm:$0xff]
    %v1044 = vld [vmem:[#allocation9 + $0x80] sm:$0xff]
    %v1045 = vld [vmem:[#allocation9 + $0x88] sm:$0xff]
    %v1046 = vld [vmem:[#allocation9 + $0x90] sm:$0xff]
    %v1047 = vld [vmem:[#allocation9 + $0x98] sm:$0xff]
    %v1048 = vld [vmem:[#allocation9 + $0xa0] sm:$0xff]
    %v1049 = vld [vmem:[#allocation9 + $0xa8] sm:$0xff]
    %v1050 = vld [vmem:[#allocation9 + $0xb0] sm:$0xff]
    %v1051 = vld [vmem:[#allocation9 + $0xb8] sm:$0xff]
    %v1053 = vrot.slane %v746, 2
    %v1054 = vsel %vm427, %v1053, 0
    %1056 = vmatpush.msra.mxu0 0.0
    %1057 = vmatpush.msra.mxu0 0.0
    %1058 = vmatpush.msra.mxu0 0.0
    %1059 = vmatpush.msra.mxu0 0.0
    %1060 = vmatpush.msra.mxu0 0.0
    %1061 = vmatpush.msra.mxu0 0.0
    %1062 = vmatpush.msra.mxu0 0.0
    %1063 = vmatpush.msra.mxu0 0.0
    %1064 = vmatpush.msra.mxu0 0.0
    %1065 = vmatpush.msra.mxu0 0.0
    %1066 = vmatpush.msra.mxu0 %v1048
    %1067 = vmatpush.msra.mxu0 %v1044
    %1068 = vmatpush.msra.mxu0 %v1040
    %1069 = vmatpush.msra.mxu0 %v1036
    %1070 = vmatpush.msra.mxu0 %v1032
    %1071 = vmatpush.msra.mxu0 %v1028
    %1072 = vmatmul.f32.gmra.mxu0 %v1054
    %v1073 = vpop.f32.mrf.mxu0
    %v1074 = vadd.f32 0.0, %v1073
    %1075 = vdwg.mxu0
    %1076 = vmatpush.msra.mxu0 0.0
    %1077 = vmatpush.msra.mxu0 0.0
    %1078 = vmatpush.msra.mxu0 0.0
    %1079 = vmatpush.msra.mxu0 0.0
    %1080 = vmatpush.msra.mxu0 0.0
    %1081 = vmatpush.msra.mxu0 0.0
    %1082 = vmatpush.msra.mxu0 0.0
    %1083 = vmatpush.msra.mxu0 0.0
    %1084 = vmatpush.msra.mxu0 0.0
    %1085 = vmatpush.msra.mxu0 0.0
    %1086 = vmatpush.msra.mxu0 %v1049
    %1087 = vmatpush.msra.mxu0 %v1045
    %1088 = vmatpush.msra.mxu0 %v1041
    %1089 = vmatpush.msra.mxu0 %v1037
    %1090 = vmatpush.msra.mxu0 %v1033
    %1091 = vmatpush.msra.mxu0 %v1029
    %1092 = vmatmul.f32.gmra.mxu0 %v1054
    %v1093 = vpop.f32.mrf.mxu0
    %v1094 = vadd.f32 0.0, %v1093
    %1095 = vdwg.mxu0
    %1096 = vmatpush.msra.mxu0 0.0
    %1097 = vmatpush.msra.mxu0 0.0
    %1098 = vmatpush.msra.mxu0 0.0
    %1099 = vmatpush.msra.mxu0 0.0
    %1100 = vmatpush.msra.mxu0 0.0
    %1101 = vmatpush.msra.mxu0 0.0
    %1102 = vmatpush.msra.mxu0 0.0
    %1103 = vmatpush.msra.mxu0 0.0
    %1104 = vmatpush.msra.mxu0 0.0
    %1105 = vmatpush.msra.mxu0 0.0
    %1106 = vmatpush.msra.mxu0 %v1050
    %1107 = vmatpush.msra.mxu0 %v1046
    %1108 = vmatpush.msra.mxu0 %v1042
    %1109 = vmatpush.msra.mxu0 %v1038
    %1110 = vmatpush.msra.mxu0 %v1034
    %1111 = vmatpush.msra.mxu0 %v1030
    %1112 = vmatmul.f32.gmra.mxu0 %v1054
    %v1113 = vpop.f32.mrf.mxu0
    %v1114 = vadd.f32 0.0, %v1113
    %1115 = vdwg.mxu0
    %1116 = vmatpush.msra.mxu0 0.0
    %1117 = vmatpush.msra.mxu0 0.0
    %1118 = vmatpush.msra.mxu0 0.0
    %1119 = vmatpush.msra.mxu0 0.0
    %1120 = vmatpush.msra.mxu0 0.0
    %1121 = vmatpush.msra.mxu0 0.0
    %1122 = vmatpush.msra.mxu0 0.0
    %1123 = vmatpush.msra.mxu0 0.0
    %1124 = vmatpush.msra.mxu0 0.0
    %1125 = vmatpush.msra.mxu0 0.0
    %1126 = vmatpush.msra.mxu0 %v1051
    %1127 = vmatpush.msra.mxu0 %v1047
    %1128 = vmatpush.msra.mxu0 %v1043
    %1129 = vmatpush.msra.mxu0 %v1039
    %1130 = vmatpush.msra.mxu0 %v1035
    %1131 = vmatpush.msra.mxu0 %v1031
    %1132 = vmatmul.f32.gmra.mxu0 %v1054
    %v1133 = vpop.f32.mrf.mxu0
    %v1134 = vadd.f32 0.0, %v1133
    %1135 = vdwg.mxu0
    %v1140 = vrot.slane %v1074, 4
    %v1141 = vrot.slane %v1094, 4
    %v1142 = vrot.slane %v1114, 4
    %v1143 = vrot.slane %v1134, 4
    %v1148 = vadd.f32 %v1024, %v1140
    %v1149 = vadd.f32 %v1025, %v1141
    %v1150 = vadd.f32 %v1026, %v1142
    %v1151 = vadd.f32 %v1027, %v1143
    %v1152 = vxor.u32 %v1148, 2147483648
    %v1153 = vmul.f32 %v1152, 1.442695
    %v1154 = vpow.pop %v1153
    %v1155 = vadd.f32 %v1154, 1.0
    %v1156 = vrcp.pop %v1155
    %v1157 = vmul.f32 %v1155, %v1156
    %v1158 = vsub.f32 1.0, %v1157
    %v1159 = vmul.f32 %v1156, %v1158
    %v1160 = vadd.f32 %v1156, %v1159
    %vm1161 = vweird.f32 %v1155
    %vm1162 = vweird.f32 %v1156
    %vm1163 = vmor %vm1161, %vm1162
    %v1164 = vsel %vm1163, %v1156, %v1160
    %v1165 = vand.u32 2147483647, %v1155
    %vm1166 = vcmp.eq.f32.partialorder %v1165, 8.507059e+37
    %v1167 = vand.u32 %v1155, 2147483648
    %v1168 = vor.u32 1.1754944e-38, %v1167
    %v1169 = vsel %vm1166, %v1168, %v1164
    %v1170 = vmul.f32 1.0, %v1169
    %v1171 = vxor.u32 %v1149, 2147483648
    %v1172 = vmul.f32 %v1171, 1.442695
    %v1173 = vpow.pop %v1172
    %v1174 = vadd.f32 %v1173, 1.0
    %v1175 = vrcp.pop %v1174
    %v1176 = vmul.f32 %v1174, %v1175
    %v1177 = vsub.f32 1.0, %v1176
    %v1178 = vmul.f32 %v1175, %v1177
    %v1179 = vadd.f32 %v1175, %v1178
    %vm1180 = vweird.f32 %v1174
    %vm1181 = vweird.f32 %v1175
    %vm1182 = vmor %vm1180, %vm1181
    %v1183 = vsel %vm1182, %v1175, %v1179
    %v1184 = vand.u32 2147483647, %v1174
    %vm1185 = vcmp.eq.f32.partialorder %v1184, 8.507059e+37
    %v1186 = vand.u32 %v1174, 2147483648
    %v1187 = vor.u32 1.1754944e-38, %v1186
    %v1188 = vsel %vm1185, %v1187, %v1183
    %v1189 = vmul.f32 1.0, %v1188
    %v1190 = vtanh.pop %v1150
    %v1191 = vxor.u32 %v1151, 2147483648
    %v1192 = vmul.f32 %v1191, 1.442695
    %v1193 = vpow.pop %v1192
    %v1194 = vadd.f32 %v1193, 1.0
    %v1195 = vrcp.pop %v1194
    %v1196 = vmul.f32 %v1194, %v1195
    %v1197 = vsub.f32 1.0, %v1196
    %v1198 = vmul.f32 %v1195, %v1197
    %v1199 = vadd.f32 %v1195, %v1198
    %vm1200 = vweird.f32 %v1194
    %vm1201 = vweird.f32 %v1195
    %vm1202 = vmor %vm1200, %vm1201
    %v1203 = vsel %vm1202, %v1195, %v1199
    %v1204 = vand.u32 2147483647, %v1194
    %vm1205 = vcmp.eq.f32.partialorder %v1204, 8.507059e+37
    %v1206 = vand.u32 %v1194, 2147483648
    %v1207 = vor.u32 1.1754944e-38, %v1206
    %v1208 = vsel %vm1205, %v1207, %v1203
    %v1209 = vmul.f32 1.0, %v1208
    %v1211 = vrot.slane %v744, 6
    %v1213 = vmul.f32 %v1189, %v1211
    %v1214 = vmul.f32 %v1170, %v1190
    %v1215 = vadd.f32 %v1213, %v1214
    %v1216 = vtanh.pop %v1215
    %v1217 = vmul.f32 %v1209, %v1216
    %v1218 = vld [vmem:[#allocation11] sm:$0xff]
    %v1219 = vld [vmem:[#allocation11 + $0x8] sm:$0xff]
    %v1220 = vld [vmem:[#allocation11 + $0x10] sm:$0xff]
    %v1221 = vld [vmem:[#allocation11 + $0x18] sm:$0xff]
    %v1222 = vld [vmem:[#allocation11 + $0x20] sm:$0xff]
    %v1223 = vld [vmem:[#allocation11 + $0x28] sm:$0xff]
    %v1224 = vld [vmem:[#allocation11 + $0x30] sm:$0xff]
    %v1225 = vld [vmem:[#allocation11 + $0x38] sm:$0xff]
    %v1226 = vld [vmem:[#allocation11 + $0x40] sm:$0xff]
    %v1227 = vld [vmem:[#allocation11 + $0x48] sm:$0xff]
    %v1228 = vld [vmem:[#allocation11 + $0x50] sm:$0xff]
    %v1229 = vld [vmem:[#allocation11 + $0x58] sm:$0xff]
    %v1230 = vld [vmem:[#allocation11 + $0x60] sm:$0xff]
    %v1231 = vld [vmem:[#allocation11 + $0x68] sm:$0xff]
    %v1232 = vld [vmem:[#allocation11 + $0x70] sm:$0xff]
    %v1233 = vld [vmem:[#allocation11 + $0x78] sm:$0xff]
    %v1234 = vld [vmem:[#allocation11 + $0x80] sm:$0xff]
    %v1235 = vld [vmem:[#allocation11 + $0x88] sm:$0xff]
    %v1236 = vld [vmem:[#allocation11 + $0x90] sm:$0xff]
    %v1237 = vld [vmem:[#allocation11 + $0x98] sm:$0xff]
    %v1238 = vld [vmem:[#allocation11 + $0xa0] sm:$0xff]
    %v1239 = vld [vmem:[#allocation11 + $0xa8] sm:$0xff]
    %v1240 = vld [vmem:[#allocation11 + $0xb0] sm:$0xff]
    %v1241 = vld [vmem:[#allocation11 + $0xb8] sm:$0xff]
    %v1242 = vld [vmem:[#allocation12] sm:$0xff]
    %v1243 = vld [vmem:[#allocation12 + $0x8] sm:$0xff]
    %v1244 = vld [vmem:[#allocation12 + $0x10] sm:$0xff]
    %v1245 = vld [vmem:[#allocation12 + $0x18] sm:$0xff]
    %v1246 = vld [vmem:[#allocation12 + $0x20] sm:$0xff]
    %v1247 = vld [vmem:[#allocation12 + $0x28] sm:$0xff]
    %v1248 = vld [vmem:[#allocation12 + $0x30] sm:$0xff]
    %v1249 = vld [vmem:[#allocation12 + $0x38] sm:$0xff]
    %v1250 = vld [vmem:[#allocation12 + $0x40] sm:$0xff]
    %v1251 = vld [vmem:[#allocation12 + $0x48] sm:$0xff]
    %v1252 = vld [vmem:[#allocation12 + $0x50] sm:$0xff]
    %v1253 = vld [vmem:[#allocation12 + $0x58] sm:$0xff]
    %v1254 = vld [vmem:[#allocation12 + $0x60] sm:$0xff]
    %v1255 = vld [vmem:[#allocation12 + $0x68] sm:$0xff]
    %v1256 = vld [vmem:[#allocation12 + $0x70] sm:$0xff]
    %v1257 = vld [vmem:[#allocation12 + $0x78] sm:$0xff]
    %v1258 = vld [vmem:[#allocation12 + $0x80] sm:$0xff]
    %v1259 = vld [vmem:[#allocation12 + $0x88] sm:$0xff]
    %v1260 = vld [vmem:[#allocation12 + $0x90] sm:$0xff]
    %v1261 = vld [vmem:[#allocation12 + $0x98] sm:$0xff]
    %v1262 = vld [vmem:[#allocation12 + $0xa0] sm:$0xff]
    %v1263 = vld [vmem:[#allocation12 + $0xa8] sm:$0xff]
    %v1264 = vld [vmem:[#allocation12 + $0xb0] sm:$0xff]
    %v1265 = vld [vmem:[#allocation12 + $0xb8] sm:$0xff]
    %v1267 = vsel %vm427, %v1021, 0
    %1269 = vmatpush.msra.mxu0 0.0
    %1270 = vmatpush.msra.mxu0 0.0
    %1271 = vmatpush.msra.mxu0 0.0
    %1272 = vmatpush.msra.mxu0 0.0
    %1273 = vmatpush.msra.mxu0 0.0
    %1274 = vmatpush.msra.mxu0 0.0
    %1275 = vmatpush.msra.mxu0 0.0
    %1276 = vmatpush.msra.mxu0 0.0
    %1277 = vmatpush.msra.mxu0 0.0
    %1278 = vmatpush.msra.mxu0 0.0
    %1279 = vmatpush.msra.mxu0 %v1262
    %1280 = vmatpush.msra.mxu0 %v1258
    %1281 = vmatpush.msra.mxu0 %v1254
    %1282 = vmatpush.msra.mxu0 %v1250
    %1283 = vmatpush.msra.mxu0 %v1246
    %1284 = vmatpush.msra.mxu0 %v1242
    %1285 = vmatmul.f32.gmra.mxu0 %v1267
    %v1286 = vpop.f32.mrf.mxu0
    %v1287 = vadd.f32 0.0, %v1286
    %1288 = vdwg.mxu0
    %1289 = vmatpush.msra.mxu0 0.0
    %1290 = vmatpush.msra.mxu0 0.0
    %1291 = vmatpush.msra.mxu0 0.0
    %1292 = vmatpush.msra.mxu0 0.0
    %1293 = vmatpush.msra.mxu0 0.0
    %1294 = vmatpush.msra.mxu0 0.0
    %1295 = vmatpush.msra.mxu0 0.0
    %1296 = vmatpush.msra.mxu0 0.0
    %1297 = vmatpush.msra.mxu0 0.0
    %1298 = vmatpush.msra.mxu0 0.0
    %1299 = vmatpush.msra.mxu0 %v1263
    %1300 = vmatpush.msra.mxu0 %v1259
    %1301 = vmatpush.msra.mxu0 %v1255
    %1302 = vmatpush.msra.mxu0 %v1251
    %1303 = vmatpush.msra.mxu0 %v1247
    %1304 = vmatpush.msra.mxu0 %v1243
    %1305 = vmatmul.f32.gmra.mxu0 %v1267
    %v1306 = vpop.f32.mrf.mxu0
    %v1307 = vadd.f32 0.0, %v1306
    %1308 = vdwg.mxu0
    %1309 = vmatpush.msra.mxu0 0.0
    %1310 = vmatpush.msra.mxu0 0.0
    %1311 = vmatpush.msra.mxu0 0.0
    %1312 = vmatpush.msra.mxu0 0.0
    %1313 = vmatpush.msra.mxu0 0.0
    %1314 = vmatpush.msra.mxu0 0.0
    %1315 = vmatpush.msra.mxu0 0.0
    %1316 = vmatpush.msra.mxu0 0.0
    %1317 = vmatpush.msra.mxu0 0.0
    %1318 = vmatpush.msra.mxu0 0.0
    %1319 = vmatpush.msra.mxu0 %v1264
    %1320 = vmatpush.msra.mxu0 %v1260
    %1321 = vmatpush.msra.mxu0 %v1256
    %1322 = vmatpush.msra.mxu0 %v1252
    %1323 = vmatpush.msra.mxu0 %v1248
    %1324 = vmatpush.msra.mxu0 %v1244
    %1325 = vmatmul.f32.gmra.mxu0 %v1267
    %v1326 = vpop.f32.mrf.mxu0
    %v1327 = vadd.f32 0.0, %v1326
    %1328 = vdwg.mxu0
    %1329 = vmatpush.msra.mxu0 0.0
    %1330 = vmatpush.msra.mxu0 0.0
    %1331 = vmatpush.msra.mxu0 0.0
    %1332 = vmatpush.msra.mxu0 0.0
    %1333 = vmatpush.msra.mxu0 0.0
    %1334 = vmatpush.msra.mxu0 0.0
    %1335 = vmatpush.msra.mxu0 0.0
    %1336 = vmatpush.msra.mxu0 0.0
    %1337 = vmatpush.msra.mxu0 0.0
    %1338 = vmatpush.msra.mxu0 0.0
    %1339 = vmatpush.msra.mxu0 %v1265
    %1340 = vmatpush.msra.mxu0 %v1261
    %1341 = vmatpush.msra.mxu0 %v1257
    %1342 = vmatpush.msra.mxu0 %v1253
    %1343 = vmatpush.msra.mxu0 %v1249
    %1344 = vmatpush.msra.mxu0 %v1245
    %1345 = vmatmul.f32.gmra.mxu0 %v1267
    %v1346 = vpop.f32.mrf.mxu0
    %v1347 = vadd.f32 0.0, %v1346
    %1348 = vdwg.mxu0
    %1349 = vmatpush.msra.mxu0 0.0
    %1350 = vmatpush.msra.mxu0 0.0
    %1351 = vmatpush.msra.mxu0 0.0
    %1352 = vmatpush.msra.mxu0 0.0
    %1353 = vmatpush.msra.mxu0 0.0
    %1354 = vmatpush.msra.mxu0 0.0
    %1355 = vmatpush.msra.mxu0 0.0
    %1356 = vmatpush.msra.mxu0 0.0
    %1357 = vmatpush.msra.mxu0 0.0
    %1358 = vmatpush.msra.mxu0 0.0
    %1359 = vmatpush.msra.mxu0 %v1238
    %1360 = vmatpush.msra.mxu0 %v1234
    %1361 = vmatpush.msra.mxu0 %v1230
    %1362 = vmatpush.msra.mxu0 %v1226
    %1363 = vmatpush.msra.mxu0 %v1222
    %1364 = vmatpush.msra.mxu0 %v1218
    %1365 = vmatmul.f32.gmra.mxu0 %v1054
    %v1366 = vpop.f32.mrf.mxu0
    %v1367 = vadd.f32 %v1287, %v1366
    %1368 = vdwg.mxu0
    %1369 = vmatpush.msra.mxu0 0.0
    %1370 = vmatpush.msra.mxu0 0.0
    %1371 = vmatpush.msra.mxu0 0.0
    %1372 = vmatpush.msra.mxu0 0.0
    %1373 = vmatpush.msra.mxu0 0.0
    %1374 = vmatpush.msra.mxu0 0.0
    %1375 = vmatpush.msra.mxu0 0.0
    %1376 = vmatpush.msra.mxu0 0.0
    %1377 = vmatpush.msra.mxu0 0.0
    %1378 = vmatpush.msra.mxu0 0.0
    %1379 = vmatpush.msra.mxu0 %v1239
    %1380 = vmatpush.msra.mxu0 %v1235
    %1381 = vmatpush.msra.mxu0 %v1231
    %1382 = vmatpush.msra.mxu0 %v1227
    %1383 = vmatpush.msra.mxu0 %v1223
    %1384 = vmatpush.msra.mxu0 %v1219
    %1385 = vmatmul.f32.gmra.mxu0 %v1054
    %v1386 = vpop.f32.mrf.mxu0
    %v1387 = vadd.f32 %v1307, %v1386
    %1388 = vdwg.mxu0
    %1389 = vmatpush.msra.mxu0 0.0
    %1390 = vmatpush.msra.mxu0 0.0
    %1391 = vmatpush.msra.mxu0 0.0
    %1392 = vmatpush.msra.mxu0 0.0
    %1393 = vmatpush.msra.mxu0 0.0
    %1394 = vmatpush.msra.mxu0 0.0
    %1395 = vmatpush.msra.mxu0 0.0
    %1396 = vmatpush.msra.mxu0 0.0
    %1397 = vmatpush.msra.mxu0 0.0
    %1398 = vmatpush.msra.mxu0 0.0
    %1399 = vmatpush.msra.mxu0 %v1240
    %1400 = vmatpush.msra.mxu0 %v1236
    %1401 = vmatpush.msra.mxu0 %v1232
    %1402 = vmatpush.msra.mxu0 %v1228
    %1403 = vmatpush.msra.mxu0 %v1224
    %1404 = vmatpush.msra.mxu0 %v1220
    %1405 = vmatmul.f32.gmra.mxu0 %v1054
    %v1406 = vpop.f32.mrf.mxu0
    %v1407 = vadd.f32 %v1327, %v1406
    %1408 = vdwg.mxu0
    %1409 = vmatpush.msra.mxu0 0.0
    %1410 = vmatpush.msra.mxu0 0.0
    %1411 = vmatpush.msra.mxu0 0.0
    %1412 = vmatpush.msra.mxu0 0.0
    %1413 = vmatpush.msra.mxu0 0.0
    %1414 = vmatpush.msra.mxu0 0.0
    %1415 = vmatpush.msra.mxu0 0.0
    %1416 = vmatpush.msra.mxu0 0.0
    %1417 = vmatpush.msra.mxu0 0.0
    %1418 = vmatpush.msra.mxu0 0.0
    %1419 = vmatpush.msra.mxu0 %v1241
    %1420 = vmatpush.msra.mxu0 %v1237
    %1421 = vmatpush.msra.mxu0 %v1233
    %1422 = vmatpush.msra.mxu0 %v1229
    %1423 = vmatpush.msra.mxu0 %v1225
    %1424 = vmatpush.msra.mxu0 %v1221
    %1425 = vmatmul.f32.gmra.mxu0 %v1054
    %v1426 = vpop.f32.mrf.mxu0
    %v1427 = vadd.f32 %v1347, %v1426
    %1428 = vdwg.mxu0
    %v1429 = vadd.f32 %v1367, %v391
    %v1430 = vadd.f32 %v1387, %v392
    %v1431 = vadd.f32 %v1407, %v393
    %v1432 = vadd.f32 %v1427, %v394
    %v1433 = vxor.u32 %v1429, 2147483648
    %v1434 = vmul.f32 %v1433, 1.442695
    %v1435 = vpow.pop %v1434
    %v1436 = vadd.f32 %v1435, 1.0
    %v1437 = vrcp.pop %v1436
    %v1438 = vmul.f32 %v1436, %v1437
    %v1439 = vsub.f32 1.0, %v1438
    %v1440 = vmul.f32 %v1437, %v1439
    %v1441 = vadd.f32 %v1437, %v1440
    %vm1442 = vweird.f32 %v1436
    %vm1443 = vweird.f32 %v1437
    %vm1444 = vmor %vm1442, %vm1443
    %v1445 = vsel %vm1444, %v1437, %v1441
    %v1446 = vand.u32 2147483647, %v1436
    %vm1447 = vcmp.eq.f32.partialorder %v1446, 8.507059e+37
    %v1448 = vand.u32 %v1436, 2147483648
    %v1449 = vor.u32 1.1754944e-38, %v1448
    %v1450 = vsel %vm1447, %v1449, %v1445
    %v1451 = vmul.f32 1.0, %v1450
    %v1452 = vxor.u32 %v1430, 2147483648
    %v1453 = vmul.f32 %v1452, 1.442695
    %v1454 = vpow.pop %v1453
    %v1455 = vadd.f32 %v1454, 1.0
    %v1456 = vrcp.pop %v1455
    %v1457 = vmul.f32 %v1455, %v1456
    %v1458 = vsub.f32 1.0, %v1457
    %v1459 = vmul.f32 %v1456, %v1458
    %v1460 = vadd.f32 %v1456, %v1459
    %vm1461 = vweird.f32 %v1455
    %vm1462 = vweird.f32 %v1456
    %vm1463 = vmor %vm1461, %vm1462
    %v1464 = vsel %vm1463, %v1456, %v1460
    %v1465 = vand.u32 2147483647, %v1455
    %vm1466 = vcmp.eq.f32.partialorder %v1465, 8.507059e+37
    %v1467 = vand.u32 %v1455, 2147483648
    %v1468 = vor.u32 1.1754944e-38, %v1467
    %v1469 = vsel %vm1466, %v1468, %v1464
    %v1470 = vmul.f32 1.0, %v1469
    %v1471 = vtanh.pop %v1431
    %v1472 = vxor.u32 %v1432, 2147483648
    %v1473 = vmul.f32 %v1472, 1.442695
    %v1474 = vpow.pop %v1473
    %v1475 = vadd.f32 %v1474, 1.0
    %v1476 = vrcp.pop %v1475
    %v1477 = vmul.f32 %v1475, %v1476
    %v1478 = vsub.f32 1.0, %v1477
    %v1479 = vmul.f32 %v1476, %v1478
    %v1480 = vadd.f32 %v1476, %v1479
    %vm1481 = vweird.f32 %v1475
    %vm1482 = vweird.f32 %v1476
    %vm1483 = vmor %vm1481, %vm1482
    %v1484 = vsel %vm1483, %v1476, %v1480
    %v1485 = vand.u32 2147483647, %v1475
    %vm1486 = vcmp.eq.f32.partialorder %v1485, 8.507059e+37
    %v1487 = vand.u32 %v1475, 2147483648
    %v1488 = vor.u32 1.1754944e-38, %v1487
    %v1489 = vsel %vm1486, %v1488, %v1484
    %v1490 = vmul.f32 1.0, %v1489
    %v1491 = vmul.f32 %v1470, %v1019
    %v1492 = vmul.f32 %v1451, %v1471
    %v1493 = vadd.f32 %v1491, %v1492
    %v1494 = vtanh.pop %v1493
    %v1495 = vmul.f32 %v1490, %v1494
    %1496 = vst.msk [vmem:[#allocation3 + $0x2] sm:$0x3] %vm1022, %v1495
    %v1497 = vld [vmem:[#allocation2] sm:$0xc0]
    %v1498 = vld [vmem:[#allocation2 + $0x8] sm:$0xc0]
    %v1499 = vld [vmem:[#allocation2 + $0x10] sm:$0xc0]
    %v1500 = vld [vmem:[#allocation2 + $0x18] sm:$0xc0]
    %v1501 = vld [vmem:[#allocation9] sm:$0xff]
    %v1502 = vld [vmem:[#allocation9 + $0x8] sm:$0xff]
    %v1503 = vld [vmem:[#allocation9 + $0x10] sm:$0xff]
    %v1504 = vld [vmem:[#allocation9 + $0x18] sm:$0xff]
    %v1505 = vld [vmem:[#allocation9 + $0x20] sm:$0xff]
    %v1506 = vld [vmem:[#allocation9 + $0x28] sm:$0xff]
    %v1507 = vld [vmem:[#allocation9 + $0x30] sm:$0xff]
    %v1508 = vld [vmem:[#allocation9 + $0x38] sm:$0xff]
    %v1509 = vld [vmem:[#allocation9 + $0x40] sm:$0xff]
    %v1510 = vld [vmem:[#allocation9 + $0x48] sm:$0xff]
    %v1511 = vld [vmem:[#allocation9 + $0x50] sm:$0xff]
    %v1512 = vld [vmem:[#allocation9 + $0x58] sm:$0xff]
    %v1513 = vld [vmem:[#allocation9 + $0x60] sm:$0xff]
    %v1514 = vld [vmem:[#allocation9 + $0x68] sm:$0xff]
    %v1515 = vld [vmem:[#allocation9 + $0x70] sm:$0xff]
    %v1516 = vld [vmem:[#allocation9 + $0x78] sm:$0xff]
    %v1517 = vld [vmem:[#allocation9 + $0x80] sm:$0xff]
    %v1518 = vld [vmem:[#allocation9 + $0x88] sm:$0xff]
    %v1519 = vld [vmem:[#allocation9 + $0x90] sm:$0xff]
    %v1520 = vld [vmem:[#allocation9 + $0x98] sm:$0xff]
    %v1521 = vld [vmem:[#allocation9 + $0xa0] sm:$0xff]
    %v1522 = vld [vmem:[#allocation9 + $0xa8] sm:$0xff]
    %v1523 = vld [vmem:[#allocation9 + $0xb0] sm:$0xff]
    %v1524 = vld [vmem:[#allocation9 + $0xb8] sm:$0xff]
    %v1526 = vrot.slane %v1217, 4
    %v1527 = vsel %vm427, %v1526, 0
    %1529 = vmatpush.msra.mxu0 0.0
    %1530 = vmatpush.msra.mxu0 0.0
    %1531 = vmatpush.msra.mxu0 0.0
    %1532 = vmatpush.msra.mxu0 0.0
    %1533 = vmatpush.msra.mxu0 0.0
    %1534 = vmatpush.msra.mxu0 0.0
    %1535 = vmatpush.msra.mxu0 0.0
    %1536 = vmatpush.msra.mxu0 0.0
    %1537 = vmatpush.msra.mxu0 0.0
    %1538 = vmatpush.msra.mxu0 0.0
    %1539 = vmatpush.msra.mxu0 %v1521
    %1540 = vmatpush.msra.mxu0 %v1517
    %1541 = vmatpush.msra.mxu0 %v1513
    %1542 = vmatpush.msra.mxu0 %v1509
    %1543 = vmatpush.msra.mxu0 %v1505
    %1544 = vmatpush.msra.mxu0 %v1501
    %1545 = vmatmul.f32.gmra.mxu0 %v1527
    %v1546 = vpop.f32.mrf.mxu0
    %v1547 = vadd.f32 0.0, %v1546
    %1548 = vdwg.mxu0
    %1549 = vmatpush.msra.mxu0 0.0
    %1550 = vmatpush.msra.mxu0 0.0
    %1551 = vmatpush.msra.mxu0 0.0
    %1552 = vmatpush.msra.mxu0 0.0
    %1553 = vmatpush.msra.mxu0 0.0
    %1554 = vmatpush.msra.mxu0 0.0
    %1555 = vmatpush.msra.mxu0 0.0
    %1556 = vmatpush.msra.mxu0 0.0
    %1557 = vmatpush.msra.mxu0 0.0
    %1558 = vmatpush.msra.mxu0 0.0
    %1559 = vmatpush.msra.mxu0 %v1522
    %1560 = vmatpush.msra.mxu0 %v1518
    %1561 = vmatpush.msra.mxu0 %v1514
    %1562 = vmatpush.msra.mxu0 %v1510
    %1563 = vmatpush.msra.mxu0 %v1506
    %1564 = vmatpush.msra.mxu0 %v1502
    %1565 = vmatmul.f32.gmra.mxu0 %v1527
    %v1566 = vpop.f32.mrf.mxu0
    %v1567 = vadd.f32 0.0, %v1566
    %1568 = vdwg.mxu0
    %1569 = vmatpush.msra.mxu0 0.0
    %1570 = vmatpush.msra.mxu0 0.0
    %1571 = vmatpush.msra.mxu0 0.0
    %1572 = vmatpush.msra.mxu0 0.0
    %1573 = vmatpush.msra.mxu0 0.0
    %1574 = vmatpush.msra.mxu0 0.0
    %1575 = vmatpush.msra.mxu0 0.0
    %1576 = vmatpush.msra.mxu0 0.0
    %1577 = vmatpush.msra.mxu0 0.0
    %1578 = vmatpush.msra.mxu0 0.0
    %1579 = vmatpush.msra.mxu0 %v1523
    %1580 = vmatpush.msra.mxu0 %v1519
    %1581 = vmatpush.msra.mxu0 %v1515
    %1582 = vmatpush.msra.mxu0 %v1511
    %1583 = vmatpush.msra.mxu0 %v1507
    %1584 = vmatpush.msra.mxu0 %v1503
    %1585 = vmatmul.f32.gmra.mxu0 %v1527
    %v1586 = vpop.f32.mrf.mxu0
    %v1587 = vadd.f32 0.0, %v1586
    %1588 = vdwg.mxu0
    %1589 = vmatpush.msra.mxu0 0.0
    %1590 = vmatpush.msra.mxu0 0.0
    %1591 = vmatpush.msra.mxu0 0.0
    %1592 = vmatpush.msra.mxu0 0.0
    %1593 = vmatpush.msra.mxu0 0.0
    %1594 = vmatpush.msra.mxu0 0.0
    %1595 = vmatpush.msra.mxu0 0.0
    %1596 = vmatpush.msra.mxu0 0.0
    %1597 = vmatpush.msra.mxu0 0.0
    %1598 = vmatpush.msra.mxu0 0.0
    %1599 = vmatpush.msra.mxu0 %v1524
    %1600 = vmatpush.msra.mxu0 %v1520
    %1601 = vmatpush.msra.mxu0 %v1516
    %1602 = vmatpush.msra.mxu0 %v1512
    %1603 = vmatpush.msra.mxu0 %v1508
    %1604 = vmatpush.msra.mxu0 %v1504
    %1605 = vmatmul.f32.gmra.mxu0 %v1527
    %v1606 = vpop.f32.mrf.mxu0
    %v1607 = vadd.f32 0.0, %v1606
    %1608 = vdwg.mxu0
    %v1613 = vrot.slane %v1547, 2
    %v1614 = vrot.slane %v1567, 2
    %v1615 = vrot.slane %v1587, 2
    %v1616 = vrot.slane %v1607, 2
    %v1621 = vadd.f32 %v1497, %v1613
    %v1622 = vadd.f32 %v1498, %v1614
    %v1623 = vadd.f32 %v1499, %v1615
    %v1624 = vadd.f32 %v1500, %v1616
    %v1625 = vxor.u32 %v1621, 2147483648
    %v1626 = vmul.f32 %v1625, 1.442695
    %v1627 = vpow.pop %v1626
    %v1628 = vadd.f32 %v1627, 1.0
    %v1629 = vrcp.pop %v1628
    %v1630 = vmul.f32 %v1628, %v1629
    %v1631 = vsub.f32 1.0, %v1630
    %v1632 = vmul.f32 %v1629, %v1631
    %v1633 = vadd.f32 %v1629, %v1632
    %vm1634 = vweird.f32 %v1628
    %vm1635 = vweird.f32 %v1629
    %vm1636 = vmor %vm1634, %vm1635
    %v1637 = vsel %vm1636, %v1629, %v1633
    %v1638 = vand.u32 2147483647, %v1628
    %vm1639 = vcmp.eq.f32.partialorder %v1638, 8.507059e+37
    %v1640 = vand.u32 %v1628, 2147483648
    %v1641 = vor.u32 1.1754944e-38, %v1640
    %v1642 = vsel %vm1639, %v1641, %v1637
    %v1643 = vmul.f32 1.0, %v1642
    %v1644 = vxor.u32 %v1622, 2147483648
    %v1645 = vmul.f32 %v1644, 1.442695
    %v1646 = vpow.pop %v1645
    %v1647 = vadd.f32 %v1646, 1.0
    %v1648 = vrcp.pop %v1647
    %v1649 = vmul.f32 %v1647, %v1648
    %v1650 = vsub.f32 1.0, %v1649
    %v1651 = vmul.f32 %v1648, %v1650
    %v1652 = vadd.f32 %v1648, %v1651
    %vm1653 = vweird.f32 %v1647
    %vm1654 = vweird.f32 %v1648
    %vm1655 = vmor %vm1653, %vm1654
    %v1656 = vsel %vm1655, %v1648, %v1652
    %v1657 = vand.u32 2147483647, %v1647
    %vm1658 = vcmp.eq.f32.partialorder %v1657, 8.507059e+37
    %v1659 = vand.u32 %v1647, 2147483648
    %v1660 = vor.u32 1.1754944e-38, %v1659
    %v1661 = vsel %vm1658, %v1660, %v1656
    %v1662 = vmul.f32 1.0, %v1661
    %v1663 = vtanh.pop %v1623
    %v1664 = vxor.u32 %v1624, 2147483648
    %v1665 = vmul.f32 %v1664, 1.442695
    %v1666 = vpow.pop %v1665
    %v1667 = vadd.f32 %v1666, 1.0
    %v1668 = vrcp.pop %v1667
    %v1669 = vmul.f32 %v1667, %v1668
    %v1670 = vsub.f32 1.0, %v1669
    %v1671 = vmul.f32 %v1668, %v1670
    %v1672 = vadd.f32 %v1668, %v1671
    %vm1673 = vweird.f32 %v1667
    %vm1674 = vweird.f32 %v1668
    %vm1675 = vmor %vm1673, %vm1674
    %v1676 = vsel %vm1675, %v1668, %v1672
    %v1677 = vand.u32 2147483647, %v1667
    %vm1678 = vcmp.eq.f32.partialorder %v1677, 8.507059e+37
    %v1679 = vand.u32 %v1667, 2147483648
    %v1680 = vor.u32 1.1754944e-38, %v1679
    %v1681 = vsel %vm1678, %v1680, %v1676
    %v1682 = vmul.f32 1.0, %v1681
    %v1684 = vrot.slane %v1215, 6
    %v1686 = vmul.f32 %v1662, %v1684
    %v1687 = vmul.f32 %v1643, %v1663
    %v1688 = vadd.f32 %v1686, %v1687
    %v1689 = vtanh.pop %v1688
    %v1690 = vmul.f32 %v1682, %v1689
    %v1691 = vld [vmem:[#allocation11] sm:$0xff]
    %v1692 = vld [vmem:[#allocation11 + $0x8] sm:$0xff]
    %v1693 = vld [vmem:[#allocation11 + $0x10] sm:$0xff]
    %v1694 = vld [vmem:[#allocation11 + $0x18] sm:$0xff]
    %v1695 = vld [vmem:[#allocation11 + $0x20] sm:$0xff]
    %v1696 = vld [vmem:[#allocation11 + $0x28] sm:$0xff]
    %v1697 = vld [vmem:[#allocation11 + $0x30] sm:$0xff]
    %v1698 = vld [vmem:[#allocation11 + $0x38] sm:$0xff]
    %v1699 = vld [vmem:[#allocation11 + $0x40] sm:$0xff]
    %v1700 = vld [vmem:[#allocation11 + $0x48] sm:$0xff]
    %v1701 = vld [vmem:[#allocation11 + $0x50] sm:$0xff]
    %v1702 = vld [vmem:[#allocation11 + $0x58] sm:$0xff]
    %v1703 = vld [vmem:[#allocation11 + $0x60] sm:$0xff]
    %v1704 = vld [vmem:[#allocation11 + $0x68] sm:$0xff]
    %v1705 = vld [vmem:[#allocation11 + $0x70] sm:$0xff]
    %v1706 = vld [vmem:[#allocation11 + $0x78] sm:$0xff]
    %v1707 = vld [vmem:[#allocation11 + $0x80] sm:$0xff]
    %v1708 = vld [vmem:[#allocation11 + $0x88] sm:$0xff]
    %v1709 = vld [vmem:[#allocation11 + $0x90] sm:$0xff]
    %v1710 = vld [vmem:[#allocation11 + $0x98] sm:$0xff]
    %v1711 = vld [vmem:[#allocation11 + $0xa0] sm:$0xff]
    %v1712 = vld [vmem:[#allocation11 + $0xa8] sm:$0xff]
    %v1713 = vld [vmem:[#allocation11 + $0xb0] sm:$0xff]
    %v1714 = vld [vmem:[#allocation11 + $0xb8] sm:$0xff]
    %v1715 = vld [vmem:[#allocation12] sm:$0xff]
    %v1716 = vld [vmem:[#allocation12 + $0x8] sm:$0xff]
    %v1717 = vld [vmem:[#allocation12 + $0x10] sm:$0xff]
    %v1718 = vld [vmem:[#allocation12 + $0x18] sm:$0xff]
    %v1719 = vld [vmem:[#allocation12 + $0x20] sm:$0xff]
    %v1720 = vld [vmem:[#allocation12 + $0x28] sm:$0xff]
    %v1721 = vld [vmem:[#allocation12 + $0x30] sm:$0xff]
    %v1722 = vld [vmem:[#allocation12 + $0x38] sm:$0xff]
    %v1723 = vld [vmem:[#allocation12 + $0x40] sm:$0xff]
    %v1724 = vld [vmem:[#allocation12 + $0x48] sm:$0xff]
    %v1725 = vld [vmem:[#allocation12 + $0x50] sm:$0xff]
    %v1726 = vld [vmem:[#allocation12 + $0x58] sm:$0xff]
    %v1727 = vld [vmem:[#allocation12 + $0x60] sm:$0xff]
    %v1728 = vld [vmem:[#allocation12 + $0x68] sm:$0xff]
    %v1729 = vld [vmem:[#allocation12 + $0x70] sm:$0xff]
    %v1730 = vld [vmem:[#allocation12 + $0x78] sm:$0xff]
    %v1731 = vld [vmem:[#allocation12 + $0x80] sm:$0xff]
    %v1732 = vld [vmem:[#allocation12 + $0x88] sm:$0xff]
    %v1733 = vld [vmem:[#allocation12 + $0x90] sm:$0xff]
    %v1734 = vld [vmem:[#allocation12 + $0x98] sm:$0xff]
    %v1735 = vld [vmem:[#allocation12 + $0xa0] sm:$0xff]
    %v1736 = vld [vmem:[#allocation12 + $0xa8] sm:$0xff]
    %v1737 = vld [vmem:[#allocation12 + $0xb0] sm:$0xff]
    %v1738 = vld [vmem:[#allocation12 + $0xb8] sm:$0xff]
    %v1740 = vsel %vm427, %v1495, 0
    %1742 = vmatpush.msra.mxu0 0.0
    %1743 = vmatpush.msra.mxu0 0.0
    %1744 = vmatpush.msra.mxu0 0.0
    %1745 = vmatpush.msra.mxu0 0.0
    %1746 = vmatpush.msra.mxu0 0.0
    %1747 = vmatpush.msra.mxu0 0.0
    %1748 = vmatpush.msra.mxu0 0.0
    %1749 = vmatpush.msra.mxu0 0.0
    %1750 = vmatpush.msra.mxu0 0.0
    %1751 = vmatpush.msra.mxu0 0.0
    %1752 = vmatpush.msra.mxu0 %v1735
    %1753 = vmatpush.msra.mxu0 %v1731
    %1754 = vmatpush.msra.mxu0 %v1727
    %1755 = vmatpush.msra.mxu0 %v1723
    %1756 = vmatpush.msra.mxu0 %v1719
    %1757 = vmatpush.msra.mxu0 %v1715
    %1758 = vmatmul.f32.gmra.mxu0 %v1740
    %v1759 = vpop.f32.mrf.mxu0
    %v1760 = vadd.f32 0.0, %v1759
    %1761 = vdwg.mxu0
    %1762 = vmatpush.msra.mxu0 0.0
    %1763 = vmatpush.msra.mxu0 0.0
    %1764 = vmatpush.msra.mxu0 0.0
    %1765 = vmatpush.msra.mxu0 0.0
    %1766 = vmatpush.msra.mxu0 0.0
    %1767 = vmatpush.msra.mxu0 0.0
    %1768 = vmatpush.msra.mxu0 0.0
    %1769 = vmatpush.msra.mxu0 0.0
    %1770 = vmatpush.msra.mxu0 0.0
    %1771 = vmatpush.msra.mxu0 0.0
    %1772 = vmatpush.msra.mxu0 %v1736
    %1773 = vmatpush.msra.mxu0 %v1732
    %1774 = vmatpush.msra.mxu0 %v1728
    %1775 = vmatpush.msra.mxu0 %v1724
    %1776 = vmatpush.msra.mxu0 %v1720
    %1777 = vmatpush.msra.mxu0 %v1716
    %1778 = vmatmul.f32.gmra.mxu0 %v1740
    %v1779 = vpop.f32.mrf.mxu0
    %v1780 = vadd.f32 0.0, %v1779
    %1781 = vdwg.mxu0
    %1782 = vmatpush.msra.mxu0 0.0
    %1783 = vmatpush.msra.mxu0 0.0
    %1784 = vmatpush.msra.mxu0 0.0
    %1785 = vmatpush.msra.mxu0 0.0
    %1786 = vmatpush.msra.mxu0 0.0
    %1787 = vmatpush.msra.mxu0 0.0
    %1788 = vmatpush.msra.mxu0 0.0
    %1789 = vmatpush.msra.mxu0 0.0
    %1790 = vmatpush.msra.mxu0 0.0
    %1791 = vmatpush.msra.mxu0 0.0
    %1792 = vmatpush.msra.mxu0 %v1737
    %1793 = vmatpush.msra.mxu0 %v1733
    %1794 = vmatpush.msra.mxu0 %v1729
    %1795 = vmatpush.msra.mxu0 %v1725
    %1796 = vmatpush.msra.mxu0 %v1721
    %1797 = vmatpush.msra.mxu0 %v1717
    %1798 = vmatmul.f32.gmra.mxu0 %v1740
    %v1799 = vpop.f32.mrf.mxu0
    %v1800 = vadd.f32 0.0, %v1799
    %1801 = vdwg.mxu0
    %1802 = vmatpush.msra.mxu0 0.0
    %1803 = vmatpush.msra.mxu0 0.0
    %1804 = vmatpush.msra.mxu0 0.0
    %1805 = vmatpush.msra.mxu0 0.0
    %1806 = vmatpush.msra.mxu0 0.0
    %1807 = vmatpush.msra.mxu0 0.0
    %1808 = vmatpush.msra.mxu0 0.0
    %1809 = vmatpush.msra.mxu0 0.0
    %1810 = vmatpush.msra.mxu0 0.0
    %1811 = vmatpush.msra.mxu0 0.0
    %1812 = vmatpush.msra.mxu0 %v1738
    %1813 = vmatpush.msra.mxu0 %v1734
    %1814 = vmatpush.msra.mxu0 %v1730
    %1815 = vmatpush.msra.mxu0 %v1726
    %1816 = vmatpush.msra.mxu0 %v1722
    %1817 = vmatpush.msra.mxu0 %v1718
    %1818 = vmatmul.f32.gmra.mxu0 %v1740
    %v1819 = vpop.f32.mrf.mxu0
    %v1820 = vadd.f32 0.0, %v1819
    %1821 = vdwg.mxu0
    %1822 = vmatpush.msra.mxu0 0.0
    %1823 = vmatpush.msra.mxu0 0.0
    %1824 = vmatpush.msra.mxu0 0.0
    %1825 = vmatpush.msra.mxu0 0.0
    %1826 = vmatpush.msra.mxu0 0.0
    %1827 = vmatpush.msra.mxu0 0.0
    %1828 = vmatpush.msra.mxu0 0.0
    %1829 = vmatpush.msra.mxu0 0.0
    %1830 = vmatpush.msra.mxu0 0.0
    %1831 = vmatpush.msra.mxu0 0.0
    %1832 = vmatpush.msra.mxu0 %v1711
    %1833 = vmatpush.msra.mxu0 %v1707
    %1834 = vmatpush.msra.mxu0 %v1703
    %1835 = vmatpush.msra.mxu0 %v1699
    %1836 = vmatpush.msra.mxu0 %v1695
    %1837 = vmatpush.msra.mxu0 %v1691
    %1838 = vmatmul.f32.gmra.mxu0 %v1527
    %v1839 = vpop.f32.mrf.mxu0
    %v1840 = vadd.f32 %v1760, %v1839
    %1841 = vdwg.mxu0
    %1842 = vmatpush.msra.mxu0 0.0
    %1843 = vmatpush.msra.mxu0 0.0
    %1844 = vmatpush.msra.mxu0 0.0
    %1845 = vmatpush.msra.mxu0 0.0
    %1846 = vmatpush.msra.mxu0 0.0
    %1847 = vmatpush.msra.mxu0 0.0
    %1848 = vmatpush.msra.mxu0 0.0
    %1849 = vmatpush.msra.mxu0 0.0
    %1850 = vmatpush.msra.mxu0 0.0
    %1851 = vmatpush.msra.mxu0 0.0
    %1852 = vmatpush.msra.mxu0 %v1712
    %1853 = vmatpush.msra.mxu0 %v1708
    %1854 = vmatpush.msra.mxu0 %v1704
    %1855 = vmatpush.msra.mxu0 %v1700
    %1856 = vmatpush.msra.mxu0 %v1696
    %1857 = vmatpush.msra.mxu0 %v1692
    %1858 = vmatmul.f32.gmra.mxu0 %v1527
    %v1859 = vpop.f32.mrf.mxu0
    %v1860 = vadd.f32 %v1780, %v1859
    %1861 = vdwg.mxu0
    %1862 = vmatpush.msra.mxu0 0.0
    %1863 = vmatpush.msra.mxu0 0.0
    %1864 = vmatpush.msra.mxu0 0.0
    %1865 = vmatpush.msra.mxu0 0.0
    %1866 = vmatpush.msra.mxu0 0.0
    %1867 = vmatpush.msra.mxu0 0.0
    %1868 = vmatpush.msra.mxu0 0.0
    %1869 = vmatpush.msra.mxu0 0.0
    %1870 = vmatpush.msra.mxu0 0.0
    %1871 = vmatpush.msra.mxu0 0.0
    %1872 = vmatpush.msra.mxu0 %v1713
    %1873 = vmatpush.msra.mxu0 %v1709
    %1874 = vmatpush.msra.mxu0 %v1705
    %1875 = vmatpush.msra.mxu0 %v1701
    %1876 = vmatpush.msra.mxu0 %v1697
    %1877 = vmatpush.msra.mxu0 %v1693
    %1878 = vmatmul.f32.gmra.mxu0 %v1527
    %v1879 = vpop.f32.mrf.mxu0
    %v1880 = vadd.f32 %v1800, %v1879
    %1881 = vdwg.mxu0
    %1882 = vmatpush.msra.mxu0 0.0
    %1883 = vmatpush.msra.mxu0 0.0
    %1884 = vmatpush.msra.mxu0 0.0
    %1885 = vmatpush.msra.mxu0 0.0
    %1886 = vmatpush.msra.mxu0 0.0
    %1887 = vmatpush.msra.mxu0 0.0
    %1888 = vmatpush.msra.mxu0 0.0
    %1889 = vmatpush.msra.mxu0 0.0
    %1890 = vmatpush.msra.mxu0 0.0
    %1891 = vmatpush.msra.mxu0 0.0
    %1892 = vmatpush.msra.mxu0 %v1714
    %1893 = vmatpush.msra.mxu0 %v1710
    %1894 = vmatpush.msra.mxu0 %v1706
    %1895 = vmatpush.msra.mxu0 %v1702
    %1896 = vmatpush.msra.mxu0 %v1698
    %1897 = vmatpush.msra.mxu0 %v1694
    %1898 = vmatmul.f32.gmra.mxu0 %v1527
    %v1899 = vpop.f32.mrf.mxu0
    %v1900 = vadd.f32 %v1820, %v1899
    %1901 = vdwg.mxu0
    %v1902 = vadd.f32 %v1840, %v391
    %v1903 = vadd.f32 %v1860, %v392
    %v1904 = vadd.f32 %v1880, %v393
    %v1905 = vadd.f32 %v1900, %v394
    %v1906 = vxor.u32 %v1902, 2147483648
    %v1907 = vmul.f32 %v1906, 1.442695
    %v1908 = vpow.pop %v1907
    %v1909 = vadd.f32 %v1908, 1.0
    %v1910 = vrcp.pop %v1909
    %v1911 = vmul.f32 %v1909, %v1910
    %v1912 = vsub.f32 1.0, %v1911
    %v1913 = vmul.f32 %v1910, %v1912
    %v1914 = vadd.f32 %v1910, %v1913
    %vm1915 = vweird.f32 %v1909
    %vm1916 = vweird.f32 %v1910
    %vm1917 = vmor %vm1915, %vm1916
    %v1918 = vsel %vm1917, %v1910, %v1914
    %v1919 = vand.u32 2147483647, %v1909
    %vm1920 = vcmp.eq.f32.partialorder %v1919, 8.507059e+37
    %v1921 = vand.u32 %v1909, 2147483648
    %v1922 = vor.u32 1.1754944e-38, %v1921
    %v1923 = vsel %vm1920, %v1922, %v1918
    %v1924 = vmul.f32 1.0, %v1923
    %v1925 = vxor.u32 %v1903, 2147483648
    %v1926 = vmul.f32 %v1925, 1.442695
    %v1927 = vpow.pop %v1926
    %v1928 = vadd.f32 %v1927, 1.0
    %v1929 = vrcp.pop %v1928
    %v1930 = vmul.f32 %v1928, %v1929
    %v1931 = vsub.f32 1.0, %v1930
    %v1932 = vmul.f32 %v1929, %v1931
    %v1933 = vadd.f32 %v1929, %v1932
    %vm1934 = vweird.f32 %v1928
    %vm1935 = vweird.f32 %v1929
    %vm1936 = vmor %vm1934, %vm1935
    %v1937 = vsel %vm1936, %v1929, %v1933
    %v1938 = vand.u32 2147483647, %v1928
    %vm1939 = vcmp.eq.f32.partialorder %v1938, 8.507059e+37
    %v1940 = vand.u32 %v1928, 2147483648
    %v1941 = vor.u32 1.1754944e-38, %v1940
    %v1942 = vsel %vm1939, %v1941, %v1937
    %v1943 = vmul.f32 1.0, %v1942
    %v1944 = vtanh.pop %v1904
    %v1945 = vxor.u32 %v1905, 2147483648
    %v1946 = vmul.f32 %v1945, 1.442695
    %v1947 = vpow.pop %v1946
    %v1948 = vadd.f32 %v1947, 1.0
    %v1949 = vrcp.pop %v1948
    %v1950 = vmul.f32 %v1948, %v1949
    %v1951 = vsub.f32 1.0, %v1950
    %v1952 = vmul.f32 %v1949, %v1951
    %v1953 = vadd.f32 %v1949, %v1952
    %vm1954 = vweird.f32 %v1948
    %vm1955 = vweird.f32 %v1949
    %vm1956 = vmor %vm1954, %vm1955
    %v1957 = vsel %vm1956, %v1949, %v1953
    %v1958 = vand.u32 2147483647, %v1948
    %vm1959 = vcmp.eq.f32.partialorder %v1958, 8.507059e+37
    %v1960 = vand.u32 %v1948, 2147483648
    %v1961 = vor.u32 1.1754944e-38, %v1960
    %v1962 = vsel %vm1959, %v1961, %v1957
    %v1963 = vmul.f32 1.0, %v1962
    %v1964 = vmul.f32 %v1943, %v1493
    %v1965 = vmul.f32 %v1924, %v1944
    %v1966 = vadd.f32 %v1964, %v1965
    %v1967 = vtanh.pop %v1966
    %v1968 = vmul.f32 %v1963, %v1967
    %1969 = vst.msk [vmem:[#allocation3 + $0x4] sm:$0x3] %vm1022, %v1968
    %v1970 = vld [vmem:[#allocation2 + $0x20] sm:$0x3]
    %v1971 = vld [vmem:[#allocation2 + $0x28] sm:$0x3]
    %v1972 = vld [vmem:[#allocation2 + $0x30] sm:$0x3]
    %v1973 = vld [vmem:[#allocation2 + $0x38] sm:$0x3]
    %v1974 = vld [vmem:[#allocation9] sm:$0xff]
    %v1975 = vld [vmem:[#allocation9 + $0x8] sm:$0xff]
    %v1976 = vld [vmem:[#allocation9 + $0x10] sm:$0xff]
    %v1977 = vld [vmem:[#allocation9 + $0x18] sm:$0xff]
    %v1978 = vld [vmem:[#allocation9 + $0x20] sm:$0xff]
    %v1979 = vld [vmem:[#allocation9 + $0x28] sm:$0xff]
    %v1980 = vld [vmem:[#allocation9 + $0x30] sm:$0xff]
    %v1981 = vld [vmem:[#allocation9 + $0x38] sm:$0xff]
    %v1982 = vld [vmem:[#allocation9 + $0x40] sm:$0xff]
    %v1983 = vld [vmem:[#allocation9 + $0x48] sm:$0xff]
    %v1984 = vld [vmem:[#allocation9 + $0x50] sm:$0xff]
    %v1985 = vld [vmem:[#allocation9 + $0x58] sm:$0xff]
    %v1986 = vld [vmem:[#allocation9 + $0x60] sm:$0xff]
    %v1987 = vld [vmem:[#allocation9 + $0x68] sm:$0xff]
    %v1988 = vld [vmem:[#allocation9 + $0x70] sm:$0xff]
    %v1989 = vld [vmem:[#allocation9 + $0x78] sm:$0xff]
    %v1990 = vld [vmem:[#allocation9 + $0x80] sm:$0xff]
    %v1991 = vld [vmem:[#allocation9 + $0x88] sm:$0xff]
    %v1992 = vld [vmem:[#allocation9 + $0x90] sm:$0xff]
    %v1993 = vld [vmem:[#allocation9 + $0x98] sm:$0xff]
    %v1994 = vld [vmem:[#allocation9 + $0xa0] sm:$0xff]
    %v1995 = vld [vmem:[#allocation9 + $0xa8] sm:$0xff]
    %v1996 = vld [vmem:[#allocation9 + $0xb0] sm:$0xff]
    %v1997 = vld [vmem:[#allocation9 + $0xb8] sm:$0xff]
    %v1999 = vrot.slane %v1690, 6
    %v2000 = vsel %vm427, %v1999, 0
    %2002 = vmatpush.msra.mxu0 0.0
    %2003 = vmatpush.msra.mxu0 0.0
    %2004 = vmatpush.msra.mxu0 0.0
    %2005 = vmatpush.msra.mxu0 0.0
    %2006 = vmatpush.msra.mxu0 0.0
    %2007 = vmatpush.msra.mxu0 0.0
    %2008 = vmatpush.msra.mxu0 0.0
    %2009 = vmatpush.msra.mxu0 0.0
    %2010 = vmatpush.msra.mxu0 0.0
    %2011 = vmatpush.msra.mxu0 0.0
    %2012 = vmatpush.msra.mxu0 %v1994
    %2013 = vmatpush.msra.mxu0 %v1990
    %2014 = vmatpush.msra.mxu0 %v1986
    %2015 = vmatpush.msra.mxu0 %v1982
    %2016 = vmatpush.msra.mxu0 %v1978
    %2017 = vmatpush.msra.mxu0 %v1974
    %2018 = vmatmul.f32.gmra.mxu0 %v2000
    %v2019 = vpop.f32.mrf.mxu0
    %v2020 = vadd.f32 0.0, %v2019
    %2021 = vdwg.mxu0
    %2022 = vmatpush.msra.mxu0 0.0
    %2023 = vmatpush.msra.mxu0 0.0
    %2024 = vmatpush.msra.mxu0 0.0
    %2025 = vmatpush.msra.mxu0 0.0
    %2026 = vmatpush.msra.mxu0 0.0
    %2027 = vmatpush.msra.mxu0 0.0
    %2028 = vmatpush.msra.mxu0 0.0
    %2029 = vmatpush.msra.mxu0 0.0
    %2030 = vmatpush.msra.mxu0 0.0
    %2031 = vmatpush.msra.mxu0 0.0
    %2032 = vmatpush.msra.mxu0 %v1995
    %2033 = vmatpush.msra.mxu0 %v1991
    %2034 = vmatpush.msra.mxu0 %v1987
    %2035 = vmatpush.msra.mxu0 %v1983
    %2036 = vmatpush.msra.mxu0 %v1979
    %2037 = vmatpush.msra.mxu0 %v1975
    %2038 = vmatmul.f32.gmra.mxu0 %v2000
    %v2039 = vpop.f32.mrf.mxu0
    %v2040 = vadd.f32 0.0, %v2039
    %2041 = vdwg.mxu0
    %2042 = vmatpush.msra.mxu0 0.0
    %2043 = vmatpush.msra.mxu0 0.0
    %2044 = vmatpush.msra.mxu0 0.0
    %2045 = vmatpush.msra.mxu0 0.0
    %2046 = vmatpush.msra.mxu0 0.0
    %2047 = vmatpush.msra.mxu0 0.0
    %2048 = vmatpush.msra.mxu0 0.0
    %2049 = vmatpush.msra.mxu0 0.0
    %2050 = vmatpush.msra.mxu0 0.0
    %2051 = vmatpush.msra.mxu0 0.0
    %2052 = vmatpush.msra.mxu0 %v1996
    %2053 = vmatpush.msra.mxu0 %v1992
    %2054 = vmatpush.msra.mxu0 %v1988
    %2055 = vmatpush.msra.mxu0 %v1984
    %2056 = vmatpush.msra.mxu0 %v1980
    %2057 = vmatpush.msra.mxu0 %v1976
    %2058 = vmatmul.f32.gmra.mxu0 %v2000
    %v2059 = vpop.f32.mrf.mxu0
    %v2060 = vadd.f32 0.0, %v2059
    %2061 = vdwg.mxu0
    %2062 = vmatpush.msra.mxu0 0.0
    %2063 = vmatpush.msra.mxu0 0.0
    %2064 = vmatpush.msra.mxu0 0.0
    %2065 = vmatpush.msra.mxu0 0.0
    %2066 = vmatpush.msra.mxu0 0.0
    %2067 = vmatpush.msra.mxu0 0.0
    %2068 = vmatpush.msra.mxu0 0.0
    %2069 = vmatpush.msra.mxu0 0.0
    %2070 = vmatpush.msra.mxu0 0.0
    %2071 = vmatpush.msra.mxu0 0.0
    %2072 = vmatpush.msra.mxu0 %v1997
    %2073 = vmatpush.msra.mxu0 %v1993
    %2074 = vmatpush.msra.mxu0 %v1989
    %2075 = vmatpush.msra.mxu0 %v1985
    %2076 = vmatpush.msra.mxu0 %v1981
    %2077 = vmatpush.msra.mxu0 %v1977
    %2078 = vmatmul.f32.gmra.mxu0 %v2000
    %v2079 = vpop.f32.mrf.mxu0
    %v2080 = vadd.f32 0.0, %v2079
    %2081 = vdwg.mxu0
    %v2082 = vadd.f32 %v1970, %v2020
    %v2083 = vadd.f32 %v1971, %v2040
    %v2084 = vadd.f32 %v1972, %v2060
    %v2085 = vadd.f32 %v1973, %v2080
    %v2086 = vxor.u32 %v2082, 2147483648
    %v2087 = vmul.f32 %v2086, 1.442695
    %v2088 = vpow.pop %v2087
    %v2089 = vadd.f32 %v2088, 1.0
    %v2090 = vrcp.pop %v2089
    %v2091 = vmul.f32 %v2089, %v2090
    %v2092 = vsub.f32 1.0, %v2091
    %v2093 = vmul.f32 %v2090, %v2092
    %v2094 = vadd.f32 %v2090, %v2093
    %vm2095 = vweird.f32 %v2089
    %vm2096 = vweird.f32 %v2090
    %vm2097 = vmor %vm2095, %vm2096
    %v2098 = vsel %vm2097, %v2090, %v2094
    %v2099 = vand.u32 2147483647, %v2089
    %vm2100 = vcmp.eq.f32.partialorder %v2099, 8.507059e+37
    %v2101 = vand.u32 %v2089, 2147483648
    %v2102 = vor.u32 1.1754944e-38, %v2101
    %v2103 = vsel %vm2100, %v2102, %v2098
    %v2104 = vmul.f32 1.0, %v2103
    %v2105 = vxor.u32 %v2083, 2147483648
    %v2106 = vmul.f32 %v2105, 1.442695
    %v2107 = vpow.pop %v2106
    %v2108 = vadd.f32 %v2107, 1.0
    %v2109 = vrcp.pop %v2108
    %v2110 = vmul.f32 %v2108, %v2109
    %v2111 = vsub.f32 1.0, %v2110
    %v2112 = vmul.f32 %v2109, %v2111
    %v2113 = vadd.f32 %v2109, %v2112
    %vm2114 = vweird.f32 %v2108
    %vm2115 = vweird.f32 %v2109
    %vm2116 = vmor %vm2114, %vm2115
    %v2117 = vsel %vm2116, %v2109, %v2113
    %v2118 = vand.u32 2147483647, %v2108
    %vm2119 = vcmp.eq.f32.partialorder %v2118, 8.507059e+37
    %v2120 = vand.u32 %v2108, 2147483648
    %v2121 = vor.u32 1.1754944e-38, %v2120
    %v2122 = vsel %vm2119, %v2121, %v2117
    %v2123 = vmul.f32 1.0, %v2122
    %v2124 = vtanh.pop %v2084
    %v2125 = vxor.u32 %v2085, 2147483648
    %v2126 = vmul.f32 %v2125, 1.442695
    %v2127 = vpow.pop %v2126
    %v2128 = vadd.f32 %v2127, 1.0
    %v2129 = vrcp.pop %v2128
    %v2130 = vmul.f32 %v2128, %v2129
    %v2131 = vsub.f32 1.0, %v2130
    %v2132 = vmul.f32 %v2129, %v2131
    %v2133 = vadd.f32 %v2129, %v2132
    %vm2134 = vweird.f32 %v2128
    %vm2135 = vweird.f32 %v2129
    %vm2136 = vmor %vm2134, %vm2135
    %v2137 = vsel %vm2136, %v2129, %v2133
    %v2138 = vand.u32 2147483647, %v2128
    %vm2139 = vcmp.eq.f32.partialorder %v2138, 8.507059e+37
    %v2140 = vand.u32 %v2128, 2147483648
    %v2141 = vor.u32 1.1754944e-38, %v2140
    %v2142 = vsel %vm2139, %v2141, %v2137
    %v2143 = vmul.f32 1.0, %v2142
    %v2145 = vrot.slane %v1688, 6
    %v2147 = vmul.f32 %v2123, %v2145
    %v2148 = vmul.f32 %v2104, %v2124
    %v2149 = vadd.f32 %v2147, %v2148
    %v2150 = vtanh.pop %v2149
    %v2151 = vmul.f32 %v2143, %v2150
    %v2152 = vld [vmem:[#allocation11] sm:$0xff]
    %v2153 = vld [vmem:[#allocation11 + $0x8] sm:$0xff]
    %v2154 = vld [vmem:[#allocation11 + $0x10] sm:$0xff]
    %v2155 = vld [vmem:[#allocation11 + $0x18] sm:$0xff]
    %v2156 = vld [vmem:[#allocation11 + $0x20] sm:$0xff]
    %v2157 = vld [vmem:[#allocation11 + $0x28] sm:$0xff]
    %v2158 = vld [vmem:[#allocation11 + $0x30] sm:$0xff]
    %v2159 = vld [vmem:[#allocation11 + $0x38] sm:$0xff]
    %v2160 = vld [vmem:[#allocation11 + $0x40] sm:$0xff]
    %v2161 = vld [vmem:[#allocation11 + $0x48] sm:$0xff]
    %v2162 = vld [vmem:[#allocation11 + $0x50] sm:$0xff]
    %v2163 = vld [vmem:[#allocation11 + $0x58] sm:$0xff]
    %v2164 = vld [vmem:[#allocation11 + $0x60] sm:$0xff]
    %v2165 = vld [vmem:[#allocation11 + $0x68] sm:$0xff]
    %v2166 = vld [vmem:[#allocation11 + $0x70] sm:$0xff]
    %v2167 = vld [vmem:[#allocation11 + $0x78] sm:$0xff]
    %v2168 = vld [vmem:[#allocation11 + $0x80] sm:$0xff]
    %v2169 = vld [vmem:[#allocation11 + $0x88] sm:$0xff]
    %v2170 = vld [vmem:[#allocation11 + $0x90] sm:$0xff]
    %v2171 = vld [vmem:[#allocation11 + $0x98] sm:$0xff]
    %v2172 = vld [vmem:[#allocation11 + $0xa0] sm:$0xff]
    %v2173 = vld [vmem:[#allocation11 + $0xa8] sm:$0xff]
    %v2174 = vld [vmem:[#allocation11 + $0xb0] sm:$0xff]
    %v2175 = vld [vmem:[#allocation11 + $0xb8] sm:$0xff]
    %v2176 = vld [vmem:[#allocation12] sm:$0xff]
    %v2177 = vld [vmem:[#allocation12 + $0x8] sm:$0xff]
    %v2178 = vld [vmem:[#allocation12 + $0x10] sm:$0xff]
    %v2179 = vld [vmem:[#allocation12 + $0x18] sm:$0xff]
    %v2180 = vld [vmem:[#allocation12 + $0x20] sm:$0xff]
    %v2181 = vld [vmem:[#allocation12 + $0x28] sm:$0xff]
    %v2182 = vld [vmem:[#allocation12 + $0x30] sm:$0xff]
    %v2183 = vld [vmem:[#allocation12 + $0x38] sm:$0xff]
    %v2184 = vld [vmem:[#allocation12 + $0x40] sm:$0xff]
    %v2185 = vld [vmem:[#allocation12 + $0x48] sm:$0xff]
    %v2186 = vld [vmem:[#allocation12 + $0x50] sm:$0xff]
    %v2187 = vld [vmem:[#allocation12 + $0x58] sm:$0xff]
    %v2188 = vld [vmem:[#allocation12 + $0x60] sm:$0xff]
    %v2189 = vld [vmem:[#allocation12 + $0x68] sm:$0xff]
    %v2190 = vld [vmem:[#allocation12 + $0x70] sm:$0xff]
    %v2191 = vld [vmem:[#allocation12 + $0x78] sm:$0xff]
    %v2192 = vld [vmem:[#allocation12 + $0x80] sm:$0xff]
    %v2193 = vld [vmem:[#allocation12 + $0x88] sm:$0xff]
    %v2194 = vld [vmem:[#allocation12 + $0x90] sm:$0xff]
    %v2195 = vld [vmem:[#allocation12 + $0x98] sm:$0xff]
    %v2196 = vld [vmem:[#allocation12 + $0xa0] sm:$0xff]
    %v2197 = vld [vmem:[#allocation12 + $0xa8] sm:$0xff]
    %v2198 = vld [vmem:[#allocation12 + $0xb0] sm:$0xff]
    %v2199 = vld [vmem:[#allocation12 + $0xb8] sm:$0xff]
    %v2201 = vsel %vm427, %v1968, 0
    %2203 = vmatpush.msra.mxu0 0.0
    %2204 = vmatpush.msra.mxu0 0.0
    %2205 = vmatpush.msra.mxu0 0.0
    %2206 = vmatpush.msra.mxu0 0.0
    %2207 = vmatpush.msra.mxu0 0.0
    %2208 = vmatpush.msra.mxu0 0.0
    %2209 = vmatpush.msra.mxu0 0.0
    %2210 = vmatpush.msra.mxu0 0.0
    %2211 = vmatpush.msra.mxu0 0.0
    %2212 = vmatpush.msra.mxu0 0.0
    %2213 = vmatpush.msra.mxu0 %v2196
    %2214 = vmatpush.msra.mxu0 %v2192
    %2215 = vmatpush.msra.mxu0 %v2188
    %2216 = vmatpush.msra.mxu0 %v2184
    %2217 = vmatpush.msra.mxu0 %v2180
    %2218 = vmatpush.msra.mxu0 %v2176
    %2219 = vmatmul.f32.gmra.mxu0 %v2201
    %v2220 = vpop.f32.mrf.mxu0
    %v2221 = vadd.f32 0.0, %v2220
    %2222 = vdwg.mxu0
    %2223 = vmatpush.msra.mxu0 0.0
    %2224 = vmatpush.msra.mxu0 0.0
    %2225 = vmatpush.msra.mxu0 0.0
    %2226 = vmatpush.msra.mxu0 0.0
    %2227 = vmatpush.msra.mxu0 0.0
    %2228 = vmatpush.msra.mxu0 0.0
    %2229 = vmatpush.msra.mxu0 0.0
    %2230 = vmatpush.msra.mxu0 0.0
    %2231 = vmatpush.msra.mxu0 0.0
    %2232 = vmatpush.msra.mxu0 0.0
    %2233 = vmatpush.msra.mxu0 %v2197
    %2234 = vmatpush.msra.mxu0 %v2193
    %2235 = vmatpush.msra.mxu0 %v2189
    %2236 = vmatpush.msra.mxu0 %v2185
    %2237 = vmatpush.msra.mxu0 %v2181
    %2238 = vmatpush.msra.mxu0 %v2177
    %2239 = vmatmul.f32.gmra.mxu0 %v2201
    %v2240 = vpop.f32.mrf.mxu0
    %v2241 = vadd.f32 0.0, %v2240
    %2242 = vdwg.mxu0
    %2243 = vmatpush.msra.mxu0 0.0
    %2244 = vmatpush.msra.mxu0 0.0
    %2245 = vmatpush.msra.mxu0 0.0
    %2246 = vmatpush.msra.mxu0 0.0
    %2247 = vmatpush.msra.mxu0 0.0
    %2248 = vmatpush.msra.mxu0 0.0
    %2249 = vmatpush.msra.mxu0 0.0
    %2250 = vmatpush.msra.mxu0 0.0
    %2251 = vmatpush.msra.mxu0 0.0
    %2252 = vmatpush.msra.mxu0 0.0
    %2253 = vmatpush.msra.mxu0 %v2198
    %2254 = vmatpush.msra.mxu0 %v2194
    %2255 = vmatpush.msra.mxu0 %v2190
    %2256 = vmatpush.msra.mxu0 %v2186
    %2257 = vmatpush.msra.mxu0 %v2182
    %2258 = vmatpush.msra.mxu0 %v2178
    %2259 = vmatmul.f32.gmra.mxu0 %v2201
    %v2260 = vpop.f32.mrf.mxu0
    %v2261 = vadd.f32 0.0, %v2260
    %2262 = vdwg.mxu0
    %2263 = vmatpush.msra.mxu0 0.0
    %2264 = vmatpush.msra.mxu0 0.0
    %2265 = vmatpush.msra.mxu0 0.0
    %2266 = vmatpush.msra.mxu0 0.0
    %2267 = vmatpush.msra.mxu0 0.0
    %2268 = vmatpush.msra.mxu0 0.0
    %2269 = vmatpush.msra.mxu0 0.0
    %2270 = vmatpush.msra.mxu0 0.0
    %2271 = vmatpush.msra.mxu0 0.0
    %2272 = vmatpush.msra.mxu0 0.0
    %2273 = vmatpush.msra.mxu0 %v2199
    %2274 = vmatpush.msra.mxu0 %v2195
    %2275 = vmatpush.msra.mxu0 %v2191
    %2276 = vmatpush.msra.mxu0 %v2187
    %2277 = vmatpush.msra.mxu0 %v2183
    %2278 = vmatpush.msra.mxu0 %v2179
    %2279 = vmatmul.f32.gmra.mxu0 %v2201
    %v2280 = vpop.f32.mrf.mxu0
    %v2281 = vadd.f32 0.0, %v2280
    %2282 = vdwg.mxu0
    %2283 = vmatpush.msra.mxu0 0.0
    %2284 = vmatpush.msra.mxu0 0.0
    %2285 = vmatpush.msra.mxu0 0.0
    %2286 = vmatpush.msra.mxu0 0.0
    %2287 = vmatpush.msra.mxu0 0.0
    %2288 = vmatpush.msra.mxu0 0.0
    %2289 = vmatpush.msra.mxu0 0.0
    %2290 = vmatpush.msra.mxu0 0.0
    %2291 = vmatpush.msra.mxu0 0.0
    %2292 = vmatpush.msra.mxu0 0.0
    %2293 = vmatpush.msra.mxu0 %v2172
    %2294 = vmatpush.msra.mxu0 %v2168
    %2295 = vmatpush.msra.mxu0 %v2164
    %2296 = vmatpush.msra.mxu0 %v2160
    %2297 = vmatpush.msra.mxu0 %v2156
    %2298 = vmatpush.msra.mxu0 %v2152
    %2299 = vmatmul.f32.gmra.mxu0 %v2000
    %v2300 = vpop.f32.mrf.mxu0
    %v2301 = vadd.f32 %v2221, %v2300
    %2302 = vdwg.mxu0
    %2303 = vmatpush.msra.mxu0 0.0
    %2304 = vmatpush.msra.mxu0 0.0
    %2305 = vmatpush.msra.mxu0 0.0
    %2306 = vmatpush.msra.mxu0 0.0
    %2307 = vmatpush.msra.mxu0 0.0
    %2308 = vmatpush.msra.mxu0 0.0
    %2309 = vmatpush.msra.mxu0 0.0
    %2310 = vmatpush.msra.mxu0 0.0
    %2311 = vmatpush.msra.mxu0 0.0
    %2312 = vmatpush.msra.mxu0 0.0
    %2313 = vmatpush.msra.mxu0 %v2173
    %2314 = vmatpush.msra.mxu0 %v2169
    %2315 = vmatpush.msra.mxu0 %v2165
    %2316 = vmatpush.msra.mxu0 %v2161
    %2317 = vmatpush.msra.mxu0 %v2157
    %2318 = vmatpush.msra.mxu0 %v2153
    %2319 = vmatmul.f32.gmra.mxu0 %v2000
    %v2320 = vpop.f32.mrf.mxu0
    %v2321 = vadd.f32 %v2241, %v2320
    %2322 = vdwg.mxu0
    %2323 = vmatpush.msra.mxu0 0.0
    %2324 = vmatpush.msra.mxu0 0.0
    %2325 = vmatpush.msra.mxu0 0.0
    %2326 = vmatpush.msra.mxu0 0.0
    %2327 = vmatpush.msra.mxu0 0.0
    %2328 = vmatpush.msra.mxu0 0.0
    %2329 = vmatpush.msra.mxu0 0.0
    %2330 = vmatpush.msra.mxu0 0.0
    %2331 = vmatpush.msra.mxu0 0.0
    %2332 = vmatpush.msra.mxu0 0.0
    %2333 = vmatpush.msra.mxu0 %v2174
    %2334 = vmatpush.msra.mxu0 %v2170
    %2335 = vmatpush.msra.mxu0 %v2166
    %2336 = vmatpush.msra.mxu0 %v2162
    %2337 = vmatpush.msra.mxu0 %v2158
    %2338 = vmatpush.msra.mxu0 %v2154
    %2339 = vmatmul.f32.gmra.mxu0 %v2000
    %v2340 = vpop.f32.mrf.mxu0
    %v2341 = vadd.f32 %v2261, %v2340
    %2342 = vdwg.mxu0
    %2343 = vmatpush.msra.mxu0 0.0
    %2344 = vmatpush.msra.mxu0 0.0
    %2345 = vmatpush.msra.mxu0 0.0
    %2346 = vmatpush.msra.mxu0 0.0
    %2347 = vmatpush.msra.mxu0 0.0
    %2348 = vmatpush.msra.mxu0 0.0
    %2349 = vmatpush.msra.mxu0 0.0
    %2350 = vmatpush.msra.mxu0 0.0
    %2351 = vmatpush.msra.mxu0 0.0
    %2352 = vmatpush.msra.mxu0 0.0
    %2353 = vmatpush.msra.mxu0 %v2175
    %2354 = vmatpush.msra.mxu0 %v2171
    %2355 = vmatpush.msra.mxu0 %v2167
    %2356 = vmatpush.msra.mxu0 %v2163
    %2357 = vmatpush.msra.mxu0 %v2159
    %2358 = vmatpush.msra.mxu0 %v2155
    %2359 = vmatmul.f32.gmra.mxu0 %v2000
    %v2360 = vpop.f32.mrf.mxu0
    %v2361 = vadd.f32 %v2281, %v2360
    %2362 = vdwg.mxu0
    %v2363 = vadd.f32 %v2301, %v391
    %v2364 = vadd.f32 %v2321, %v392
    %v2365 = vadd.f32 %v2341, %v393
    %v2366 = vadd.f32 %v2361, %v394
    %v2367 = vxor.u32 %v2363, 2147483648
    %v2368 = vmul.f32 %v2367, 1.442695
    %v2369 = vpow.pop %v2368
    %v2370 = vadd.f32 %v2369, 1.0
    %v2371 = vrcp.pop %v2370
    %v2372 = vmul.f32 %v2370, %v2371
    %v2373 = vsub.f32 1.0, %v2372
    %v2374 = vmul.f32 %v2371, %v2373
    %v2375 = vadd.f32 %v2371, %v2374
    %vm2376 = vweird.f32 %v2370
    %vm2377 = vweird.f32 %v2371
    %vm2378 = vmor %vm2376, %vm2377
    %v2379 = vsel %vm2378, %v2371, %v2375
    %v2380 = vand.u32 2147483647, %v2370
    %vm2381 = vcmp.eq.f32.partialorder %v2380, 8.507059e+37
    %v2382 = vand.u32 %v2370, 2147483648
    %v2383 = vor.u32 1.1754944e-38, %v2382
    %v2384 = vsel %vm2381, %v2383, %v2379
    %v2385 = vmul.f32 1.0, %v2384
    %v2386 = vxor.u32 %v2364, 2147483648
    %v2387 = vmul.f32 %v2386, 1.442695
    %v2388 = vpow.pop %v2387
    %v2389 = vadd.f32 %v2388, 1.0
    %v2390 = vrcp.pop %v2389
    %v2391 = vmul.f32 %v2389, %v2390
    %v2392 = vsub.f32 1.0, %v2391
    %v2393 = vmul.f32 %v2390, %v2392
    %v2394 = vadd.f32 %v2390, %v2393
    %vm2395 = vweird.f32 %v2389
    %vm2396 = vweird.f32 %v2390
    %vm2397 = vmor %vm2395, %vm2396
    %v2398 = vsel %vm2397, %v2390, %v2394
    %v2399 = vand.u32 2147483647, %v2389
    %vm2400 = vcmp.eq.f32.partialorder %v2399, 8.507059e+37
    %v2401 = vand.u32 %v2389, 2147483648
    %v2402 = vor.u32 1.1754944e-38, %v2401
    %v2403 = vsel %vm2400, %v2402, %v2398
    %v2404 = vmul.f32 1.0, %v2403
    %v2405 = vtanh.pop %v2365
    %v2406 = vxor.u32 %v2366, 2147483648
    %v2407 = vmul.f32 %v2406, 1.442695
    %v2408 = vpow.pop %v2407
    %v2409 = vadd.f32 %v2408, 1.0
    %v2410 = vrcp.pop %v2409
    %v2411 = vmul.f32 %v2409, %v2410
    %v2412 = vsub.f32 1.0, %v2411
    %v2413 = vmul.f32 %v2410, %v2412
    %v2414 = vadd.f32 %v2410, %v2413
    %vm2415 = vweird.f32 %v2409
    %vm2416 = vweird.f32 %v2410
    %vm2417 = vmor %vm2415, %vm2416
    %v2418 = vsel %vm2417, %v2410, %v2414
    %v2419 = vand.u32 2147483647, %v2409
    %vm2420 = vcmp.eq.f32.partialorder %v2419, 8.507059e+37
    %v2421 = vand.u32 %v2409, 2147483648
    %v2422 = vor.u32 1.1754944e-38, %v2421
    %v2423 = vsel %vm2420, %v2422, %v2418
    %v2424 = vmul.f32 1.0, %v2423
    %v2425 = vmul.f32 %v2404, %v1966
    %v2426 = vmul.f32 %v2385, %v2405
    %v2427 = vadd.f32 %v2425, %v2426
    %v2428 = vtanh.pop %v2427
    %v2429 = vmul.f32 %v2424, %v2428
    %2430 = vst.msk [vmem:[#allocation3 + $0x6] sm:$0x3] %vm1022, %v2429
    %v2431 = vld [vmem:[#allocation2 + $0x20] sm:$0xc]
    %v2432 = vld [vmem:[#allocation2 + $0x28] sm:$0xc]
    %v2433 = vld [vmem:[#allocation2 + $0x30] sm:$0xc]
    %v2434 = vld [vmem:[#allocation2 + $0x38] sm:$0xc]
    %v2435 = vld [vmem:[#allocation9] sm:$0xff]
    %v2436 = vld [vmem:[#allocation9 + $0x8] sm:$0xff]
    %v2437 = vld [vmem:[#allocation9 + $0x10] sm:$0xff]
    %v2438 = vld [vmem:[#allocation9 + $0x18] sm:$0xff]
    %v2439 = vld [vmem:[#allocation9 + $0x20] sm:$0xff]
    %v2440 = vld [vmem:[#allocation9 + $0x28] sm:$0xff]
    %v2441 = vld [vmem:[#allocation9 + $0x30] sm:$0xff]
    %v2442 = vld [vmem:[#allocation9 + $0x38] sm:$0xff]
    %v2443 = vld [vmem:[#allocation9 + $0x40] sm:$0xff]
    %v2444 = vld [vmem:[#allocation9 + $0x48] sm:$0xff]
    %v2445 = vld [vmem:[#allocation9 + $0x50] sm:$0xff]
    %v2446 = vld [vmem:[#allocation9 + $0x58] sm:$0xff]
    %v2447 = vld [vmem:[#allocation9 + $0x60] sm:$0xff]
    %v2448 = vld [vmem:[#allocation9 + $0x68] sm:$0xff]
    %v2449 = vld [vmem:[#allocation9 + $0x70] sm:$0xff]
    %v2450 = vld [vmem:[#allocation9 + $0x78] sm:$0xff]
    %v2451 = vld [vmem:[#allocation9 + $0x80] sm:$0xff]
    %v2452 = vld [vmem:[#allocation9 + $0x88] sm:$0xff]
    %v2453 = vld [vmem:[#allocation9 + $0x90] sm:$0xff]
    %v2454 = vld [vmem:[#allocation9 + $0x98] sm:$0xff]
    %v2455 = vld [vmem:[#allocation9 + $0xa0] sm:$0xff]
    %v2456 = vld [vmem:[#allocation9 + $0xa8] sm:$0xff]
    %v2457 = vld [vmem:[#allocation9 + $0xb0] sm:$0xff]
    %v2458 = vld [vmem:[#allocation9 + $0xb8] sm:$0xff]
    %v2460 = vsel %vm427, %v2151, 0
    %2462 = vmatpush.msra.mxu0 0.0
    %2463 = vmatpush.msra.mxu0 0.0
    %2464 = vmatpush.msra.mxu0 0.0
    %2465 = vmatpush.msra.mxu0 0.0
    %2466 = vmatpush.msra.mxu0 0.0
    %2467 = vmatpush.msra.mxu0 0.0
    %2468 = vmatpush.msra.mxu0 0.0
    %2469 = vmatpush.msra.mxu0 0.0
    %2470 = vmatpush.msra.mxu0 0.0
    %2471 = vmatpush.msra.mxu0 0.0
    %2472 = vmatpush.msra.mxu0 %v2455
    %2473 = vmatpush.msra.mxu0 %v2451
    %2474 = vmatpush.msra.mxu0 %v2447
    %2475 = vmatpush.msra.mxu0 %v2443
    %2476 = vmatpush.msra.mxu0 %v2439
    %2477 = vmatpush.msra.mxu0 %v2435
    %2478 = vmatmul.f32.gmra.mxu0 %v2460
    %v2479 = vpop.f32.mrf.mxu0
    %v2480 = vadd.f32 0.0, %v2479
    %2481 = vdwg.mxu0
    %2482 = vmatpush.msra.mxu0 0.0
    %2483 = vmatpush.msra.mxu0 0.0
    %2484 = vmatpush.msra.mxu0 0.0
    %2485 = vmatpush.msra.mxu0 0.0
    %2486 = vmatpush.msra.mxu0 0.0
    %2487 = vmatpush.msra.mxu0 0.0
    %2488 = vmatpush.msra.mxu0 0.0
    %2489 = vmatpush.msra.mxu0 0.0
    %2490 = vmatpush.msra.mxu0 0.0
    %2491 = vmatpush.msra.mxu0 0.0
    %2492 = vmatpush.msra.mxu0 %v2456
    %2493 = vmatpush.msra.mxu0 %v2452
    %2494 = vmatpush.msra.mxu0 %v2448
    %2495 = vmatpush.msra.mxu0 %v2444
    %2496 = vmatpush.msra.mxu0 %v2440
    %2497 = vmatpush.msra.mxu0 %v2436
    %2498 = vmatmul.f32.gmra.mxu0 %v2460
    %v2499 = vpop.f32.mrf.mxu0
    %v2500 = vadd.f32 0.0, %v2499
    %2501 = vdwg.mxu0
    %2502 = vmatpush.msra.mxu0 0.0
    %2503 = vmatpush.msra.mxu0 0.0
    %2504 = vmatpush.msra.mxu0 0.0
    %2505 = vmatpush.msra.mxu0 0.0
    %2506 = vmatpush.msra.mxu0 0.0
    %2507 = vmatpush.msra.mxu0 0.0
    %2508 = vmatpush.msra.mxu0 0.0
    %2509 = vmatpush.msra.mxu0 0.0
    %2510 = vmatpush.msra.mxu0 0.0
    %2511 = vmatpush.msra.mxu0 0.0
    %2512 = vmatpush.msra.mxu0 %v2457
    %2513 = vmatpush.msra.mxu0 %v2453
    %2514 = vmatpush.msra.mxu0 %v2449
    %2515 = vmatpush.msra.mxu0 %v2445
    %2516 = vmatpush.msra.mxu0 %v2441
    %2517 = vmatpush.msra.mxu0 %v2437
    %2518 = vmatmul.f32.gmra.mxu0 %v2460
    %v2519 = vpop.f32.mrf.mxu0
    %v2520 = vadd.f32 0.0, %v2519
    %2521 = vdwg.mxu0
    %2522 = vmatpush.msra.mxu0 0.0
    %2523 = vmatpush.msra.mxu0 0.0
    %2524 = vmatpush.msra.mxu0 0.0
    %2525 = vmatpush.msra.mxu0 0.0
    %2526 = vmatpush.msra.mxu0 0.0
    %2527 = vmatpush.msra.mxu0 0.0
    %2528 = vmatpush.msra.mxu0 0.0
    %2529 = vmatpush.msra.mxu0 0.0
    %2530 = vmatpush.msra.mxu0 0.0
    %2531 = vmatpush.msra.mxu0 0.0
    %2532 = vmatpush.msra.mxu0 %v2458
    %2533 = vmatpush.msra.mxu0 %v2454
    %2534 = vmatpush.msra.mxu0 %v2450
    %2535 = vmatpush.msra.mxu0 %v2446
    %2536 = vmatpush.msra.mxu0 %v2442
    %2537 = vmatpush.msra.mxu0 %v2438
    %2538 = vmatmul.f32.gmra.mxu0 %v2460
    %v2539 = vpop.f32.mrf.mxu0
    %v2540 = vadd.f32 0.0, %v2539
    %2541 = vdwg.mxu0
    %v2546 = vrot.slane %v2480, 6
    %v2547 = vrot.slane %v2500, 6
    %v2548 = vrot.slane %v2520, 6
    %v2549 = vrot.slane %v2540, 6
    %v2554 = vadd.f32 %v2431, %v2546
    %v2555 = vadd.f32 %v2432, %v2547
    %v2556 = vadd.f32 %v2433, %v2548
    %v2557 = vadd.f32 %v2434, %v2549
    %v2558 = vxor.u32 %v2554, 2147483648
    %v2559 = vmul.f32 %v2558, 1.442695
    %v2560 = vpow.pop %v2559
    %v2561 = vadd.f32 %v2560, 1.0
    %v2562 = vrcp.pop %v2561
    %v2563 = vmul.f32 %v2561, %v2562
    %v2564 = vsub.f32 1.0, %v2563
    %v2565 = vmul.f32 %v2562, %v2564
    %v2566 = vadd.f32 %v2562, %v2565
    %vm2567 = vweird.f32 %v2561
    %vm2568 = vweird.f32 %v2562
    %vm2569 = vmor %vm2567, %vm2568
    %v2570 = vsel %vm2569, %v2562, %v2566
    %v2571 = vand.u32 2147483647, %v2561
    %vm2572 = vcmp.eq.f32.partialorder %v2571, 8.507059e+37
    %v2573 = vand.u32 %v2561, 2147483648
    %v2574 = vor.u32 1.1754944e-38, %v2573
    %v2575 = vsel %vm2572, %v2574, %v2570
    %v2576 = vmul.f32 1.0, %v2575
    %v2577 = vxor.u32 %v2555, 2147483648
    %v2578 = vmul.f32 %v2577, 1.442695
    %v2579 = vpow.pop %v2578
    %v2580 = vadd.f32 %v2579, 1.0
    %v2581 = vrcp.pop %v2580
    %v2582 = vmul.f32 %v2580, %v2581
    %v2583 = vsub.f32 1.0, %v2582
    %v2584 = vmul.f32 %v2581, %v2583
    %v2585 = vadd.f32 %v2581, %v2584
    %vm2586 = vweird.f32 %v2580
    %vm2587 = vweird.f32 %v2581
    %vm2588 = vmor %vm2586, %vm2587
    %v2589 = vsel %vm2588, %v2581, %v2585
    %v2590 = vand.u32 2147483647, %v2580
    %vm2591 = vcmp.eq.f32.partialorder %v2590, 8.507059e+37
    %v2592 = vand.u32 %v2580, 2147483648
    %v2593 = vor.u32 1.1754944e-38, %v2592
    %v2594 = vsel %vm2591, %v2593, %v2589
    %v2595 = vmul.f32 1.0, %v2594
    %v2596 = vtanh.pop %v2556
    %v2597 = vxor.u32 %v2557, 2147483648
    %v2598 = vmul.f32 %v2597, 1.442695
    %v2599 = vpow.pop %v2598
    %v2600 = vadd.f32 %v2599, 1.0
    %v2601 = vrcp.pop %v2600
    %v2602 = vmul.f32 %v2600, %v2601
    %v2603 = vsub.f32 1.0, %v2602
    %v2604 = vmul.f32 %v2601, %v2603
    %v2605 = vadd.f32 %v2601, %v2604
    %vm2606 = vweird.f32 %v2600
    %vm2607 = vweird.f32 %v2601
    %vm2608 = vmor %vm2606, %vm2607
    %v2609 = vsel %vm2608, %v2601, %v2605
    %v2610 = vand.u32 2147483647, %v2600
    %vm2611 = vcmp.eq.f32.partialorder %v2610, 8.507059e+37
    %v2612 = vand.u32 %v2600, 2147483648
    %v2613 = vor.u32 1.1754944e-38, %v2612
    %v2614 = vsel %vm2611, %v2613, %v2609
    %v2615 = vmul.f32 1.0, %v2614
    %v2617 = vrot.slane %v2149, 6
    %v2619 = vmul.f32 %v2595, %v2617
    %v2620 = vmul.f32 %v2576, %v2596
    %v2621 = vadd.f32 %v2619, %v2620
    %v2622 = vtanh.pop %v2621
    %v2623 = vmul.f32 %v2615, %v2622
    %v2624 = vld [vmem:[#allocation11] sm:$0xff]
    %v2625 = vld [vmem:[#allocation11 + $0x8] sm:$0xff]
    %v2626 = vld [vmem:[#allocation11 + $0x10] sm:$0xff]
    %v2627 = vld [vmem:[#allocation11 + $0x18] sm:$0xff]
    %v2628 = vld [vmem:[#allocation11 + $0x20] sm:$0xff]
    %v2629 = vld [vmem:[#allocation11 + $0x28] sm:$0xff]
    %v2630 = vld [vmem:[#allocation11 + $0x30] sm:$0xff]
    %v2631 = vld [vmem:[#allocation11 + $0x38] sm:$0xff]
    %v2632 = vld [vmem:[#allocation11 + $0x40] sm:$0xff]
    %v2633 = vld [vmem:[#allocation11 + $0x48] sm:$0xff]
    %v2634 = vld [vmem:[#allocation11 + $0x50] sm:$0xff]
    %v2635 = vld [vmem:[#allocation11 + $0x58] sm:$0xff]
    %v2636 = vld [vmem:[#allocation11 + $0x60] sm:$0xff]
    %v2637 = vld [vmem:[#allocation11 + $0x68] sm:$0xff]
    %v2638 = vld [vmem:[#allocation11 + $0x70] sm:$0xff]
    %v2639 = vld [vmem:[#allocation11 + $0x78] sm:$0xff]
    %v2640 = vld [vmem:[#allocation11 + $0x80] sm:$0xff]
    %v2641 = vld [vmem:[#allocation11 + $0x88] sm:$0xff]
    %v2642 = vld [vmem:[#allocation11 + $0x90] sm:$0xff]
    %v2643 = vld [vmem:[#allocation11 + $0x98] sm:$0xff]
    %v2644 = vld [vmem:[#allocation11 + $0xa0] sm:$0xff]
    %v2645 = vld [vmem:[#allocation11 + $0xa8] sm:$0xff]
    %v2646 = vld [vmem:[#allocation11 + $0xb0] sm:$0xff]
    %v2647 = vld [vmem:[#allocation11 + $0xb8] sm:$0xff]
    %v2648 = vld [vmem:[#allocation12] sm:$0xff]
    %v2649 = vld [vmem:[#allocation12 + $0x8] sm:$0xff]
    %v2650 = vld [vmem:[#allocation12 + $0x10] sm:$0xff]
    %v2651 = vld [vmem:[#allocation12 + $0x18] sm:$0xff]
    %v2652 = vld [vmem:[#allocation12 + $0x20] sm:$0xff]
    %v2653 = vld [vmem:[#allocation12 + $0x28] sm:$0xff]
    %v2654 = vld [vmem:[#allocation12 + $0x30] sm:$0xff]
    %v2655 = vld [vmem:[#allocation12 + $0x38] sm:$0xff]
    %v2656 = vld [vmem:[#allocation12 + $0x40] sm:$0xff]
    %v2657 = vld [vmem:[#allocation12 + $0x48] sm:$0xff]
    %v2658 = vld [vmem:[#allocation12 + $0x50] sm:$0xff]
    %v2659 = vld [vmem:[#allocation12 + $0x58] sm:$0xff]
    %v2660 = vld [vmem:[#allocation12 + $0x60] sm:$0xff]
    %v2661 = vld [vmem:[#allocation12 + $0x68] sm:$0xff]
    %v2662 = vld [vmem:[#allocation12 + $0x70] sm:$0xff]
    %v2663 = vld [vmem:[#allocation12 + $0x78] sm:$0xff]
    %v2664 = vld [vmem:[#allocation12 + $0x80] sm:$0xff]
    %v2665 = vld [vmem:[#allocation12 + $0x88] sm:$0xff]
    %v2666 = vld [vmem:[#allocation12 + $0x90] sm:$0xff]
    %v2667 = vld [vmem:[#allocation12 + $0x98] sm:$0xff]
    %v2668 = vld [vmem:[#allocation12 + $0xa0] sm:$0xff]
    %v2669 = vld [vmem:[#allocation12 + $0xa8] sm:$0xff]
    %v2670 = vld [vmem:[#allocation12 + $0xb0] sm:$0xff]
    %v2671 = vld [vmem:[#allocation12 + $0xb8] sm:$0xff]
    %v2673 = vsel %vm427, %v2429, 0
    %2675 = vmatpush.msra.mxu0 0.0
    %2676 = vmatpush.msra.mxu0 0.0
    %2677 = vmatpush.msra.mxu0 0.0
    %2678 = vmatpush.msra.mxu0 0.0
    %2679 = vmatpush.msra.mxu0 0.0
    %2680 = vmatpush.msra.mxu0 0.0
    %2681 = vmatpush.msra.mxu0 0.0
    %2682 = vmatpush.msra.mxu0 0.0
    %2683 = vmatpush.msra.mxu0 0.0
    %2684 = vmatpush.msra.mxu0 0.0
    %2685 = vmatpush.msra.mxu0 %v2668
    %2686 = vmatpush.msra.mxu0 %v2664
    %2687 = vmatpush.msra.mxu0 %v2660
    %2688 = vmatpush.msra.mxu0 %v2656
    %2689 = vmatpush.msra.mxu0 %v2652
    %2690 = vmatpush.msra.mxu0 %v2648
    %2691 = vmatmul.f32.gmra.mxu0 %v2673
    %v2692 = vpop.f32.mrf.mxu0
    %v2693 = vadd.f32 0.0, %v2692
    %2694 = vdwg.mxu0
    %2695 = vmatpush.msra.mxu0 0.0
    %2696 = vmatpush.msra.mxu0 0.0
    %2697 = vmatpush.msra.mxu0 0.0
    %2698 = vmatpush.msra.mxu0 0.0
    %2699 = vmatpush.msra.mxu0 0.0
    %2700 = vmatpush.msra.mxu0 0.0
    %2701 = vmatpush.msra.mxu0 0.0
    %2702 = vmatpush.msra.mxu0 0.0
    %2703 = vmatpush.msra.mxu0 0.0
    %2704 = vmatpush.msra.mxu0 0.0
    %2705 = vmatpush.msra.mxu0 %v2669
    %2706 = vmatpush.msra.mxu0 %v2665
    %2707 = vmatpush.msra.mxu0 %v2661
    %2708 = vmatpush.msra.mxu0 %v2657
    %2709 = vmatpush.msra.mxu0 %v2653
    %2710 = vmatpush.msra.mxu0 %v2649
    %2711 = vmatmul.f32.gmra.mxu0 %v2673
    %v2712 = vpop.f32.mrf.mxu0
    %v2713 = vadd.f32 0.0, %v2712
    %2714 = vdwg.mxu0
    %2715 = vmatpush.msra.mxu0 0.0
    %2716 = vmatpush.msra.mxu0 0.0
    %2717 = vmatpush.msra.mxu0 0.0
    %2718 = vmatpush.msra.mxu0 0.0
    %2719 = vmatpush.msra.mxu0 0.0
    %2720 = vmatpush.msra.mxu0 0.0
    %2721 = vmatpush.msra.mxu0 0.0
    %2722 = vmatpush.msra.mxu0 0.0
    %2723 = vmatpush.msra.mxu0 0.0
    %2724 = vmatpush.msra.mxu0 0.0
    %2725 = vmatpush.msra.mxu0 %v2670
    %2726 = vmatpush.msra.mxu0 %v2666
    %2727 = vmatpush.msra.mxu0 %v2662
    %2728 = vmatpush.msra.mxu0 %v2658
    %2729 = vmatpush.msra.mxu0 %v2654
    %2730 = vmatpush.msra.mxu0 %v2650
    %2731 = vmatmul.f32.gmra.mxu0 %v2673
    %v2732 = vpop.f32.mrf.mxu0
    %v2733 = vadd.f32 0.0, %v2732
    %2734 = vdwg.mxu0
    %2735 = vmatpush.msra.mxu0 0.0
    %2736 = vmatpush.msra.mxu0 0.0
    %2737 = vmatpush.msra.mxu0 0.0
    %2738 = vmatpush.msra.mxu0 0.0
    %2739 = vmatpush.msra.mxu0 0.0
    %2740 = vmatpush.msra.mxu0 0.0
    %2741 = vmatpush.msra.mxu0 0.0
    %2742 = vmatpush.msra.mxu0 0.0
    %2743 = vmatpush.msra.mxu0 0.0
    %2744 = vmatpush.msra.mxu0 0.0
    %2745 = vmatpush.msra.mxu0 %v2671
    %2746 = vmatpush.msra.mxu0 %v2667
    %2747 = vmatpush.msra.mxu0 %v2663
    %2748 = vmatpush.msra.mxu0 %v2659
    %2749 = vmatpush.msra.mxu0 %v2655
    %2750 = vmatpush.msra.mxu0 %v2651
    %2751 = vmatmul.f32.gmra.mxu0 %v2673
    %v2752 = vpop.f32.mrf.mxu0
    %v2753 = vadd.f32 0.0, %v2752
    %2754 = vdwg.mxu0
    %2755 = vmatpush.msra.mxu0 0.0
    %2756 = vmatpush.msra.mxu0 0.0
    %2757 = vmatpush.msra.mxu0 0.0
    %2758 = vmatpush.msra.mxu0 0.0
    %2759 = vmatpush.msra.mxu0 0.0
    %2760 = vmatpush.msra.mxu0 0.0
    %2761 = vmatpush.msra.mxu0 0.0
    %2762 = vmatpush.msra.mxu0 0.0
    %2763 = vmatpush.msra.mxu0 0.0
    %2764 = vmatpush.msra.mxu0 0.0
    %2765 = vmatpush.msra.mxu0 %v2644
    %2766 = vmatpush.msra.mxu0 %v2640
    %2767 = vmatpush.msra.mxu0 %v2636
    %2768 = vmatpush.msra.mxu0 %v2632
    %2769 = vmatpush.msra.mxu0 %v2628
    %2770 = vmatpush.msra.mxu0 %v2624
    %2771 = vmatmul.f32.gmra.mxu0 %v2460
    %v2772 = vpop.f32.mrf.mxu0
    %v2773 = vadd.f32 %v2693, %v2772
    %2774 = vdwg.mxu0
    %2775 = vmatpush.msra.mxu0 0.0
    %2776 = vmatpush.msra.mxu0 0.0
    %2777 = vmatpush.msra.mxu0 0.0
    %2778 = vmatpush.msra.mxu0 0.0
    %2779 = vmatpush.msra.mxu0 0.0
    %2780 = vmatpush.msra.mxu0 0.0
    %2781 = vmatpush.msra.mxu0 0.0
    %2782 = vmatpush.msra.mxu0 0.0
    %2783 = vmatpush.msra.mxu0 0.0
    %2784 = vmatpush.msra.mxu0 0.0
    %2785 = vmatpush.msra.mxu0 %v2645
    %2786 = vmatpush.msra.mxu0 %v2641
    %2787 = vmatpush.msra.mxu0 %v2637
    %2788 = vmatpush.msra.mxu0 %v2633
    %2789 = vmatpush.msra.mxu0 %v2629
    %2790 = vmatpush.msra.mxu0 %v2625
    %2791 = vmatmul.f32.gmra.mxu0 %v2460
    %v2792 = vpop.f32.mrf.mxu0
    %v2793 = vadd.f32 %v2713, %v2792
    %2794 = vdwg.mxu0
    %2795 = vmatpush.msra.mxu0 0.0
    %2796 = vmatpush.msra.mxu0 0.0
    %2797 = vmatpush.msra.mxu0 0.0
    %2798 = vmatpush.msra.mxu0 0.0
    %2799 = vmatpush.msra.mxu0 0.0
    %2800 = vmatpush.msra.mxu0 0.0
    %2801 = vmatpush.msra.mxu0 0.0
    %2802 = vmatpush.msra.mxu0 0.0
    %2803 = vmatpush.msra.mxu0 0.0
    %2804 = vmatpush.msra.mxu0 0.0
    %2805 = vmatpush.msra.mxu0 %v2646
    %2806 = vmatpush.msra.mxu0 %v2642
    %2807 = vmatpush.msra.mxu0 %v2638
    %2808 = vmatpush.msra.mxu0 %v2634
    %2809 = vmatpush.msra.mxu0 %v2630
    %2810 = vmatpush.msra.mxu0 %v2626
    %2811 = vmatmul.f32.gmra.mxu0 %v2460
    %v2812 = vpop.f32.mrf.mxu0
    %v2813 = vadd.f32 %v2733, %v2812
    %2814 = vdwg.mxu0
    %2815 = vmatpush.msra.mxu0 0.0
    %2816 = vmatpush.msra.mxu0 0.0
    %2817 = vmatpush.msra.mxu0 0.0
    %2818 = vmatpush.msra.mxu0 0.0
    %2819 = vmatpush.msra.mxu0 0.0
    %2820 = vmatpush.msra.mxu0 0.0
    %2821 = vmatpush.msra.mxu0 0.0
    %2822 = vmatpush.msra.mxu0 0.0
    %2823 = vmatpush.msra.mxu0 0.0
    %2824 = vmatpush.msra.mxu0 0.0
    %2825 = vmatpush.msra.mxu0 %v2647
    %2826 = vmatpush.msra.mxu0 %v2643
    %2827 = vmatpush.msra.mxu0 %v2639
    %2828 = vmatpush.msra.mxu0 %v2635
    %2829 = vmatpush.msra.mxu0 %v2631
    %2830 = vmatpush.msra.mxu0 %v2627
    %2831 = vmatmul.f32.gmra.mxu0 %v2460
    %v2832 = vpop.f32.mrf.mxu0
    %v2833 = vadd.f32 %v2753, %v2832
    %2834 = vdwg.mxu0
    %v2835 = vadd.f32 %v2773, %v391
    %v2836 = vadd.f32 %v2793, %v392
    %v2837 = vadd.f32 %v2813, %v393
    %v2838 = vadd.f32 %v2833, %v394
    %v2839 = vxor.u32 %v2835, 2147483648
    %v2840 = vmul.f32 %v2839, 1.442695
    %v2841 = vpow.pop %v2840
    %v2842 = vadd.f32 %v2841, 1.0
    %v2843 = vrcp.pop %v2842
    %v2844 = vmul.f32 %v2842, %v2843
    %v2845 = vsub.f32 1.0, %v2844
    %v2846 = vmul.f32 %v2843, %v2845
    %v2847 = vadd.f32 %v2843, %v2846
    %vm2848 = vweird.f32 %v2842
    %vm2849 = vweird.f32 %v2843
    %vm2850 = vmor %vm2848, %vm2849
    %v2851 = vsel %vm2850, %v2843, %v2847
    %v2852 = vand.u32 2147483647, %v2842
    %vm2853 = vcmp.eq.f32.partialorder %v2852, 8.507059e+37
    %v2854 = vand.u32 %v2842, 2147483648
    %v2855 = vor.u32 1.1754944e-38, %v2854
    %v2856 = vsel %vm2853, %v2855, %v2851
    %v2857 = vmul.f32 1.0, %v2856
    %v2858 = vxor.u32 %v2836, 2147483648
    %v2859 = vmul.f32 %v2858, 1.442695
    %v2860 = vpow.pop %v2859
    %v2861 = vadd.f32 %v2860, 1.0
    %v2862 = vrcp.pop %v2861
    %v2863 = vmul.f32 %v2861, %v2862
    %v2864 = vsub.f32 1.0, %v2863
    %v2865 = vmul.f32 %v2862, %v2864
    %v2866 = vadd.f32 %v2862, %v2865
    %vm2867 = vweird.f32 %v2861
    %vm2868 = vweird.f32 %v2862
    %vm2869 = vmor %vm2867, %vm2868
    %v2870 = vsel %vm2869, %v2862, %v2866
    %v2871 = vand.u32 2147483647, %v2861
    %vm2872 = vcmp.eq.f32.partialorder %v2871, 8.507059e+37
    %v2873 = vand.u32 %v2861, 2147483648
    %v2874 = vor.u32 1.1754944e-38, %v2873
    %v2875 = vsel %vm2872, %v2874, %v2870
    %v2876 = vmul.f32 1.0, %v2875
    %v2877 = vtanh.pop %v2837
    %v2878 = vxor.u32 %v2838, 2147483648
    %v2879 = vmul.f32 %v2878, 1.442695
    %v2880 = vpow.pop %v2879
    %v2881 = vadd.f32 %v2880, 1.0
    %v2882 = vrcp.pop %v2881
    %v2883 = vmul.f32 %v2881, %v2882
    %v2884 = vsub.f32 1.0, %v2883
    %v2885 = vmul.f32 %v2882, %v2884
    %v2886 = vadd.f32 %v2882, %v2885
    %vm2887 = vweird.f32 %v2881
    %vm2888 = vweird.f32 %v2882
    %vm2889 = vmor %vm2887, %vm2888
    %v2890 = vsel %vm2889, %v2882, %v2886
    %v2891 = vand.u32 2147483647, %v2881
    %vm2892 = vcmp.eq.f32.partialorder %v2891, 8.507059e+37
    %v2893 = vand.u32 %v2881, 2147483648
    %v2894 = vor.u32 1.1754944e-38, %v2893
    %v2895 = vsel %vm2892, %v2894, %v2890
    %v2896 = vmul.f32 1.0, %v2895
    %v2897 = vmul.f32 %v2876, %v2427
    %v2898 = vmul.f32 %v2857, %v2877
    %v2899 = vadd.f32 %v2897, %v2898
    %v2900 = vtanh.pop %v2899
    %v2901 = vmul.f32 %v2896, %v2900
    %2902 = vst.msk [vmem:[#allocation3 + $0x8] sm:$0x3] %vm1022, %v2901
    %v2903 = vld [vmem:[#allocation2 + $0x20] sm:$0x30]
    %v2904 = vld [vmem:[#allocation2 + $0x28] sm:$0x30]
    %v2905 = vld [vmem:[#allocation2 + $0x30] sm:$0x30]
    %v2906 = vld [vmem:[#allocation2 + $0x38] sm:$0x30]
    %v2907 = vld [vmem:[#allocation9] sm:$0xff]
    %v2908 = vld [vmem:[#allocation9 + $0x8] sm:$0xff]
    %v2909 = vld [vmem:[#allocation9 + $0x10] sm:$0xff]
    %v2910 = vld [vmem:[#allocation9 + $0x18] sm:$0xff]
    %v2911 = vld [vmem:[#allocation9 + $0x20] sm:$0xff]
    %v2912 = vld [vmem:[#allocation9 + $0x28] sm:$0xff]
    %v2913 = vld [vmem:[#allocation9 + $0x30] sm:$0xff]
    %v2914 = vld [vmem:[#allocation9 + $0x38] sm:$0xff]
    %v2915 = vld [vmem:[#allocation9 + $0x40] sm:$0xff]
    %v2916 = vld [vmem:[#allocation9 + $0x48] sm:$0xff]
    %v2917 = vld [vmem:[#allocation9 + $0x50] sm:$0xff]
    %v2918 = vld [vmem:[#allocation9 + $0x58] sm:$0xff]
    %v2919 = vld [vmem:[#allocation9 + $0x60] sm:$0xff]
    %v2920 = vld [vmem:[#allocation9 + $0x68] sm:$0xff]
    %v2921 = vld [vmem:[#allocation9 + $0x70] sm:$0xff]
    %v2922 = vld [vmem:[#allocation9 + $0x78] sm:$0xff]
    %v2923 = vld [vmem:[#allocation9 + $0x80] sm:$0xff]
    %v2924 = vld [vmem:[#allocation9 + $0x88] sm:$0xff]
    %v2925 = vld [vmem:[#allocation9 + $0x90] sm:$0xff]
    %v2926 = vld [vmem:[#allocation9 + $0x98] sm:$0xff]
    %v2927 = vld [vmem:[#allocation9 + $0xa0] sm:$0xff]
    %v2928 = vld [vmem:[#allocation9 + $0xa8] sm:$0xff]
    %v2929 = vld [vmem:[#allocation9 + $0xb0] sm:$0xff]
    %v2930 = vld [vmem:[#allocation9 + $0xb8] sm:$0xff]
    %v2932 = vrot.slane %v2623, 2
    %v2933 = vsel %vm427, %v2932, 0
    %2935 = vmatpush.msra.mxu0 0.0
    %2936 = vmatpush.msra.mxu0 0.0
    %2937 = vmatpush.msra.mxu0 0.0
    %2938 = vmatpush.msra.mxu0 0.0
    %2939 = vmatpush.msra.mxu0 0.0
    %2940 = vmatpush.msra.mxu0 0.0
    %2941 = vmatpush.msra.mxu0 0.0
    %2942 = vmatpush.msra.mxu0 0.0
    %2943 = vmatpush.msra.mxu0 0.0
    %2944 = vmatpush.msra.mxu0 0.0
    %2945 = vmatpush.msra.mxu0 %v2927
    %2946 = vmatpush.msra.mxu0 %v2923
    %2947 = vmatpush.msra.mxu0 %v2919
    %2948 = vmatpush.msra.mxu0 %v2915
    %2949 = vmatpush.msra.mxu0 %v2911
    %2950 = vmatpush.msra.mxu0 %v2907
    %2951 = vmatmul.f32.gmra.mxu0 %v2933
    %v2952 = vpop.f32.mrf.mxu0
    %v2953 = vadd.f32 0.0, %v2952
    %2954 = vdwg.mxu0
    %2955 = vmatpush.msra.mxu0 0.0
    %2956 = vmatpush.msra.mxu0 0.0
    %2957 = vmatpush.msra.mxu0 0.0
    %2958 = vmatpush.msra.mxu0 0.0
    %2959 = vmatpush.msra.mxu0 0.0
    %2960 = vmatpush.msra.mxu0 0.0
    %2961 = vmatpush.msra.mxu0 0.0
    %2962 = vmatpush.msra.mxu0 0.0
    %2963 = vmatpush.msra.mxu0 0.0
    %2964 = vmatpush.msra.mxu0 0.0
    %2965 = vmatpush.msra.mxu0 %v2928
    %2966 = vmatpush.msra.mxu0 %v2924
    %2967 = vmatpush.msra.mxu0 %v2920
    %2968 = vmatpush.msra.mxu0 %v2916
    %2969 = vmatpush.msra.mxu0 %v2912
    %2970 = vmatpush.msra.mxu0 %v2908
    %2971 = vmatmul.f32.gmra.mxu0 %v2933
    %v2972 = vpop.f32.mrf.mxu0
    %v2973 = vadd.f32 0.0, %v2972
    %2974 = vdwg.mxu0
    %2975 = vmatpush.msra.mxu0 0.0
    %2976 = vmatpush.msra.mxu0 0.0
    %2977 = vmatpush.msra.mxu0 0.0
    %2978 = vmatpush.msra.mxu0 0.0
    %2979 = vmatpush.msra.mxu0 0.0
    %2980 = vmatpush.msra.mxu0 0.0
    %2981 = vmatpush.msra.mxu0 0.0
    %2982 = vmatpush.msra.mxu0 0.0
    %2983 = vmatpush.msra.mxu0 0.0
    %2984 = vmatpush.msra.mxu0 0.0
    %2985 = vmatpush.msra.mxu0 %v2929
    %2986 = vmatpush.msra.mxu0 %v2925
    %2987 = vmatpush.msra.mxu0 %v2921
    %2988 = vmatpush.msra.mxu0 %v2917
    %2989 = vmatpush.msra.mxu0 %v2913
    %2990 = vmatpush.msra.mxu0 %v2909
    %2991 = vmatmul.f32.gmra.mxu0 %v2933
    %v2992 = vpop.f32.mrf.mxu0
    %v2993 = vadd.f32 0.0, %v2992
    %2994 = vdwg.mxu0
    %2995 = vmatpush.msra.mxu0 0.0
    %2996 = vmatpush.msra.mxu0 0.0
    %2997 = vmatpush.msra.mxu0 0.0
    %2998 = vmatpush.msra.mxu0 0.0
    %2999 = vmatpush.msra.mxu0 0.0
    %3000 = vmatpush.msra.mxu0 0.0
    %3001 = vmatpush.msra.mxu0 0.0
    %3002 = vmatpush.msra.mxu0 0.0
    %3003 = vmatpush.msra.mxu0 0.0
    %3004 = vmatpush.msra.mxu0 0.0
    %3005 = vmatpush.msra.mxu0 %v2930
    %3006 = vmatpush.msra.mxu0 %v2926
    %3007 = vmatpush.msra.mxu0 %v2922
    %3008 = vmatpush.msra.mxu0 %v2918
    %3009 = vmatpush.msra.mxu0 %v2914
    %3010 = vmatpush.msra.mxu0 %v2910
    %3011 = vmatmul.f32.gmra.mxu0 %v2933
    %v3012 = vpop.f32.mrf.mxu0
    %v3013 = vadd.f32 0.0, %v3012
    %3014 = vdwg.mxu0
    %v3019 = vrot.slane %v2953, 4
    %v3020 = vrot.slane %v2973, 4
    %v3021 = vrot.slane %v2993, 4
    %v3022 = vrot.slane %v3013, 4
    %v3027 = vadd.f32 %v2903, %v3019
    %v3028 = vadd.f32 %v2904, %v3020
    %v3029 = vadd.f32 %v2905, %v3021
    %v3030 = vadd.f32 %v2906, %v3022
    %v3031 = vxor.u32 %v3027, 2147483648
    %v3032 = vmul.f32 %v3031, 1.442695
    %v3033 = vpow.pop %v3032
    %v3034 = vadd.f32 %v3033, 1.0
    %v3035 = vrcp.pop %v3034
    %v3036 = vmul.f32 %v3034, %v3035
    %v3037 = vsub.f32 1.0, %v3036
    %v3038 = vmul.f32 %v3035, %v3037
    %v3039 = vadd.f32 %v3035, %v3038
    %vm3040 = vweird.f32 %v3034
    %vm3041 = vweird.f32 %v3035
    %vm3042 = vmor %vm3040, %vm3041
    %v3043 = vsel %vm3042, %v3035, %v3039
    %v3044 = vand.u32 2147483647, %v3034
    %vm3045 = vcmp.eq.f32.partialorder %v3044, 8.507059e+37
    %v3046 = vand.u32 %v3034, 2147483648
    %v3047 = vor.u32 1.1754944e-38, %v3046
    %v3048 = vsel %vm3045, %v3047, %v3043
    %v3049 = vmul.f32 1.0, %v3048
    %v3050 = vxor.u32 %v3028, 2147483648
    %v3051 = vmul.f32 %v3050, 1.442695
    %v3052 = vpow.pop %v3051
    %v3053 = vadd.f32 %v3052, 1.0
    %v3054 = vrcp.pop %v3053
    %v3055 = vmul.f32 %v3053, %v3054
    %v3056 = vsub.f32 1.0, %v3055
    %v3057 = vmul.f32 %v3054, %v3056
    %v3058 = vadd.f32 %v3054, %v3057
    %vm3059 = vweird.f32 %v3053
    %vm3060 = vweird.f32 %v3054
    %vm3061 = vmor %vm3059, %vm3060
    %v3062 = vsel %vm3061, %v3054, %v3058
    %v3063 = vand.u32 2147483647, %v3053
    %vm3064 = vcmp.eq.f32.partialorder %v3063, 8.507059e+37
    %v3065 = vand.u32 %v3053, 2147483648
    %v3066 = vor.u32 1.1754944e-38, %v3065
    %v3067 = vsel %vm3064, %v3066, %v3062
    %v3068 = vmul.f32 1.0, %v3067
    %v3069 = vtanh.pop %v3029
    %v3070 = vxor.u32 %v3030, 2147483648
    %v3071 = vmul.f32 %v3070, 1.442695
    %v3072 = vpow.pop %v3071
    %v3073 = vadd.f32 %v3072, 1.0
    %v3074 = vrcp.pop %v3073
    %v3075 = vmul.f32 %v3073, %v3074
    %v3076 = vsub.f32 1.0, %v3075
    %v3077 = vmul.f32 %v3074, %v3076
    %v3078 = vadd.f32 %v3074, %v3077
    %vm3079 = vweird.f32 %v3073
    %vm3080 = vweird.f32 %v3074
    %vm3081 = vmor %vm3079, %vm3080
    %v3082 = vsel %vm3081, %v3074, %v3078
    %v3083 = vand.u32 2147483647, %v3073
    %vm3084 = vcmp.eq.f32.partialorder %v3083, 8.507059e+37
    %v3085 = vand.u32 %v3073, 2147483648
    %v3086 = vor.u32 1.1754944e-38, %v3085
    %v3087 = vsel %vm3084, %v3086, %v3082
    %v3088 = vmul.f32 1.0, %v3087
    %v3090 = vrot.slane %v2621, 6
    %v3092 = vmul.f32 %v3068, %v3090
    %v3093 = vmul.f32 %v3049, %v3069
    %v3094 = vadd.f32 %v3092, %v3093
    %v3095 = vtanh.pop %v3094
    %v3096 = vmul.f32 %v3088, %v3095
    %v3097 = vld [vmem:[#allocation11] sm:$0xff]
    %v3098 = vld [vmem:[#allocation11 + $0x8] sm:$0xff]
    %v3099 = vld [vmem:[#allocation11 + $0x10] sm:$0xff]
    %v3100 = vld [vmem:[#allocation11 + $0x18] sm:$0xff]
    %v3101 = vld [vmem:[#allocation11 + $0x20] sm:$0xff]
    %v3102 = vld [vmem:[#allocation11 + $0x28] sm:$0xff]
    %v3103 = vld [vmem:[#allocation11 + $0x30] sm:$0xff]
    %v3104 = vld [vmem:[#allocation11 + $0x38] sm:$0xff]
    %v3105 = vld [vmem:[#allocation11 + $0x40] sm:$0xff]
    %v3106 = vld [vmem:[#allocation11 + $0x48] sm:$0xff]
    %v3107 = vld [vmem:[#allocation11 + $0x50] sm:$0xff]
    %v3108 = vld [vmem:[#allocation11 + $0x58] sm:$0xff]
    %v3109 = vld [vmem:[#allocation11 + $0x60] sm:$0xff]
    %v3110 = vld [vmem:[#allocation11 + $0x68] sm:$0xff]
    %v3111 = vld [vmem:[#allocation11 + $0x70] sm:$0xff]
    %v3112 = vld [vmem:[#allocation11 + $0x78] sm:$0xff]
    %v3113 = vld [vmem:[#allocation11 + $0x80] sm:$0xff]
    %v3114 = vld [vmem:[#allocation11 + $0x88] sm:$0xff]
    %v3115 = vld [vmem:[#allocation11 + $0x90] sm:$0xff]
    %v3116 = vld [vmem:[#allocation11 + $0x98] sm:$0xff]
    %v3117 = vld [vmem:[#allocation11 + $0xa0] sm:$0xff]
    %v3118 = vld [vmem:[#allocation11 + $0xa8] sm:$0xff]
    %v3119 = vld [vmem:[#allocation11 + $0xb0] sm:$0xff]
    %v3120 = vld [vmem:[#allocation11 + $0xb8] sm:$0xff]
    %v3121 = vld [vmem:[#allocation12] sm:$0xff]
    %v3122 = vld [vmem:[#allocation12 + $0x8] sm:$0xff]
    %v3123 = vld [vmem:[#allocation12 + $0x10] sm:$0xff]
    %v3124 = vld [vmem:[#allocation12 + $0x18] sm:$0xff]
    %v3125 = vld [vmem:[#allocation12 + $0x20] sm:$0xff]
    %v3126 = vld [vmem:[#allocation12 + $0x28] sm:$0xff]
    %v3127 = vld [vmem:[#allocation12 + $0x30] sm:$0xff]
    %v3128 = vld [vmem:[#allocation12 + $0x38] sm:$0xff]
    %v3129 = vld [vmem:[#allocation12 + $0x40] sm:$0xff]
    %v3130 = vld [vmem:[#allocation12 + $0x48] sm:$0xff]
    %v3131 = vld [vmem:[#allocation12 + $0x50] sm:$0xff]
    %v3132 = vld [vmem:[#allocation12 + $0x58] sm:$0xff]
    %v3133 = vld [vmem:[#allocation12 + $0x60] sm:$0xff]
    %v3134 = vld [vmem:[#allocation12 + $0x68] sm:$0xff]
    %v3135 = vld [vmem:[#allocation12 + $0x70] sm:$0xff]
    %v3136 = vld [vmem:[#allocation12 + $0x78] sm:$0xff]
    %v3137 = vld [vmem:[#allocation12 + $0x80] sm:$0xff]
    %v3138 = vld [vmem:[#allocation12 + $0x88] sm:$0xff]
    %v3139 = vld [vmem:[#allocation12 + $0x90] sm:$0xff]
    %v3140 = vld [vmem:[#allocation12 + $0x98] sm:$0xff]
    %v3141 = vld [vmem:[#allocation12 + $0xa0] sm:$0xff]
    %v3142 = vld [vmem:[#allocation12 + $0xa8] sm:$0xff]
    %v3143 = vld [vmem:[#allocation12 + $0xb0] sm:$0xff]
    %v3144 = vld [vmem:[#allocation12 + $0xb8] sm:$0xff]
    %v3146 = vsel %vm427, %v2901, 0
    %3148 = vmatpush.msra.mxu0 0.0
    %3149 = vmatpush.msra.mxu0 0.0
    %3150 = vmatpush.msra.mxu0 0.0
    %3151 = vmatpush.msra.mxu0 0.0
    %3152 = vmatpush.msra.mxu0 0.0
    %3153 = vmatpush.msra.mxu0 0.0
    %3154 = vmatpush.msra.mxu0 0.0
    %3155 = vmatpush.msra.mxu0 0.0
    %3156 = vmatpush.msra.mxu0 0.0
    %3157 = vmatpush.msra.mxu0 0.0
    %3158 = vmatpush.msra.mxu0 %v3141
    %3159 = vmatpush.msra.mxu0 %v3137
    %3160 = vmatpush.msra.mxu0 %v3133
    %3161 = vmatpush.msra.mxu0 %v3129
    %3162 = vmatpush.msra.mxu0 %v3125
    %3163 = vmatpush.msra.mxu0 %v3121
    %3164 = vmatmul.f32.gmra.mxu0 %v3146
    %v3165 = vpop.f32.mrf.mxu0
    %v3166 = vadd.f32 0.0, %v3165
    %3167 = vdwg.mxu0
    %3168 = vmatpush.msra.mxu0 0.0
    %3169 = vmatpush.msra.mxu0 0.0
    %3170 = vmatpush.msra.mxu0 0.0
    %3171 = vmatpush.msra.mxu0 0.0
    %3172 = vmatpush.msra.mxu0 0.0
    %3173 = vmatpush.msra.mxu0 0.0
    %3174 = vmatpush.msra.mxu0 0.0
    %3175 = vmatpush.msra.mxu0 0.0
    %3176 = vmatpush.msra.mxu0 0.0
    %3177 = vmatpush.msra.mxu0 0.0
    %3178 = vmatpush.msra.mxu0 %v3142
    %3179 = vmatpush.msra.mxu0 %v3138
    %3180 = vmatpush.msra.mxu0 %v3134
    %3181 = vmatpush.msra.mxu0 %v3130
    %3182 = vmatpush.msra.mxu0 %v3126
    %3183 = vmatpush.msra.mxu0 %v3122
    %3184 = vmatmul.f32.gmra.mxu0 %v3146
    %v3185 = vpop.f32.mrf.mxu0
    %v3186 = vadd.f32 0.0, %v3185
    %3187 = vdwg.mxu0
    %3188 = vmatpush.msra.mxu0 0.0
    %3189 = vmatpush.msra.mxu0 0.0
    %3190 = vmatpush.msra.mxu0 0.0
    %3191 = vmatpush.msra.mxu0 0.0
    %3192 = vmatpush.msra.mxu0 0.0
    %3193 = vmatpush.msra.mxu0 0.0
    %3194 = vmatpush.msra.mxu0 0.0
    %3195 = vmatpush.msra.mxu0 0.0
    %3196 = vmatpush.msra.mxu0 0.0
    %3197 = vmatpush.msra.mxu0 0.0
    %3198 = vmatpush.msra.mxu0 %v3143
    %3199 = vmatpush.msra.mxu0 %v3139
    %3200 = vmatpush.msra.mxu0 %v3135
    %3201 = vmatpush.msra.mxu0 %v3131
    %3202 = vmatpush.msra.mxu0 %v3127
    %3203 = vmatpush.msra.mxu0 %v3123
    %3204 = vmatmul.f32.gmra.mxu0 %v3146
    %v3205 = vpop.f32.mrf.mxu0
    %v3206 = vadd.f32 0.0, %v3205
    %3207 = vdwg.mxu0
    %3208 = vmatpush.msra.mxu0 0.0
    %3209 = vmatpush.msra.mxu0 0.0
    %3210 = vmatpush.msra.mxu0 0.0
    %3211 = vmatpush.msra.mxu0 0.0
    %3212 = vmatpush.msra.mxu0 0.0
    %3213 = vmatpush.msra.mxu0 0.0
    %3214 = vmatpush.msra.mxu0 0.0
    %3215 = vmatpush.msra.mxu0 0.0
    %3216 = vmatpush.msra.mxu0 0.0
    %3217 = vmatpush.msra.mxu0 0.0
    %3218 = vmatpush.msra.mxu0 %v3144
    %3219 = vmatpush.msra.mxu0 %v3140
    %3220 = vmatpush.msra.mxu0 %v3136
    %3221 = vmatpush.msra.mxu0 %v3132
    %3222 = vmatpush.msra.mxu0 %v3128
    %3223 = vmatpush.msra.mxu0 %v3124
    %3224 = vmatmul.f32.gmra.mxu0 %v3146
    %v3225 = vpop.f32.mrf.mxu0
    %v3226 = vadd.f32 0.0, %v3225
    %3227 = vdwg.mxu0
    %3228 = vmatpush.msra.mxu0 0.0
    %3229 = vmatpush.msra.mxu0 0.0
    %3230 = vmatpush.msra.mxu0 0.0
    %3231 = vmatpush.msra.mxu0 0.0
    %3232 = vmatpush.msra.mxu0 0.0
    %3233 = vmatpush.msra.mxu0 0.0
    %3234 = vmatpush.msra.mxu0 0.0
    %3235 = vmatpush.msra.mxu0 0.0
    %3236 = vmatpush.msra.mxu0 0.0
    %3237 = vmatpush.msra.mxu0 0.0
    %3238 = vmatpush.msra.mxu0 %v3117
    %3239 = vmatpush.msra.mxu0 %v3113
    %3240 = vmatpush.msra.mxu0 %v3109
    %3241 = vmatpush.msra.mxu0 %v3105
    %3242 = vmatpush.msra.mxu0 %v3101
    %3243 = vmatpush.msra.mxu0 %v3097
    %3244 = vmatmul.f32.gmra.mxu0 %v2933
    %v3245 = vpop.f32.mrf.mxu0
    %v3246 = vadd.f32 %v3166, %v3245
    %3247 = vdwg.mxu0
    %3248 = vmatpush.msra.mxu0 0.0
    %3249 = vmatpush.msra.mxu0 0.0
    %3250 = vmatpush.msra.mxu0 0.0
    %3251 = vmatpush.msra.mxu0 0.0
    %3252 = vmatpush.msra.mxu0 0.0
    %3253 = vmatpush.msra.mxu0 0.0
    %3254 = vmatpush.msra.mxu0 0.0
    %3255 = vmatpush.msra.mxu0 0.0
    %3256 = vmatpush.msra.mxu0 0.0
    %3257 = vmatpush.msra.mxu0 0.0
    %3258 = vmatpush.msra.mxu0 %v3118
    %3259 = vmatpush.msra.mxu0 %v3114
    %3260 = vmatpush.msra.mxu0 %v3110
    %3261 = vmatpush.msra.mxu0 %v3106
    %3262 = vmatpush.msra.mxu0 %v3102
    %3263 = vmatpush.msra.mxu0 %v3098
    %3264 = vmatmul.f32.gmra.mxu0 %v2933
    %v3265 = vpop.f32.mrf.mxu0
    %v3266 = vadd.f32 %v3186, %v3265
    %3267 = vdwg.mxu0
    %3268 = vmatpush.msra.mxu0 0.0
    %3269 = vmatpush.msra.mxu0 0.0
    %3270 = vmatpush.msra.mxu0 0.0
    %3271 = vmatpush.msra.mxu0 0.0
    %3272 = vmatpush.msra.mxu0 0.0
    %3273 = vmatpush.msra.mxu0 0.0
    %3274 = vmatpush.msra.mxu0 0.0
    %3275 = vmatpush.msra.mxu0 0.0
    %3276 = vmatpush.msra.mxu0 0.0
    %3277 = vmatpush.msra.mxu0 0.0
    %3278 = vmatpush.msra.mxu0 %v3119
    %3279 = vmatpush.msra.mxu0 %v3115
    %3280 = vmatpush.msra.mxu0 %v3111
    %3281 = vmatpush.msra.mxu0 %v3107
    %3282 = vmatpush.msra.mxu0 %v3103
    %3283 = vmatpush.msra.mxu0 %v3099
    %3284 = vmatmul.f32.gmra.mxu0 %v2933
    %v3285 = vpop.f32.mrf.mxu0
    %v3286 = vadd.f32 %v3206, %v3285
    %3287 = vdwg.mxu0
    %3288 = vmatpush.msra.mxu0 0.0
    %3289 = vmatpush.msra.mxu0 0.0
    %3290 = vmatpush.msra.mxu0 0.0
    %3291 = vmatpush.msra.mxu0 0.0
    %3292 = vmatpush.msra.mxu0 0.0
    %3293 = vmatpush.msra.mxu0 0.0
    %3294 = vmatpush.msra.mxu0 0.0
    %3295 = vmatpush.msra.mxu0 0.0
    %3296 = vmatpush.msra.mxu0 0.0
    %3297 = vmatpush.msra.mxu0 0.0
    %3298 = vmatpush.msra.mxu0 %v3120
    %3299 = vmatpush.msra.mxu0 %v3116
    %3300 = vmatpush.msra.mxu0 %v3112
    %3301 = vmatpush.msra.mxu0 %v3108
    %3302 = vmatpush.msra.mxu0 %v3104
    %3303 = vmatpush.msra.mxu0 %v3100
    %3304 = vmatmul.f32.gmra.mxu0 %v2933
    %v3305 = vpop.f32.mrf.mxu0
    %v3306 = vadd.f32 %v3226, %v3305
    %3307 = vdwg.mxu0
    %v3308 = vadd.f32 %v3246, %v391
    %v3309 = vadd.f32 %v3266, %v392
    %v3310 = vadd.f32 %v3286, %v393
    %v3311 = vadd.f32 %v3306, %v394
    %v3312 = vxor.u32 %v3308, 2147483648
    %v3313 = vmul.f32 %v3312, 1.442695
    %v3314 = vpow.pop %v3313
    %v3315 = vadd.f32 %v3314, 1.0
    %v3316 = vrcp.pop %v3315
    %v3317 = vmul.f32 %v3315, %v3316
    %v3318 = vsub.f32 1.0, %v3317
    %v3319 = vmul.f32 %v3316, %v3318
    %v3320 = vadd.f32 %v3316, %v3319
    %vm3321 = vweird.f32 %v3315
    %vm3322 = vweird.f32 %v3316
    %vm3323 = vmor %vm3321, %vm3322
    %v3324 = vsel %vm3323, %v3316, %v3320
    %v3325 = vand.u32 2147483647, %v3315
    %vm3326 = vcmp.eq.f32.partialorder %v3325, 8.507059e+37
    %v3327 = vand.u32 %v3315, 2147483648
    %v3328 = vor.u32 1.1754944e-38, %v3327
    %v3329 = vsel %vm3326, %v3328, %v3324
    %v3330 = vmul.f32 1.0, %v3329
    %v3331 = vxor.u32 %v3309, 2147483648
    %v3332 = vmul.f32 %v3331, 1.442695
    %v3333 = vpow.pop %v3332
    %v3334 = vadd.f32 %v3333, 1.0
    %v3335 = vrcp.pop %v3334
    %v3336 = vmul.f32 %v3334, %v3335
    %v3337 = vsub.f32 1.0, %v3336
    %v3338 = vmul.f32 %v3335, %v3337
    %v3339 = vadd.f32 %v3335, %v3338
    %vm3340 = vweird.f32 %v3334
    %vm3341 = vweird.f32 %v3335
    %vm3342 = vmor %vm3340, %vm3341
    %v3343 = vsel %vm3342, %v3335, %v3339
    %v3344 = vand.u32 2147483647, %v3334
    %vm3345 = vcmp.eq.f32.partialorder %v3344, 8.507059e+37
    %v3346 = vand.u32 %v3334, 2147483648
    %v3347 = vor.u32 1.1754944e-38, %v3346
    %v3348 = vsel %vm3345, %v3347, %v3343
    %v3349 = vmul.f32 1.0, %v3348
    %v3350 = vtanh.pop %v3310
    %v3351 = vxor.u32 %v3311, 2147483648
    %v3352 = vmul.f32 %v3351, 1.442695
    %v3353 = vpow.pop %v3352
    %v3354 = vadd.f32 %v3353, 1.0
    %v3355 = vrcp.pop %v3354
    %v3356 = vmul.f32 %v3354, %v3355
    %v3357 = vsub.f32 1.0, %v3356
    %v3358 = vmul.f32 %v3355, %v3357
    %v3359 = vadd.f32 %v3355, %v3358
    %vm3360 = vweird.f32 %v3354
    %vm3361 = vweird.f32 %v3355
    %vm3362 = vmor %vm3360, %vm3361
    %v3363 = vsel %vm3362, %v3355, %v3359
    %v3364 = vand.u32 2147483647, %v3354
    %vm3365 = vcmp.eq.f32.partialorder %v3364, 8.507059e+37
    %v3366 = vand.u32 %v3354, 2147483648
    %v3367 = vor.u32 1.1754944e-38, %v3366
    %v3368 = vsel %vm3365, %v3367, %v3363
    %v3369 = vmul.f32 1.0, %v3368
    %v3370 = vmul.f32 %v3349, %v2899
    %v3371 = vmul.f32 %v3330, %v3350
    %v3372 = vadd.f32 %v3370, %v3371
    %v3373 = vtanh.pop %v3372
    %v3374 = vmul.f32 %v3369, %v3373
    %3375 = vst.msk [vmem:[#allocation3 + $0xa] sm:$0x3] %vm1022, %v3374
    %v3376 = vld [vmem:[#allocation2 + $0x20] sm:$0xc0]
    %v3377 = vld [vmem:[#allocation2 + $0x28] sm:$0xc0]
    %v3378 = vld [vmem:[#allocation2 + $0x30] sm:$0xc0]
    %v3379 = vld [vmem:[#allocation2 + $0x38] sm:$0xc0]
    %v3380 = vld [vmem:[#allocation9] sm:$0xff]
    %v3381 = vld [vmem:[#allocation9 + $0x8] sm:$0xff]
    %v3382 = vld [vmem:[#allocation9 + $0x10] sm:$0xff]
    %v3383 = vld [vmem:[#allocation9 + $0x18] sm:$0xff]
    %v3384 = vld [vmem:[#allocation9 + $0x20] sm:$0xff]
    %v3385 = vld [vmem:[#allocation9 + $0x28] sm:$0xff]
    %v3386 = vld [vmem:[#allocation9 + $0x30] sm:$0xff]
    %v3387 = vld [vmem:[#allocation9 + $0x38] sm:$0xff]
    %v3388 = vld [vmem:[#allocation9 + $0x40] sm:$0xff]
    %v3389 = vld [vmem:[#allocation9 + $0x48] sm:$0xff]
    %v3390 = vld [vmem:[#allocation9 + $0x50] sm:$0xff]
    %v3391 = vld [vmem:[#allocation9 + $0x58] sm:$0xff]
    %v3392 = vld [vmem:[#allocation9 + $0x60] sm:$0xff]
    %v3393 = vld [vmem:[#allocation9 + $0x68] sm:$0xff]
    %v3394 = vld [vmem:[#allocation9 + $0x70] sm:$0xff]
    %v3395 = vld [vmem:[#allocation9 + $0x78] sm:$0xff]
    %v3396 = vld [vmem:[#allocation9 + $0x80] sm:$0xff]
    %v3397 = vld [vmem:[#allocation9 + $0x88] sm:$0xff]
    %v3398 = vld [vmem:[#allocation9 + $0x90] sm:$0xff]
    %v3399 = vld [vmem:[#allocation9 + $0x98] sm:$0xff]
    %v3400 = vld [vmem:[#allocation9 + $0xa0] sm:$0xff]
    %v3401 = vld [vmem:[#allocation9 + $0xa8] sm:$0xff]
    %v3402 = vld [vmem:[#allocation9 + $0xb0] sm:$0xff]
    %v3403 = vld [vmem:[#allocation9 + $0xb8] sm:$0xff]
    %v3405 = vrot.slane %v3096, 4
    %v3406 = vsel %vm427, %v3405, 0
    %3408 = vmatpush.msra.mxu0 0.0
    %3409 = vmatpush.msra.mxu0 0.0
    %3410 = vmatpush.msra.mxu0 0.0
    %3411 = vmatpush.msra.mxu0 0.0
    %3412 = vmatpush.msra.mxu0 0.0
    %3413 = vmatpush.msra.mxu0 0.0
    %3414 = vmatpush.msra.mxu0 0.0
    %3415 = vmatpush.msra.mxu0 0.0
    %3416 = vmatpush.msra.mxu0 0.0
    %3417 = vmatpush.msra.mxu0 0.0
    %3418 = vmatpush.msra.mxu0 %v3400
    %3419 = vmatpush.msra.mxu0 %v3396
    %3420 = vmatpush.msra.mxu0 %v3392
    %3421 = vmatpush.msra.mxu0 %v3388
    %3422 = vmatpush.msra.mxu0 %v3384
    %3423 = vmatpush.msra.mxu0 %v3380
    %3424 = vmatmul.f32.gmra.mxu0 %v3406
    %v3425 = vpop.f32.mrf.mxu0
    %v3426 = vadd.f32 0.0, %v3425
    %3427 = vdwg.mxu0
    %3428 = vmatpush.msra.mxu0 0.0
    %3429 = vmatpush.msra.mxu0 0.0
    %3430 = vmatpush.msra.mxu0 0.0
    %3431 = vmatpush.msra.mxu0 0.0
    %3432 = vmatpush.msra.mxu0 0.0
    %3433 = vmatpush.msra.mxu0 0.0
    %3434 = vmatpush.msra.mxu0 0.0
    %3435 = vmatpush.msra.mxu0 0.0
    %3436 = vmatpush.msra.mxu0 0.0
    %3437 = vmatpush.msra.mxu0 0.0
    %3438 = vmatpush.msra.mxu0 %v3401
    %3439 = vmatpush.msra.mxu0 %v3397
    %3440 = vmatpush.msra.mxu0 %v3393
    %3441 = vmatpush.msra.mxu0 %v3389
    %3442 = vmatpush.msra.mxu0 %v3385
    %3443 = vmatpush.msra.mxu0 %v3381
    %3444 = vmatmul.f32.gmra.mxu0 %v3406
    %v3445 = vpop.f32.mrf.mxu0
    %v3446 = vadd.f32 0.0, %v3445
    %3447 = vdwg.mxu0
    %3448 = vmatpush.msra.mxu0 0.0
    %3449 = vmatpush.msra.mxu0 0.0
    %3450 = vmatpush.msra.mxu0 0.0
    %3451 = vmatpush.msra.mxu0 0.0
    %3452 = vmatpush.msra.mxu0 0.0
    %3453 = vmatpush.msra.mxu0 0.0
    %3454 = vmatpush.msra.mxu0 0.0
    %3455 = vmatpush.msra.mxu0 0.0
    %3456 = vmatpush.msra.mxu0 0.0
    %3457 = vmatpush.msra.mxu0 0.0
    %3458 = vmatpush.msra.mxu0 %v3402
    %3459 = vmatpush.msra.mxu0 %v3398
    %3460 = vmatpush.msra.mxu0 %v3394
    %3461 = vmatpush.msra.mxu0 %v3390
    %3462 = vmatpush.msra.mxu0 %v3386
    %3463 = vmatpush.msra.mxu0 %v3382
    %3464 = vmatmul.f32.gmra.mxu0 %v3406
    %v3465 = vpop.f32.mrf.mxu0
    %v3466 = vadd.f32 0.0, %v3465
    %3467 = vdwg.mxu0
    %3468 = vmatpush.msra.mxu0 0.0
    %3469 = vmatpush.msra.mxu0 0.0
    %3470 = vmatpush.msra.mxu0 0.0
    %3471 = vmatpush.msra.mxu0 0.0
    %3472 = vmatpush.msra.mxu0 0.0
    %3473 = vmatpush.msra.mxu0 0.0
    %3474 = vmatpush.msra.mxu0 0.0
    %3475 = vmatpush.msra.mxu0 0.0
    %3476 = vmatpush.msra.mxu0 0.0
    %3477 = vmatpush.msra.mxu0 0.0
    %3478 = vmatpush.msra.mxu0 %v3403
    %3479 = vmatpush.msra.mxu0 %v3399
    %3480 = vmatpush.msra.mxu0 %v3395
    %3481 = vmatpush.msra.mxu0 %v3391
    %3482 = vmatpush.msra.mxu0 %v3387
    %3483 = vmatpush.msra.mxu0 %v3383
    %3484 = vmatmul.f32.gmra.mxu0 %v3406
    %v3485 = vpop.f32.mrf.mxu0
    %v3486 = vadd.f32 0.0, %v3485
    %3487 = vdwg.mxu0
    %v3492 = vrot.slane %v3426, 2
    %v3493 = vrot.slane %v3446, 2
    %v3494 = vrot.slane %v3466, 2
    %v3495 = vrot.slane %v3486, 2
    %v3500 = vadd.f32 %v3376, %v3492
    %v3501 = vadd.f32 %v3377, %v3493
    %v3502 = vadd.f32 %v3378, %v3494
    %v3503 = vadd.f32 %v3379, %v3495
    %v3504 = vxor.u32 %v3500, 2147483648
    %v3505 = vmul.f32 %v3504, 1.442695
    %v3506 = vpow.pop %v3505
    %v3507 = vadd.f32 %v3506, 1.0
    %v3508 = vrcp.pop %v3507
    %v3509 = vmul.f32 %v3507, %v3508
    %v3510 = vsub.f32 1.0, %v3509
    %v3511 = vmul.f32 %v3508, %v3510
    %v3512 = vadd.f32 %v3508, %v3511
    %vm3513 = vweird.f32 %v3507
    %vm3514 = vweird.f32 %v3508
    %vm3515 = vmor %vm3513, %vm3514
    %v3516 = vsel %vm3515, %v3508, %v3512
    %v3517 = vand.u32 2147483647, %v3507
    %vm3518 = vcmp.eq.f32.partialorder %v3517, 8.507059e+37
    %v3519 = vand.u32 %v3507, 2147483648
    %v3520 = vor.u32 1.1754944e-38, %v3519
    %v3521 = vsel %vm3518, %v3520, %v3516
    %v3522 = vmul.f32 1.0, %v3521
    %v3523 = vxor.u32 %v3501, 2147483648
    %v3524 = vmul.f32 %v3523, 1.442695
    %v3525 = vpow.pop %v3524
    %v3526 = vadd.f32 %v3525, 1.0
    %v3527 = vrcp.pop %v3526
    %v3528 = vmul.f32 %v3526, %v3527
    %v3529 = vsub.f32 1.0, %v3528
    %v3530 = vmul.f32 %v3527, %v3529
    %v3531 = vadd.f32 %v3527, %v3530
    %vm3532 = vweird.f32 %v3526
    %vm3533 = vweird.f32 %v3527
    %vm3534 = vmor %vm3532, %vm3533
    %v3535 = vsel %vm3534, %v3527, %v3531
    %v3536 = vand.u32 2147483647, %v3526
    %vm3537 = vcmp.eq.f32.partialorder %v3536, 8.507059e+37
    %v3538 = vand.u32 %v3526, 2147483648
    %v3539 = vor.u32 1.1754944e-38, %v3538
    %v3540 = vsel %vm3537, %v3539, %v3535
    %v3541 = vmul.f32 1.0, %v3540
    %v3542 = vtanh.pop %v3502
    %v3543 = vxor.u32 %v3503, 2147483648
    %v3544 = vmul.f32 %v3543, 1.442695
    %v3545 = vpow.pop %v3544
    %v3546 = vadd.f32 %v3545, 1.0
    %v3547 = vrcp.pop %v3546
    %v3548 = vmul.f32 %v3546, %v3547
    %v3549 = vsub.f32 1.0, %v3548
    %v3550 = vmul.f32 %v3547, %v3549
    %v3551 = vadd.f32 %v3547, %v3550
    %vm3552 = vweird.f32 %v3546
    %vm3553 = vweird.f32 %v3547
    %vm3554 = vmor %vm3552, %vm3553
    %v3555 = vsel %vm3554, %v3547, %v3551
    %v3556 = vand.u32 2147483647, %v3546
    %vm3557 = vcmp.eq.f32.partialorder %v3556, 8.507059e+37
    %v3558 = vand.u32 %v3546, 2147483648
    %v3559 = vor.u32 1.1754944e-38, %v3558
    %v3560 = vsel %vm3557, %v3559, %v3555
    %v3561 = vmul.f32 1.0, %v3560
    %v3563 = vrot.slane %v3094, 6
    %v3565 = vmul.f32 %v3541, %v3563
    %v3566 = vmul.f32 %v3522, %v3542
    %v3567 = vadd.f32 %v3565, %v3566
    %v3568 = vtanh.pop %v3567
    %v3569 = vmul.f32 %v3561, %v3568
    %v3570 = vld [vmem:[#allocation11] sm:$0xff]
    %v3571 = vld [vmem:[#allocation11 + $0x8] sm:$0xff]
    %v3572 = vld [vmem:[#allocation11 + $0x10] sm:$0xff]
    %v3573 = vld [vmem:[#allocation11 + $0x18] sm:$0xff]
    %v3574 = vld [vmem:[#allocation11 + $0x20] sm:$0xff]
    %v3575 = vld [vmem:[#allocation11 + $0x28] sm:$0xff]
    %v3576 = vld [vmem:[#allocation11 + $0x30] sm:$0xff]
    %v3577 = vld [vmem:[#allocation11 + $0x38] sm:$0xff]
    %v3578 = vld [vmem:[#allocation11 + $0x40] sm:$0xff]
    %v3579 = vld [vmem:[#allocation11 + $0x48] sm:$0xff]
    %v3580 = vld [vmem:[#allocation11 + $0x50] sm:$0xff]
    %v3581 = vld [vmem:[#allocation11 + $0x58] sm:$0xff]
    %v3582 = vld [vmem:[#allocation11 + $0x60] sm:$0xff]
    %v3583 = vld [vmem:[#allocation11 + $0x68] sm:$0xff]
    %v3584 = vld [vmem:[#allocation11 + $0x70] sm:$0xff]
    %v3585 = vld [vmem:[#allocation11 + $0x78] sm:$0xff]
    %v3586 = vld [vmem:[#allocation11 + $0x80] sm:$0xff]
    %v3587 = vld [vmem:[#allocation11 + $0x88] sm:$0xff]
    %v3588 = vld [vmem:[#allocation11 + $0x90] sm:$0xff]
    %v3589 = vld [vmem:[#allocation11 + $0x98] sm:$0xff]
    %v3590 = vld [vmem:[#allocation11 + $0xa0] sm:$0xff]
    %v3591 = vld [vmem:[#allocation11 + $0xa8] sm:$0xff]
    %v3592 = vld [vmem:[#allocation11 + $0xb0] sm:$0xff]
    %v3593 = vld [vmem:[#allocation11 + $0xb8] sm:$0xff]
    %v3594 = vld [vmem:[#allocation12] sm:$0xff]
    %v3595 = vld [vmem:[#allocation12 + $0x8] sm:$0xff]
    %v3596 = vld [vmem:[#allocation12 + $0x10] sm:$0xff]
    %v3597 = vld [vmem:[#allocation12 + $0x18] sm:$0xff]
    %v3598 = vld [vmem:[#allocation12 + $0x20] sm:$0xff]
    %v3599 = vld [vmem:[#allocation12 + $0x28] sm:$0xff]
    %v3600 = vld [vmem:[#allocation12 + $0x30] sm:$0xff]
    %v3601 = vld [vmem:[#allocation12 + $0x38] sm:$0xff]
    %v3602 = vld [vmem:[#allocation12 + $0x40] sm:$0xff]
    %v3603 = vld [vmem:[#allocation12 + $0x48] sm:$0xff]
    %v3604 = vld [vmem:[#allocation12 + $0x50] sm:$0xff]
    %v3605 = vld [vmem:[#allocation12 + $0x58] sm:$0xff]
    %v3606 = vld [vmem:[#allocation12 + $0x60] sm:$0xff]
    %v3607 = vld [vmem:[#allocation12 + $0x68] sm:$0xff]
    %v3608 = vld [vmem:[#allocation12 + $0x70] sm:$0xff]
    %v3609 = vld [vmem:[#allocation12 + $0x78] sm:$0xff]
    %v3610 = vld [vmem:[#allocation12 + $0x80] sm:$0xff]
    %v3611 = vld [vmem:[#allocation12 + $0x88] sm:$0xff]
    %v3612 = vld [vmem:[#allocation12 + $0x90] sm:$0xff]
    %v3613 = vld [vmem:[#allocation12 + $0x98] sm:$0xff]
    %v3614 = vld [vmem:[#allocation12 + $0xa0] sm:$0xff]
    %v3615 = vld [vmem:[#allocation12 + $0xa8] sm:$0xff]
    %v3616 = vld [vmem:[#allocation12 + $0xb0] sm:$0xff]
    %v3617 = vld [vmem:[#allocation12 + $0xb8] sm:$0xff]
    %v3619 = vsel %vm427, %v3374, 0
    %3621 = vmatpush.msra.mxu0 0.0
    %3622 = vmatpush.msra.mxu0 0.0
    %3623 = vmatpush.msra.mxu0 0.0
    %3624 = vmatpush.msra.mxu0 0.0
    %3625 = vmatpush.msra.mxu0 0.0
    %3626 = vmatpush.msra.mxu0 0.0
    %3627 = vmatpush.msra.mxu0 0.0
    %3628 = vmatpush.msra.mxu0 0.0
    %3629 = vmatpush.msra.mxu0 0.0
    %3630 = vmatpush.msra.mxu0 0.0
    %3631 = vmatpush.msra.mxu0 %v3614
    %3632 = vmatpush.msra.mxu0 %v3610
    %3633 = vmatpush.msra.mxu0 %v3606
    %3634 = vmatpush.msra.mxu0 %v3602
    %3635 = vmatpush.msra.mxu0 %v3598
    %3636 = vmatpush.msra.mxu0 %v3594
    %3637 = vmatmul.f32.gmra.mxu0 %v3619
    %v3638 = vpop.f32.mrf.mxu0
    %v3639 = vadd.f32 0.0, %v3638
    %3640 = vdwg.mxu0
    %3641 = vmatpush.msra.mxu0 0.0
    %3642 = vmatpush.msra.mxu0 0.0
    %3643 = vmatpush.msra.mxu0 0.0
    %3644 = vmatpush.msra.mxu0 0.0
    %3645 = vmatpush.msra.mxu0 0.0
    %3646 = vmatpush.msra.mxu0 0.0
    %3647 = vmatpush.msra.mxu0 0.0
    %3648 = vmatpush.msra.mxu0 0.0
    %3649 = vmatpush.msra.mxu0 0.0
    %3650 = vmatpush.msra.mxu0 0.0
    %3651 = vmatpush.msra.mxu0 %v3615
    %3652 = vmatpush.msra.mxu0 %v3611
    %3653 = vmatpush.msra.mxu0 %v3607
    %3654 = vmatpush.msra.mxu0 %v3603
    %3655 = vmatpush.msra.mxu0 %v3599
    %3656 = vmatpush.msra.mxu0 %v3595
    %3657 = vmatmul.f32.gmra.mxu0 %v3619
    %v3658 = vpop.f32.mrf.mxu0
    %v3659 = vadd.f32 0.0, %v3658
    %3660 = vdwg.mxu0
    %3661 = vmatpush.msra.mxu0 0.0
    %3662 = vmatpush.msra.mxu0 0.0
    %3663 = vmatpush.msra.mxu0 0.0
    %3664 = vmatpush.msra.mxu0 0.0
    %3665 = vmatpush.msra.mxu0 0.0
    %3666 = vmatpush.msra.mxu0 0.0
    %3667 = vmatpush.msra.mxu0 0.0
    %3668 = vmatpush.msra.mxu0 0.0
    %3669 = vmatpush.msra.mxu0 0.0
    %3670 = vmatpush.msra.mxu0 0.0
    %3671 = vmatpush.msra.mxu0 %v3616
    %3672 = vmatpush.msra.mxu0 %v3612
    %3673 = vmatpush.msra.mxu0 %v3608
    %3674 = vmatpush.msra.mxu0 %v3604
    %3675 = vmatpush.msra.mxu0 %v3600
    %3676 = vmatpush.msra.mxu0 %v3596
    %3677 = vmatmul.f32.gmra.mxu0 %v3619
    %v3678 = vpop.f32.mrf.mxu0
    %v3679 = vadd.f32 0.0, %v3678
    %3680 = vdwg.mxu0
    %3681 = vmatpush.msra.mxu0 0.0
    %3682 = vmatpush.msra.mxu0 0.0
    %3683 = vmatpush.msra.mxu0 0.0
    %3684 = vmatpush.msra.mxu0 0.0
    %3685 = vmatpush.msra.mxu0 0.0
    %3686 = vmatpush.msra.mxu0 0.0
    %3687 = vmatpush.msra.mxu0 0.0
    %3688 = vmatpush.msra.mxu0 0.0
    %3689 = vmatpush.msra.mxu0 0.0
    %3690 = vmatpush.msra.mxu0 0.0
    %3691 = vmatpush.msra.mxu0 %v3617
    %3692 = vmatpush.msra.mxu0 %v3613
    %3693 = vmatpush.msra.mxu0 %v3609
    %3694 = vmatpush.msra.mxu0 %v3605
    %3695 = vmatpush.msra.mxu0 %v3601
    %3696 = vmatpush.msra.mxu0 %v3597
    %3697 = vmatmul.f32.gmra.mxu0 %v3619
    %v3698 = vpop.f32.mrf.mxu0
    %v3699 = vadd.f32 0.0, %v3698
    %3700 = vdwg.mxu0
    %3701 = vmatpush.msra.mxu0 0.0
    %3702 = vmatpush.msra.mxu0 0.0
    %3703 = vmatpush.msra.mxu0 0.0
    %3704 = vmatpush.msra.mxu0 0.0
    %3705 = vmatpush.msra.mxu0 0.0
    %3706 = vmatpush.msra.mxu0 0.0
    %3707 = vmatpush.msra.mxu0 0.0
    %3708 = vmatpush.msra.mxu0 0.0
    %3709 = vmatpush.msra.mxu0 0.0
    %3710 = vmatpush.msra.mxu0 0.0
    %3711 = vmatpush.msra.mxu0 %v3590
    %3712 = vmatpush.msra.mxu0 %v3586
    %3713 = vmatpush.msra.mxu0 %v3582
    %3714 = vmatpush.msra.mxu0 %v3578
    %3715 = vmatpush.msra.mxu0 %v3574
    %3716 = vmatpush.msra.mxu0 %v3570
    %3717 = vmatmul.f32.gmra.mxu0 %v3406
    %v3718 = vpop.f32.mrf.mxu0
    %v3719 = vadd.f32 %v3639, %v3718
    %3720 = vdwg.mxu0
    %3721 = vmatpush.msra.mxu0 0.0
    %3722 = vmatpush.msra.mxu0 0.0
    %3723 = vmatpush.msra.mxu0 0.0
    %3724 = vmatpush.msra.mxu0 0.0
    %3725 = vmatpush.msra.mxu0 0.0
    %3726 = vmatpush.msra.mxu0 0.0
    %3727 = vmatpush.msra.mxu0 0.0
    %3728 = vmatpush.msra.mxu0 0.0
    %3729 = vmatpush.msra.mxu0 0.0
    %3730 = vmatpush.msra.mxu0 0.0
    %3731 = vmatpush.msra.mxu0 %v3591
    %3732 = vmatpush.msra.mxu0 %v3587
    %3733 = vmatpush.msra.mxu0 %v3583
    %3734 = vmatpush.msra.mxu0 %v3579
    %3735 = vmatpush.msra.mxu0 %v3575
    %3736 = vmatpush.msra.mxu0 %v3571
    %3737 = vmatmul.f32.gmra.mxu0 %v3406
    %v3738 = vpop.f32.mrf.mxu0
    %v3739 = vadd.f32 %v3659, %v3738
    %3740 = vdwg.mxu0
    %3741 = vmatpush.msra.mxu0 0.0
    %3742 = vmatpush.msra.mxu0 0.0
    %3743 = vmatpush.msra.mxu0 0.0
    %3744 = vmatpush.msra.mxu0 0.0
    %3745 = vmatpush.msra.mxu0 0.0
    %3746 = vmatpush.msra.mxu0 0.0
    %3747 = vmatpush.msra.mxu0 0.0
    %3748 = vmatpush.msra.mxu0 0.0
    %3749 = vmatpush.msra.mxu0 0.0
    %3750 = vmatpush.msra.mxu0 0.0
    %3751 = vmatpush.msra.mxu0 %v3592
    %3752 = vmatpush.msra.mxu0 %v3588
    %3753 = vmatpush.msra.mxu0 %v3584
    %3754 = vmatpush.msra.mxu0 %v3580
    %3755 = vmatpush.msra.mxu0 %v3576
    %3756 = vmatpush.msra.mxu0 %v3572
    %3757 = vmatmul.f32.gmra.mxu0 %v3406
    %v3758 = vpop.f32.mrf.mxu0
    %v3759 = vadd.f32 %v3679, %v3758
    %3760 = vdwg.mxu0
    %3761 = vmatpush.msra.mxu0 0.0
    %3762 = vmatpush.msra.mxu0 0.0
    %3763 = vmatpush.msra.mxu0 0.0
    %3764 = vmatpush.msra.mxu0 0.0
    %3765 = vmatpush.msra.mxu0 0.0
    %3766 = vmatpush.msra.mxu0 0.0
    %3767 = vmatpush.msra.mxu0 0.0
    %3768 = vmatpush.msra.mxu0 0.0
    %3769 = vmatpush.msra.mxu0 0.0
    %3770 = vmatpush.msra.mxu0 0.0
    %3771 = vmatpush.msra.mxu0 %v3593
    %3772 = vmatpush.msra.mxu0 %v3589
    %3773 = vmatpush.msra.mxu0 %v3585
    %3774 = vmatpush.msra.mxu0 %v3581
    %3775 = vmatpush.msra.mxu0 %v3577
    %3776 = vmatpush.msra.mxu0 %v3573
    %3777 = vmatmul.f32.gmra.mxu0 %v3406
    %v3778 = vpop.f32.mrf.mxu0
    %v3779 = vadd.f32 %v3699, %v3778
    %3780 = vdwg.mxu0
    %v3781 = vadd.f32 %v3719, %v391
    %v3782 = vadd.f32 %v3739, %v392
    %v3783 = vadd.f32 %v3759, %v393
    %v3784 = vadd.f32 %v3779, %v394
    %v3785 = vxor.u32 %v3781, 2147483648
    %v3786 = vmul.f32 %v3785, 1.442695
    %v3787 = vpow.pop %v3786
    %v3788 = vadd.f32 %v3787, 1.0
    %v3789 = vrcp.pop %v3788
    %v3790 = vmul.f32 %v3788, %v3789
    %v3791 = vsub.f32 1.0, %v3790
    %v3792 = vmul.f32 %v3789, %v3791
    %v3793 = vadd.f32 %v3789, %v3792
    %vm3794 = vweird.f32 %v3788
    %vm3795 = vweird.f32 %v3789
    %vm3796 = vmor %vm3794, %vm3795
    %v3797 = vsel %vm3796, %v3789, %v3793
    %v3798 = vand.u32 2147483647, %v3788
    %vm3799 = vcmp.eq.f32.partialorder %v3798, 8.507059e+37
    %v3800 = vand.u32 %v3788, 2147483648
    %v3801 = vor.u32 1.1754944e-38, %v3800
    %v3802 = vsel %vm3799, %v3801, %v3797
    %v3803 = vmul.f32 1.0, %v3802
    %v3804 = vxor.u32 %v3782, 2147483648
    %v3805 = vmul.f32 %v3804, 1.442695
    %v3806 = vpow.pop %v3805
    %v3807 = vadd.f32 %v3806, 1.0
    %v3808 = vrcp.pop %v3807
    %v3809 = vmul.f32 %v3807, %v3808
    %v3810 = vsub.f32 1.0, %v3809
    %v3811 = vmul.f32 %v3808, %v3810
    %v3812 = vadd.f32 %v3808, %v3811
    %vm3813 = vweird.f32 %v3807
    %vm3814 = vweird.f32 %v3808
    %vm3815 = vmor %vm3813, %vm3814
    %v3816 = vsel %vm3815, %v3808, %v3812
    %v3817 = vand.u32 2147483647, %v3807
    %vm3818 = vcmp.eq.f32.partialorder %v3817, 8.507059e+37
    %v3819 = vand.u32 %v3807, 2147483648
    %v3820 = vor.u32 1.1754944e-38, %v3819
    %v3821 = vsel %vm3818, %v3820, %v3816
    %v3822 = vmul.f32 1.0, %v3821
    %v3823 = vtanh.pop %v3783
    %v3824 = vxor.u32 %v3784, 2147483648
    %v3825 = vmul.f32 %v3824, 1.442695
    %v3826 = vpow.pop %v3825
    %v3827 = vadd.f32 %v3826, 1.0
    %v3828 = vrcp.pop %v3827
    %v3829 = vmul.f32 %v3827, %v3828
    %v3830 = vsub.f32 1.0, %v3829
    %v3831 = vmul.f32 %v3828, %v3830
    %v3832 = vadd.f32 %v3828, %v3831
    %vm3833 = vweird.f32 %v3827
    %vm3834 = vweird.f32 %v3828
    %vm3835 = vmor %vm3833, %vm3834
    %v3836 = vsel %vm3835, %v3828, %v3832
    %v3837 = vand.u32 2147483647, %v3827
    %vm3838 = vcmp.eq.f32.partialorder %v3837, 8.507059e+37
    %v3839 = vand.u32 %v3827, 2147483648
    %v3840 = vor.u32 1.1754944e-38, %v3839
    %v3841 = vsel %vm3838, %v3840, %v3836
    %v3842 = vmul.f32 1.0, %v3841
    %v3843 = vmul.f32 %v3822, %v3372
    %v3844 = vmul.f32 %v3803, %v3823
    %v3845 = vadd.f32 %v3843, %v3844
    %v3846 = vtanh.pop %v3845
    %v3847 = vmul.f32 %v3842, %v3846
    %3848 = vst.msk [vmem:[#allocation3 + $0xc] sm:$0x3] %vm1022, %v3847
    %v3849 = vld [vmem:[#allocation11] sm:$0xff]
    %v3850 = vld [vmem:[#allocation11 + $0x8] sm:$0xff]
    %v3851 = vld [vmem:[#allocation11 + $0x10] sm:$0xff]
    %v3852 = vld [vmem:[#allocation11 + $0x18] sm:$0xff]
    %v3853 = vld [vmem:[#allocation11 + $0x20] sm:$0xff]
    %v3854 = vld [vmem:[#allocation11 + $0x28] sm:$0xff]
    %v3855 = vld [vmem:[#allocation11 + $0x30] sm:$0xff]
    %v3856 = vld [vmem:[#allocation11 + $0x38] sm:$0xff]
    %v3857 = vld [vmem:[#allocation11 + $0x40] sm:$0xff]
    %v3858 = vld [vmem:[#allocation11 + $0x48] sm:$0xff]
    %v3859 = vld [vmem:[#allocation11 + $0x50] sm:$0xff]
    %v3860 = vld [vmem:[#allocation11 + $0x58] sm:$0xff]
    %v3861 = vld [vmem:[#allocation11 + $0x60] sm:$0xff]
    %v3862 = vld [vmem:[#allocation11 + $0x68] sm:$0xff]
    %v3863 = vld [vmem:[#allocation11 + $0x70] sm:$0xff]
    %v3864 = vld [vmem:[#allocation11 + $0x78] sm:$0xff]
    %v3865 = vld [vmem:[#allocation11 + $0x80] sm:$0xff]
    %v3866 = vld [vmem:[#allocation11 + $0x88] sm:$0xff]
    %v3867 = vld [vmem:[#allocation11 + $0x90] sm:$0xff]
    %v3868 = vld [vmem:[#allocation11 + $0x98] sm:$0xff]
    %v3869 = vld [vmem:[#allocation11 + $0xa0] sm:$0xff]
    %v3870 = vld [vmem:[#allocation11 + $0xa8] sm:$0xff]
    %v3871 = vld [vmem:[#allocation11 + $0xb0] sm:$0xff]
    %v3872 = vld [vmem:[#allocation11 + $0xb8] sm:$0xff]
    %v3873 = vld [vmem:[#allocation12] sm:$0xff]
    %v3874 = vld [vmem:[#allocation12 + $0x8] sm:$0xff]
    %v3875 = vld [vmem:[#allocation12 + $0x10] sm:$0xff]
    %v3876 = vld [vmem:[#allocation12 + $0x18] sm:$0xff]
    %v3877 = vld [vmem:[#allocation12 + $0x20] sm:$0xff]
    %v3878 = vld [vmem:[#allocation12 + $0x28] sm:$0xff]
    %v3879 = vld [vmem:[#allocation12 + $0x30] sm:$0xff]
    %v3880 = vld [vmem:[#allocation12 + $0x38] sm:$0xff]
    %v3881 = vld [vmem:[#allocation12 + $0x40] sm:$0xff]
    %v3882 = vld [vmem:[#allocation12 + $0x48] sm:$0xff]
    %v3883 = vld [vmem:[#allocation12 + $0x50] sm:$0xff]
    %v3884 = vld [vmem:[#allocation12 + $0x58] sm:$0xff]
    %v3885 = vld [vmem:[#allocation12 + $0x60] sm:$0xff]
    %v3886 = vld [vmem:[#allocation12 + $0x68] sm:$0xff]
    %v3887 = vld [vmem:[#allocation12 + $0x70] sm:$0xff]
    %v3888 = vld [vmem:[#allocation12 + $0x78] sm:$0xff]
    %v3889 = vld [vmem:[#allocation12 + $0x80] sm:$0xff]
    %v3890 = vld [vmem:[#allocation12 + $0x88] sm:$0xff]
    %v3891 = vld [vmem:[#allocation12 + $0x90] sm:$0xff]
    %v3892 = vld [vmem:[#allocation12 + $0x98] sm:$0xff]
    %v3893 = vld [vmem:[#allocation12 + $0xa0] sm:$0xff]
    %v3894 = vld [vmem:[#allocation12 + $0xa8] sm:$0xff]
    %v3895 = vld [vmem:[#allocation12 + $0xb0] sm:$0xff]
    %v3896 = vld [vmem:[#allocation12 + $0xb8] sm:$0xff]
    %v3898 = vsel %vm427, %v3847, 0
    %3900 = vmatpush.msra.mxu0 0.0
    %3901 = vmatpush.msra.mxu0 0.0
    %3902 = vmatpush.msra.mxu0 0.0
    %3903 = vmatpush.msra.mxu0 0.0
    %3904 = vmatpush.msra.mxu0 0.0
    %3905 = vmatpush.msra.mxu0 0.0
    %3906 = vmatpush.msra.mxu0 0.0
    %3907 = vmatpush.msra.mxu0 0.0
    %3908 = vmatpush.msra.mxu0 0.0
    %3909 = vmatpush.msra.mxu0 0.0
    %3910 = vmatpush.msra.mxu0 %v3893
    %3911 = vmatpush.msra.mxu0 %v3889
    %3912 = vmatpush.msra.mxu0 %v3885
    %3913 = vmatpush.msra.mxu0 %v3881
    %3914 = vmatpush.msra.mxu0 %v3877
    %3915 = vmatpush.msra.mxu0 %v3873
    %3916 = vmatmul.f32.gmra.mxu0 %v3898
    %v3917 = vpop.f32.mrf.mxu0
    %v3918 = vadd.f32 0.0, %v3917
    %3919 = vdwg.mxu0
    %3920 = vmatpush.msra.mxu0 0.0
    %3921 = vmatpush.msra.mxu0 0.0
    %3922 = vmatpush.msra.mxu0 0.0
    %3923 = vmatpush.msra.mxu0 0.0
    %3924 = vmatpush.msra.mxu0 0.0
    %3925 = vmatpush.msra.mxu0 0.0
    %3926 = vmatpush.msra.mxu0 0.0
    %3927 = vmatpush.msra.mxu0 0.0
    %3928 = vmatpush.msra.mxu0 0.0
    %3929 = vmatpush.msra.mxu0 0.0
    %3930 = vmatpush.msra.mxu0 %v3894
    %3931 = vmatpush.msra.mxu0 %v3890
    %3932 = vmatpush.msra.mxu0 %v3886
    %3933 = vmatpush.msra.mxu0 %v3882
    %3934 = vmatpush.msra.mxu0 %v3878
    %3935 = vmatpush.msra.mxu0 %v3874
    %3936 = vmatmul.f32.gmra.mxu0 %v3898
    %v3937 = vpop.f32.mrf.mxu0
    %v3938 = vadd.f32 0.0, %v3937
    %3939 = vdwg.mxu0
    %3940 = vmatpush.msra.mxu0 0.0
    %3941 = vmatpush.msra.mxu0 0.0
    %3942 = vmatpush.msra.mxu0 0.0
    %3943 = vmatpush.msra.mxu0 0.0
    %3944 = vmatpush.msra.mxu0 0.0
    %3945 = vmatpush.msra.mxu0 0.0
    %3946 = vmatpush.msra.mxu0 0.0
    %3947 = vmatpush.msra.mxu0 0.0
    %3948 = vmatpush.msra.mxu0 0.0
    %3949 = vmatpush.msra.mxu0 0.0
    %3950 = vmatpush.msra.mxu0 %v3895
    %3951 = vmatpush.msra.mxu0 %v3891
    %3952 = vmatpush.msra.mxu0 %v3887
    %3953 = vmatpush.msra.mxu0 %v3883
    %3954 = vmatpush.msra.mxu0 %v3879
    %3955 = vmatpush.msra.mxu0 %v3875
    %3956 = vmatmul.f32.gmra.mxu0 %v3898
    %v3957 = vpop.f32.mrf.mxu0
    %v3958 = vadd.f32 0.0, %v3957
    %3959 = vdwg.mxu0
    %3960 = vmatpush.msra.mxu0 0.0
    %3961 = vmatpush.msra.mxu0 0.0
    %3962 = vmatpush.msra.mxu0 0.0
    %3963 = vmatpush.msra.mxu0 0.0
    %3964 = vmatpush.msra.mxu0 0.0
    %3965 = vmatpush.msra.mxu0 0.0
    %3966 = vmatpush.msra.mxu0 0.0
    %3967 = vmatpush.msra.mxu0 0.0
    %3968 = vmatpush.msra.mxu0 0.0
    %3969 = vmatpush.msra.mxu0 0.0
    %3970 = vmatpush.msra.mxu0 %v3896
    %3971 = vmatpush.msra.mxu0 %v3892
    %3972 = vmatpush.msra.mxu0 %v3888
    %3973 = vmatpush.msra.mxu0 %v3884
    %3974 = vmatpush.msra.mxu0 %v3880
    %3975 = vmatpush.msra.mxu0 %v3876
    %3976 = vmatmul.f32.gmra.mxu0 %v3898
    %v3977 = vpop.f32.mrf.mxu0
    %v3978 = vadd.f32 0.0, %v3977
    %3979 = vdwg.mxu0
    %v3981 = vrot.slane %v3569, 6
    %v3982 = vsel %vm427, %v3981, 0
    %3984 = vmatpush.msra.mxu0 0.0
    %3985 = vmatpush.msra.mxu0 0.0
    %3986 = vmatpush.msra.mxu0 0.0
    %3987 = vmatpush.msra.mxu0 0.0
    %3988 = vmatpush.msra.mxu0 0.0
    %3989 = vmatpush.msra.mxu0 0.0
    %3990 = vmatpush.msra.mxu0 0.0
    %3991 = vmatpush.msra.mxu0 0.0
    %3992 = vmatpush.msra.mxu0 0.0
    %3993 = vmatpush.msra.mxu0 0.0
    %3994 = vmatpush.msra.mxu0 %v3869
    %3995 = vmatpush.msra.mxu0 %v3865
    %3996 = vmatpush.msra.mxu0 %v3861
    %3997 = vmatpush.msra.mxu0 %v3857
    %3998 = vmatpush.msra.mxu0 %v3853
    %3999 = vmatpush.msra.mxu0 %v3849
    %4000 = vmatmul.f32.gmra.mxu0 %v3982
    %v4001 = vpop.f32.mrf.mxu0
    %v4002 = vadd.f32 %v3918, %v4001
    %4003 = vdwg.mxu0
    %4004 = vmatpush.msra.mxu0 0.0
    %4005 = vmatpush.msra.mxu0 0.0
    %4006 = vmatpush.msra.mxu0 0.0
    %4007 = vmatpush.msra.mxu0 0.0
    %4008 = vmatpush.msra.mxu0 0.0
    %4009 = vmatpush.msra.mxu0 0.0
    %4010 = vmatpush.msra.mxu0 0.0
    %4011 = vmatpush.msra.mxu0 0.0
    %4012 = vmatpush.msra.mxu0 0.0
    %4013 = vmatpush.msra.mxu0 0.0
    %4014 = vmatpush.msra.mxu0 %v3870
    %4015 = vmatpush.msra.mxu0 %v3866
    %4016 = vmatpush.msra.mxu0 %v3862
    %4017 = vmatpush.msra.mxu0 %v3858
    %4018 = vmatpush.msra.mxu0 %v3854
    %4019 = vmatpush.msra.mxu0 %v3850
    %4020 = vmatmul.f32.gmra.mxu0 %v3982
    %v4021 = vpop.f32.mrf.mxu0
    %v4022 = vadd.f32 %v3938, %v4021
    %4023 = vdwg.mxu0
    %4024 = vmatpush.msra.mxu0 0.0
    %4025 = vmatpush.msra.mxu0 0.0
    %4026 = vmatpush.msra.mxu0 0.0
    %4027 = vmatpush.msra.mxu0 0.0
    %4028 = vmatpush.msra.mxu0 0.0
    %4029 = vmatpush.msra.mxu0 0.0
    %4030 = vmatpush.msra.mxu0 0.0
    %4031 = vmatpush.msra.mxu0 0.0
    %4032 = vmatpush.msra.mxu0 0.0
    %4033 = vmatpush.msra.mxu0 0.0
    %4034 = vmatpush.msra.mxu0 %v3871
    %4035 = vmatpush.msra.mxu0 %v3867
    %4036 = vmatpush.msra.mxu0 %v3863
    %4037 = vmatpush.msra.mxu0 %v3859
    %4038 = vmatpush.msra.mxu0 %v3855
    %4039 = vmatpush.msra.mxu0 %v3851
    %4040 = vmatmul.f32.gmra.mxu0 %v3982
    %v4041 = vpop.f32.mrf.mxu0
    %v4042 = vadd.f32 %v3958, %v4041
    %4043 = vdwg.mxu0
    %4044 = vmatpush.msra.mxu0 0.0
    %4045 = vmatpush.msra.mxu0 0.0
    %4046 = vmatpush.msra.mxu0 0.0
    %4047 = vmatpush.msra.mxu0 0.0
    %4048 = vmatpush.msra.mxu0 0.0
    %4049 = vmatpush.msra.mxu0 0.0
    %4050 = vmatpush.msra.mxu0 0.0
    %4051 = vmatpush.msra.mxu0 0.0
    %4052 = vmatpush.msra.mxu0 0.0
    %4053 = vmatpush.msra.mxu0 0.0
    %4054 = vmatpush.msra.mxu0 %v3872
    %4055 = vmatpush.msra.mxu0 %v3868
    %4056 = vmatpush.msra.mxu0 %v3864
    %4057 = vmatpush.msra.mxu0 %v3860
    %4058 = vmatpush.msra.mxu0 %v3856
    %4059 = vmatpush.msra.mxu0 %v3852
    %4060 = vmatmul.f32.gmra.mxu0 %v3982
    %v4061 = vpop.f32.mrf.mxu0
    %v4062 = vadd.f32 %v3978, %v4061
    %4063 = vdwg.mxu0
    %v4064 = vadd.f32 %v4002, %v391
    %v4065 = vadd.f32 %v4022, %v392
    %v4066 = vadd.f32 %v4042, %v393
    %v4067 = vadd.f32 %v4062, %v394
    %v4068 = vxor.u32 %v4064, 2147483648
    %v4069 = vmul.f32 %v4068, 1.442695
    %v4070 = vpow.pop %v4069
    %v4071 = vadd.f32 %v4070, 1.0
    %v4072 = vrcp.pop %v4071
    %v4073 = vmul.f32 %v4071, %v4072
    %v4074 = vsub.f32 1.0, %v4073
    %v4075 = vmul.f32 %v4072, %v4074
    %v4076 = vadd.f32 %v4072, %v4075
    %vm4077 = vweird.f32 %v4071
    %vm4078 = vweird.f32 %v4072
    %vm4079 = vmor %vm4077, %vm4078
    %v4080 = vsel %vm4079, %v4072, %v4076
    %v4081 = vand.u32 2147483647, %v4071
    %vm4082 = vcmp.eq.f32.partialorder %v4081, 8.507059e+37
    %v4083 = vand.u32 %v4071, 2147483648
    %v4084 = vor.u32 1.1754944e-38, %v4083
    %v4085 = vsel %vm4082, %v4084, %v4080
    %v4086 = vmul.f32 1.0, %v4085
    %v4087 = vxor.u32 %v4065, 2147483648
    %v4088 = vmul.f32 %v4087, 1.442695
    %v4089 = vpow.pop %v4088
    %v4090 = vadd.f32 %v4089, 1.0
    %v4091 = vrcp.pop %v4090
    %v4092 = vmul.f32 %v4090, %v4091
    %v4093 = vsub.f32 1.0, %v4092
    %v4094 = vmul.f32 %v4091, %v4093
    %v4095 = vadd.f32 %v4091, %v4094
    %vm4096 = vweird.f32 %v4090
    %vm4097 = vweird.f32 %v4091
    %vm4098 = vmor %vm4096, %vm4097
    %v4099 = vsel %vm4098, %v4091, %v4095
    %v4100 = vand.u32 2147483647, %v4090
    %vm4101 = vcmp.eq.f32.partialorder %v4100, 8.507059e+37
    %v4102 = vand.u32 %v4090, 2147483648
    %v4103 = vor.u32 1.1754944e-38, %v4102
    %v4104 = vsel %vm4101, %v4103, %v4099
    %v4105 = vmul.f32 1.0, %v4104
    %v4106 = vtanh.pop %v4066
    %v4107 = vxor.u32 %v4067, 2147483648
    %v4108 = vmul.f32 %v4107, 1.442695
    %v4109 = vpow.pop %v4108
    %v4110 = vadd.f32 %v4109, 1.0
    %v4111 = vrcp.pop %v4110
    %v4112 = vmul.f32 %v4110, %v4111
    %v4113 = vsub.f32 1.0, %v4112
    %v4114 = vmul.f32 %v4111, %v4113
    %v4115 = vadd.f32 %v4111, %v4114
    %vm4116 = vweird.f32 %v4110
    %vm4117 = vweird.f32 %v4111
    %vm4118 = vmor %vm4116, %vm4117
    %v4119 = vsel %vm4118, %v4111, %v4115
    %v4120 = vand.u32 2147483647, %v4110
    %vm4121 = vcmp.eq.f32.partialorder %v4120, 8.507059e+37
    %v4122 = vand.u32 %v4110, 2147483648
    %v4123 = vor.u32 1.1754944e-38, %v4122
    %v4124 = vsel %vm4121, %v4123, %v4119
    %v4125 = vmul.f32 1.0, %v4124
    %v4126 = vmul.f32 %v4105, %v3845
    %v4127 = vmul.f32 %v4086, %v4106
    %v4128 = vadd.f32 %v4126, %v4127
    %v4129 = vtanh.pop %v4128
    %v4130 = vmul.f32 %v4125, %v4129
    %4131 = vst.msk [vmem:[#allocation3 + $0xe] sm:$0x3] %vm1022, %v4130
    %v4132 = vld [vmem:[#allocation3] sm:$0xff]
    %v4133 = vld [vmem:[#allocation3 + $0x8] sm:$0xff]
    %v4134 = vld [vmem:[#allocation14] sm:$0xff]
    %v4135 = vld [vmem:[#allocation14 + $0x8] sm:$0xff]
    %v4136 = vld [vmem:[#allocation14 + $0x10] sm:$0xff]
    %v4137 = vld [vmem:[#allocation14 + $0x18] sm:$0xff]
    %v4138 = vld [vmem:[#allocation14 + $0x20] sm:$0xff]
    %v4139 = vld [vmem:[#allocation14 + $0x28] sm:$0xff]
    %v4140 = vld [vmem:[%s7] sm:$0x1]
    %v4142 = vperm.slane %v4140, 0
    %v4145 = vsel %vm427, %v4132, 0
    %v4148 = vsel %vm427, %v4133, 0
    %4150 = vmatpush.msra.mxu0 0.0
    %4151 = vmatpush.msra.mxu0 0.0
    %4152 = vmatpush.msra.mxu0 0.0
    %4153 = vmatpush.msra.mxu0 0.0
    %4154 = vmatpush.msra.mxu0 0.0
    %4155 = vmatpush.msra.mxu0 0.0
    %4156 = vmatpush.msra.mxu0 0.0
    %4157 = vmatpush.msra.mxu0 0.0
    %4158 = vmatpush.msra.mxu0 0.0
    %4159 = vmatpush.msra.mxu0 0.0
    %4160 = vmatpush.msra.mxu0 %v4139
    %4161 = vmatpush.msra.mxu0 %v4138
    %4162 = vmatpush.msra.mxu0 %v4137
    %4163 = vmatpush.msra.mxu0 %v4136
    %4164 = vmatpush.msra.mxu0 %v4135
    %4165 = vmatpush.msra.mxu0 %v4134
    %4166 = vmatmul.f32.gmra.mxu0 %v4145
    %v4167 = vpop.f32.mrf.mxu0
    %v4168 = vadd.f32 %v4142, %v4167
    %4169 = vmatmul.f32.gmra.mxu0 %v4148
    %v4170 = vpop.f32.mrf.mxu0
    %v4171 = vadd.f32 %v4142, %v4170
    %4172 = vdwg.mxu0
    %4173 = vst [vmem:[#allocation15] sm:$0xff] %v4168
    %4174 = vst [vmem:[#allocation15 + $0x8] sm:$0xff] %v4171
    // Predicated region
    $region50: #{tpu_custom_call.1} parent=1 // pred_check
      _
    $region51: #{tpu_custom_call.1} parent=1 // pred_check_branch
      %4176 = sbr.rel (0) target = $region53
    $region52: #{tpu_custom_call.1} parent=1 // pred_region
      %4178 = vsyncadd [#allocation8], 0
      %s4179 = sshll.u32 [#allocation15], 4
      %s4180 = int_to_ptr.vmem [resolvable:$true] %s4179
      %s4181 = sshll.u32 %s8, 4
      %s4182 = int_to_ptr.hbm [resolvable:$true] %s4181
      %4187 = dma.vmem_to_hbm [thread:$0]  %s4180, 256, %s4182, [#allocation8], 128, 128, 8
    $region53: #{tpu_custom_call.1} parent=1 // pred_fallthru
      _
    // Predicated region
    $region54: #{tpu_custom_call.1} parent=1 // pred_check
      _
    $region55: #{tpu_custom_call.1} parent=1 // pred_check_branch
      %4189 = sbr.rel (0) target = $region57
    $region56: #{tpu_custom_call.1} parent=1 // pred_region
      %4191 = dma.done [#allocation8], 256
    $region57: #{tpu_custom_call.1} parent=1 // pred_fallthru
      _
    %4192 = vsyncpa [#allocation7], 1
    %4193 = vsyncpa [#allocation10], 1
    %4194 = vsyncpa [#allocation13], 1
    %4195 = vsyncpa [#allocation8], 1

</llo_original>
